<compile_context>
chip_gen: v7x
topology: tpu7x:2x2x1
jax: 0.10.0
libtpu: 0.0.40
codegen_flags: <defaults>
</compile_context>

<pallas_src>
import functools

import jax
import jax.numpy as jnp
from jax import lax
from jax.experimental import pallas as pl
from jax.experimental.pallas import tpu as pltpu

# -------------------- config (mirrors the PyTorch config) -------------------
NUM_CLASSES = 2
KERNEL_SIZE = [3, 3, 3]
SPAN        = [k // 2 for k in KERNEL_SIZE]
K_TOTAL     = KERNEL_SIZE[0] * KERNEL_SIZE[1] * KERNEL_SIZE[2]
NUM_ITERS   = 3
MOMENTUM    = 0.8
MODES       = ["pos", "col"]
POS_SCALE   = 1.0
COL_SCALE   = 0.5
BREAK_TOL   = 0.01

# Storage dtype of the gaussian/combined-filter scratch.  Keep f32 for exact
# parity with the reference; set to jnp.bfloat16 on v7x (storage only, compute
# stays f32) to halve the dominant VMEM consumer for large volumes.
GG_DTYPE = jnp.float32


# ------------------------- fused Pallas kernel -------------------------------
def _fused_crf_kernel(yx_ref, unary_ref, feat_ref, theta_ref, w_ref,
                      out_ref, gg_ref, *,
                      D, H, W, span, mode_slices, num_iters, momentum, break_tol):
    """Per batch element: gaussian filters (with +/- symmetry) -> norms ->
    combined filter -> num_iters mean-field updates (reference-style early
    break) -> prediction / prediction.max().  Spatial layout: (D, H*W) slabs."""
    HW = H * W
    C = out_ref.shape[0]
    Cf = feat_ref.shape[0]
    M = len(mode_slices)
    sz, sy, sx = span
    KY, KX = 2 * sy + 1, 2 * sx + 1
    K = (2 * sz + 1) * KY * KX

    def k_of(dz, dy, dx):
        return (dz + sz) * (KY * KX) + (dy + sy) * KX + (dx + sx)

    def shift_sp(x, ddz, dlane):
        """y[d, p] = x[(d + ddz) % D, (p + dlane) % HW] (wrapped reads are masked)."""
        if ddz:
            x = pltpu.roll(x, (-ddz) % D, axis=0)
        if dlane:
            x = pltpu.roll(x, (-dlane) % HW, axis=1)
        return x

    # ---- boundary masks built in-kernel (replaces the old (K, N) f32 input) ----
    d_col = lax.broadcasted_iota(jnp.int32, (D, 1), 0)   # (D, 1) depth index
    y_row = yx_ref[0:1, :]                                # (1, HW) y index per lane
    x_row = yx_ref[1:2, :]                                # (1, HW) x index per lane

    def boundary_mask(dz, dy, dx):
        """float mask, 1 where (d+dz, y+dy, x+dx) stays inside the volume."""
        mz = None
        if dz > 0:
            mz = d_col < (D - dz)
        elif dz < 0:
            mz = d_col >= (-dz)
        myx = None
        if dy > 0:
            myx = y_row < (H - dy)
        elif dy < 0:
            myx = y_row >= (-dy)
        if dx > 0:
            mx = x_row < (W - dx)
            myx = mx if myx is None else jnp.logical_and(myx, mx)
        elif dx < 0:
            mx = x_row >= (-dx)
            myx = mx if myx is None else jnp.logical_and(myx, mx)
        if mz is None and myx is None:
            return jnp.ones((D, HW), jnp.float32)
        if mz is None:
            return myx.astype(jnp.float32)                # (1, HW), broadcasts at use
        if myx is None:
            return mz.astype(jnp.float32)                 # (D, 1), broadcasts at use
        return mz.astype(jnp.float32) * myx.astype(jnp.float32)   # (D, HW)

    feat = [feat_ref[c] for c in range(Cf)]               # per-channel (D, HW) slabs
    nht = [theta_ref[c] * (-0.5) for c in range(Cf)]      # SMEM scalars, hoisted

    # ---------- phase 1: per-mode gaussian filters (+/- offset symmetry) -----
    # g_m[k, p] = exp(-0.5 * sum_c theta_c (f[c, p+off_k] - f[c, p])^2), zeroed
    # outside the volume (== reference _generate_convolutional_filters).
    ones_slab = jnp.ones((D, HW), jnp.float32)
    kc = k_of(0, 0, 0)
    for m in range(M):
        gg_ref[kc * M + m] = ones_slab.astype(gg_ref.dtype)   # centre: exp(0) = 1
    ssum = [ones_slab for _ in range(M)]                      # centre contribution

    reps_by_dz = {}
    for dz in range(0, sz + 1):
        lst = [(dy, dx)
               for dy in range(-sy, sy + 1)
               for dx in range(-sx, sx + 1)
               if (dz, dy, dx) > (0, 0, 0)]
        if lst:
            reps_by_dz[dz] = lst

    for dz, dydx in reps_by_dz.items():
        # sublane-roll of the (shared, concatenated) features, once per dz group
        base = feat if dz == 0 else \
            [pltpu.roll(f, (-dz) % D, axis=0) for f in feat]
        for dy, dx in dydx:
            lsh = dy * W + dx
            shifted = base if lsh == 0 else \
                [pltpu.roll(f, (-lsh) % HW, axis=1) for f in base]
            m_pos = boundary_mask(dz, dy, dx)
            m_neg = boundary_mask(-dz, -dy, -dx)
            kp = k_of(dz, dy, dx)
            kn = K - 1 - kp                                   # mirrored offset
            for m, (c0, c1) in enumerate(mode_slices):
                acc = None
                for c in range(c0, c1):
                    dlt = shifted[c] - feat[c]
                    term = dlt * dlt * nht[c]
                    acc = term if acc is None else acc + term
                e = jnp.exp(acc)                              # unmasked, (D, HW)
                g_pos = e * m_pos
                g_neg = shift_sp(e, -dz, -lsh) * m_neg        # one exp per +/- pair
                gg_ref[kp * M + m] = g_pos.astype(gg_ref.dtype)
                gg_ref[kn * M + m] = g_neg.astype(gg_ref.dtype)
                ssum[m] = ssum[m] + g_pos + g_neg

    # ---------- phase 2: fold weight_m * norm_m into one combined filter -----
    # norm_m = 1 / (sum_k g_m[k] + 1e-20)  (exact division for fidelity)
    scale = [w_ref[m] / (ssum[m] + 1e-20) for m in range(M)]
    for k in range(K):
        comb = gg_ref[k * M].astype(jnp.float32) * scale[0]
        for m in range(1, M):
            comb = comb + gg_ref[k * M + m].astype(jnp.float32) * scale[m]
        gg_ref[k * M] = comb.astype(gg_ref.dtype)             # reuse the m=0 slot

    # ---------- phase 3: mean-field iterations --------------------------------
    pred = [unary_ref[c] for c in range(C)]
    alive = jnp.ones((1, 1), jnp.float32)                     # 1 until converged
    sum_tol = break_tol * (C * D * HW)                        # mean -> sum threshold
    for _ in range(num_iters):
        gain = alive * (1.0 - momentum)                       # 0 after convergence
        total = [jnp.zeros((D, HW), jnp.float32) for _ in range(C)]
        for dz in range(-sz, sz + 1):
            base = pred if dz == 0 else \
                [pltpu.roll(p, (-dz) % D, axis=0) for p in pred]
            for dy in range(-sy, sy + 1):
                for dx in range(-sx, sx + 1):
                    lsh = dy * W + dx
                    sh = base if lsh == 0 else \
                        [pltpu.roll(p, (-lsh) % HW, axis=1) for p in base]
                    comb_k = gg_ref[k_of(dz, dy, dx) * M].astype(jnp.float32)
                    for c in range(C):
                        total[c] = total[c] + comb_k * sh[c]
        diff = None
        new_pred = []
        for c in range(C):
            # == momentum * pred + (1 - momentum) * message while alive, frozen after
            new_c = pred[c] + gain * (total[c] - pred[c])
            d_c = jnp.sum(jnp.abs(new_c - pred[c]), axis=(0, 1), keepdims=True)
            diff = d_c if diff is None else diff + d_c
            new_pred.append(new_c)
        pred = new_pred
        # Reference break fires *after* the triggering update has been applied;
        # once it fires, gain == 0 freezes later iterations (same output).
        # TODO(synk): gate converged iterations with pl.when on an SMEM flag to
        #             actually skip the rolls/FMAs instead of freezing them.
        alive = alive * (diff >= sum_tol).astype(jnp.float32)

    # ---------- final normalise: prediction / prediction.max() (exact) -------
    mx = None
    for c in range(C):
        c_max = jnp.max(pred[c], axis=(0, 1), keepdims=True)
        mx = c_max if mx is None else jnp.maximum(mx, c_max)
    inv = 1.0 / mx                                            # exact reciprocal
    for c in range(C):
        out_ref[c] = pred[c] * inv                            # lane-dense store, once


# --------------------------- host-side glue ----------------------------------
def _mesh_features(D, H, W, spacing_b):
    zz = jnp.arange(D, dtype=jnp.float32) * spacing_b[0]
    yy = jnp.arange(H, dtype=jnp.float32) * spacing_b[1]
    xx = jnp.arange(W, dtype=jnp.float32) * spacing_b[2]
    mz, my, mx = jnp.meshgrid(zz, yy, xx, indexing="ij")
    return jnp.stack([mz, my, mx], axis=0).reshape(3, D, H * W)


def _generate_features(img_b, D, H, W, spacing_b, mode):
    """img_b: (C_img, D, H*W) -> features (C_f, D, H*W) for one batch element."""
    if mode == "pos":
        return _mesh_features(D, H, W, spacing_b) / POS_SCALE
    if mode == "col":
        return img_b / COL_SCALE
    if mode == "com":
        return jnp.concatenate(
            [_mesh_features(D, H, W, spacing_b) / POS_SCALE, img_b / COL_SCALE], axis=0)
    raise ValueError(f"'{mode}' is not a defined mode.")


def convcrf3d_forward(image, unary, spacing, thetas, weights):
    """image: (B, C_img, D, H, W); unary: (B, C_cls, D, H, W); spacing: (B, 3)."""
    B, C_img, D, H, W = image.shape
    C = unary.shape[1]
    HW = H * W
    M = len(MODES)

    img4 = image.astype(jnp.float32).reshape(B, C_img, D, HW)
    unary4 = unary.astype(jnp.float32).reshape(B, C, D, HW)

    # per-mode features, concatenated along channels so the kernel shares rolls
    feats_b, slice_len = [], None
    for b in range(B):
        per_mode = [_generate_features(img4[b], D, H, W, spacing[b], mode)
                    for mode in MODES]
        if slice_len is None:
            slice_len = [f.shape[0] for f in per_mode]
        feats_b.append(jnp.concatenate(per_mode, axis=0))
    feat_all = jnp.stack(feats_b, axis=0)                     # (B, Cf, D, HW)
    cf_total = feat_all.shape[1]
    mode_slices, c0 = [], 0
    for n in slice_len:
        mode_slices.append((c0, c0 + n))
        c0 += n
    mode_slices = tuple(mode_slices)

    theta_all = jnp.concatenate(
        [jnp.asarray(t, jnp.float32).reshape(-1) for t in thetas])       # (Cf,)
    w_all = jnp.stack(
        [jnp.asarray(w, jnp.float32).reshape(()) for w in weights])      # (M,)
    assert theta_all.shape[0] == cf_total and w_all.shape[0] == M

    # tiny (2, HW) int32 (y, x) lane indices -> in-kernel boundary masks
    yy, xx = jnp.meshgrid(jnp.arange(H, dtype=jnp.int32),
                          jnp.arange(W, dtype=jnp.int32), indexing="ij")
    yx_idx = jnp.stack([yy.reshape(-1), xx.reshape(-1)], axis=0)         # (2, HW)

    kern = functools.partial(
        _fused_crf_kernel, D=D, H=H, W=W, span=tuple(SPAN),
        mode_slices=mode_slices, num_iters=NUM_ITERS, momentum=MOMENTUM,
        break_tol=BREAK_TOL)

    # NOTE: per-batch blocks are double-buffered by default; with B == 1 there is
    # nothing to pipeline (pl.Buffered(1) would reclaim that VMEM at larger scale).
    in_specs = [
        pl.BlockSpec((2, HW), lambda b: (0, 0)),                          # yx indices
        pl.BlockSpec((None, C, D, HW), lambda b: (b, 0, 0, 0)),           # unary
        pl.BlockSpec((None, cf_total, D, HW), lambda b: (b, 0, 0, 0)),    # features
        pl.BlockSpec(memory_space=pltpu.MemorySpace.SMEM),                # thetas
        pl.BlockSpec(memory_space=pltpu.MemorySpace.SMEM),                # weights
    ]

    gg_bytes = K_TOTAL * M * D * HW * jnp.dtype(GG_DTYPE).itemsize
    io_bytes = 4 * (2 * C * D * HW + cf_total * D * HW + 2 * HW)
    vmem_limit = int(min(max(gg_bytes + 2 * io_bytes + (8 << 20), 32 << 20), 64 << 20))

    out = pl.pallas_call(
        kern,
        out_shape=jax.ShapeDtypeStruct((B, C, D, HW), jnp.float32),
        grid=(B,),
        in_specs=in_specs,
        out_specs=pl.BlockSpec((None, C, D, HW), lambda b: (b, 0, 0, 0)),
        scratch_shapes=[pltpu.VMEM((K_TOTAL * M, D, HW), GG_DTYPE)],
        compiler_params=pltpu.CompilerParams(
            dimension_semantics=("parallel",),
            vmem_limit_bytes=vmem_limit),
    )(yx_idx, unary4, feat_all, theta_all, w_all)

    return out.reshape(B, C, D, H, W)


# --------------------------------- main --------------------------------------
if __name__ == "__main__":
    key = jax.random.PRNGKey(0)
    k_img, k_un = jax.random.split(key)
    # D = 8 sublanes, H*W = 128 lanes -> one full (8,128) vreg per spatial slab.
    B, C_IMG, D, H, W = 1, 1, 8, 8, 16

    image = jax.random.normal(k_img, (B, C_IMG, D, H, W), dtype=jnp.float32)
    unary = jax.nn.softmax(
        jax.random.normal(k_un, (B, NUM_CLASSES, D, H, W), dtype=jnp.float32), axis=1)
    spacing = jnp.ones((B, 3), dtype=jnp.float32)

    # deterministic parameters matching the module __init__:
    #   {mode}_theta  = ones(1, c, 1, 1, 1)   -> stored here as (c,)
    #   {mode}_weight = [1 / len(modes)]
    channels = [3, C_IMG]                                  # pos -> 3 coords, col -> C_img
    thetas = [jnp.ones((c,), dtype=jnp.float32) for c in channels]
    weights = [jnp.full((1,), 1.0 / len(MODES), dtype=jnp.float32) for _ in MODES]

    fwd = jax.jit(convcrf3d_forward)
    out = jax.block_until_ready(fwd(image, unary, spacing, thetas, weights))

    assert out.shape == (B, NUM_CLASSES, D, H, W)
    assert bool(jnp.all(jnp.isfinite(out)))
    print("KERNEL_OK")
</pallas_src>

<mosaic_0001>
module attributes {stable_mosaic.version = 11 : i64} {
  func.func @_fused_crf_kernel(%arg0: i32, %arg1: memref<2x128xi32, #tpu.memory_space<vmem>>, %arg2: memref<1x2x8x128xf32, #tpu.memory_space<vmem>>, %arg3: memref<1x4x8x128xf32, #tpu.memory_space<vmem>>, %arg4: memref<4xf32, #tpu.memory_space<smem>>, %arg5: memref<2xf32, #tpu.memory_space<smem>>, %arg6: memref<1x2x8x128xf32, #tpu.memory_space<vmem>>, %arg7: memref<54x8x128xf32, #tpu.memory_space<vmem>>) attributes {dimension_semantics = [#tpu.dimension_semantics<parallel>], iteration_bounds = array<i64: 1>, scalar_prefetch = 0 : i64, scratch_operands = 1 : i64, tpu.core_type = #tpu.core_type<tc>, window_params = [{pipeline_mode = #tpu.pipeline_mode<synchronous>, transform_indices = @transform_0, window_bounds = array<i64: 2, 128>}, {transform_indices = @transform_1, window_bounds = array<i64: 1, 2, 8, 128>}, {transform_indices = @transform_2, window_bounds = array<i64: 1, 4, 8, 128>}, {transform_indices = @transform_3, window_bounds = array<i64: 4>}, {transform_indices = @transform_4, window_bounds = array<i64: 2>}, {transform_indices = @transform_5, window_bounds = array<i64: 1, 2, 8, 128>}]} {
    %0 = tpu.iota {dimensions = array<i32: 0>} : vector<8x1xi32>
    %c0 = arith.constant 0 : index
    %c0_0 = arith.constant 0 : index
    %1 = vector.load %arg1[%c0, %c0_0] : memref<2x128xi32, #tpu.memory_space<vmem>>, vector<1x128xi32>
    %c1 = arith.constant 1 : index
    %c0_1 = arith.constant 0 : index
    %2 = vector.load %arg1[%c1, %c0_1] : memref<2x128xi32, #tpu.memory_space<vmem>>, vector<1x128xi32>
    %c0_2 = arith.constant 0 : index
    %c0_3 = arith.constant 0 : index
    %c0_4 = arith.constant 0 : index
    %c0_5 = arith.constant 0 : index
    %3 = vector.load %arg3[%c0_2, %c0_3, %c0_4, %c0_5] : memref<1x4x8x128xf32, #tpu.memory_space<vmem>>, vector<1x1x8x128xf32>
    %4 = vector.shape_cast %3 : vector<1x1x8x128xf32> to vector<8x128xf32>
    %c0_6 = arith.constant 0 : index
    %c1_7 = arith.constant 1 : index
    %c0_8 = arith.constant 0 : index
    %c0_9 = arith.constant 0 : index
    %5 = vector.load %arg3[%c0_6, %c1_7, %c0_8, %c0_9] : memref<1x4x8x128xf32, #tpu.memory_space<vmem>>, vector<1x1x8x128xf32>
    %6 = vector.shape_cast %5 : vector<1x1x8x128xf32> to vector<8x128xf32>
    %c0_10 = arith.constant 0 : index
    %c2 = arith.constant 2 : index
    %c0_11 = arith.constant 0 : index
    %c0_12 = arith.constant 0 : index
    %7 = vector.load %arg3[%c0_10, %c2, %c0_11, %c0_12] : memref<1x4x8x128xf32, #tpu.memory_space<vmem>>, vector<1x1x8x128xf32>
    %8 = vector.shape_cast %7 : vector<1x1x8x128xf32> to vector<8x128xf32>
    %c0_13 = arith.constant 0 : index
    %c3 = arith.constant 3 : index
    %c0_14 = arith.constant 0 : index
    %c0_15 = arith.constant 0 : index
    %9 = vector.load %arg3[%c0_13, %c3, %c0_14, %c0_15] : memref<1x4x8x128xf32, #tpu.memory_space<vmem>>, vector<1x1x8x128xf32>
    %10 = vector.shape_cast %9 : vector<1x1x8x128xf32> to vector<8x128xf32>
    %c0_16 = arith.constant 0 : index
    %11 = memref.load %arg4[%c0_16] : memref<4xf32, #tpu.memory_space<smem>>
    %cst = arith.constant -5.000000e-01 : f32
    %12 = arith.mulf %11, %cst : f32
    %c1_17 = arith.constant 1 : index
    %13 = memref.load %arg4[%c1_17] : memref<4xf32, #tpu.memory_space<smem>>
    %cst_18 = arith.constant -5.000000e-01 : f32
    %14 = arith.mulf %13, %cst_18 : f32
    %c2_19 = arith.constant 2 : index
    %15 = memref.load %arg4[%c2_19] : memref<4xf32, #tpu.memory_space<smem>>
    %cst_20 = arith.constant -5.000000e-01 : f32
    %16 = arith.mulf %15, %cst_20 : f32
    %c3_21 = arith.constant 3 : index
    %17 = memref.load %arg4[%c3_21] : memref<4xf32, #tpu.memory_space<smem>>
    %cst_22 = arith.constant -5.000000e-01 : f32
    %18 = arith.mulf %17, %cst_22 : f32
    %cst_23 = arith.constant 1.000000e+00 : f32
    %19 = vector.broadcast %cst_23 : f32 to vector<8x128xf32>
    %c26 = arith.constant 26 : index
    %c0_24 = arith.constant 0 : index
    %c0_25 = arith.constant 0 : index
    %20 = vector.load %arg7[%c26, %c0_24, %c0_25] : memref<54x8x128xf32, #tpu.memory_space<vmem>>, vector<1x8x128xf32>
    %21 = vector.shape_cast %20 : vector<1x8x128xf32> to vector<8x128xf32>
    %22 = vector.shape_cast %19 : vector<8x128xf32> to vector<1x8x128xf32>
    tpu.vector_store %arg7[%c26, %c0_24, %c0_25], %22 {strides = array<i32>} : memref<54x8x128xf32, #tpu.memory_space<vmem>>, vector<1x8x128xf32>,
    %c27 = arith.constant 27 : index
    %c0_26 = arith.constant 0 : index
    %c0_27 = arith.constant 0 : index
    %23 = vector.load %arg7[%c27, %c0_26, %c0_27] : memref<54x8x128xf32, #tpu.memory_space<vmem>>, vector<1x8x128xf32>
    %24 = vector.shape_cast %23 : vector<1x8x128xf32> to vector<8x128xf32>
    %25 = vector.shape_cast %19 : vector<8x128xf32> to vector<1x8x128xf32>
    tpu.vector_store %arg7[%c27, %c0_26, %c0_27], %25 {strides = array<i32>} : memref<54x8x128xf32, #tpu.memory_space<vmem>>, vector<1x8x128xf32>,
    %c127_i32 = arith.constant 127 : i32
    %26 = tpu.dynamic_rotate %4 by %c127_i32 dim 1 : vector<8x128xf32>, i32 -> vector<8x128xf32>
    %c127_i32_28 = arith.constant 127 : i32
    %27 = tpu.dynamic_rotate %6 by %c127_i32_28 dim 1 : vector<8x128xf32>, i32 -> vector<8x128xf32>
    %c127_i32_29 = arith.constant 127 : i32
    %28 = tpu.dynamic_rotate %8 by %c127_i32_29 dim 1 : vector<8x128xf32>, i32 -> vector<8x128xf32>
    %c127_i32_30 = arith.constant 127 : i32
    %29 = tpu.dynamic_rotate %10 by %c127_i32_30 dim 1 : vector<8x128xf32>, i32 -> vector<8x128xf32>
    %c15_i32 = arith.constant 15 : i32
    %30 = vector.broadcast %c15_i32 : i32 to vector<1x128xi32>
    %31 = arith.cmpi slt, %2, %30 : vector<1x128xi32>
    %32 = arith.extui %31 : vector<1x128xi1> to vector<1x128xi32>
    %33 = arith.sitofp %32 : vector<1x128xi32> to vector<1x128xf32>
    %c1_i32 = arith.constant 1 : i32
    %34 = vector.broadcast %c1_i32 : i32 to vector<1x128xi32>
    %35 = arith.cmpi sge, %2, %34 : vector<1x128xi32>
    %36 = arith.extui %35 : vector<1x128xi1> to vector<1x128xi32>
    %37 = arith.sitofp %36 : vector<1x128xi32> to vector<1x128xf32>
    %38 = arith.subf %26, %4 : vector<8x128xf32>
    %39 = arith.mulf %38, %38 : vector<8x128xf32>
    %40 = vector.broadcast %12 : f32 to vector<8x128xf32>
    %41 = arith.mulf %39, %40 : vector<8x128xf32>
    %42 = arith.subf %27, %6 : vector<8x128xf32>
    %43 = arith.mulf %42, %42 : vector<8x128xf32>
    %44 = vector.broadcast %14 : f32 to vector<8x128xf32>
    %45 = arith.mulf %43, %44 : vector<8x128xf32>
    %46 = arith.addf %41, %45 : vector<8x128xf32>
    %47 = arith.subf %28, %8 : vector<8x128xf32>
    %48 = arith.mulf %47, %47 : vector<8x128xf32>
    %49 = vector.broadcast %16 : f32 to vector<8x128xf32>
    %50 = arith.mulf %48, %49 : vector<8x128xf32>
    %51 = arith.addf %46, %50 : vector<8x128xf32>
    %52 = math.exp %51 : vector<8x128xf32>
    %53 = vector.broadcast %33 : vector<1x128xf32> to vector<8x128xf32>
    %54 = arith.mulf %52, %53 : vector<8x128xf32>
    %c1_i32_31 = arith.constant 1 : i32
    %55 = tpu.dynamic_rotate %52 by %c1_i32_31 dim 1 : vector<8x128xf32>, i32 -> vector<8x128xf32>
    %56 = vector.broadcast %37 : vector<1x128xf32> to vector<8x128xf32>
    %57 = arith.mulf %55, %56 : vector<8x128xf32>
    %c28 = arith.constant 28 : index
    %c0_32 = arith.constant 0 : index
    %c0_33 = arith.constant 0 : index
    %58 = vector.load %arg7[%c28, %c0_32, %c0_33] : memref<54x8x128xf32, #tpu.memory_space<vmem>>, vector<1x8x128xf32>
    %59 = vector.shape_cast %58 : vector<1x8x128xf32> to vector<8x128xf32>
    %60 = vector.shape_cast %54 : vector<8x128xf32> to vector<1x8x128xf32>
    tpu.vector_store %arg7[%c28, %c0_32, %c0_33], %60 {strides = array<i32>} : memref<54x8x128xf32, #tpu.memory_space<vmem>>, vector<1x8x128xf32>,
    %c24 = arith.constant 24 : index
    %c0_34 = arith.constant 0 : index
    %c0_35 = arith.constant 0 : index
    %61 = vector.load %arg7[%c24, %c0_34, %c0_35] : memref<54x8x128xf32, #tpu.memory_space<vmem>>, vector<1x8x128xf32>
    %62 = vector.shape_cast %61 : vector<1x8x128xf32> to vector<8x128xf32>
    %63 = vector.shape_cast %57 : vector<8x128xf32> to vector<1x8x128xf32>
    tpu.vector_store %arg7[%c24, %c0_34, %c0_35], %63 {strides = array<i32>} : memref<54x8x128xf32, #tpu.memory_space<vmem>>, vector<1x8x128xf32>,
    %64 = arith.addf %19, %54 : vector<8x128xf32>
    %65 = arith.addf %64, %57 : vector<8x128xf32>
    %66 = arith.subf %29, %10 : vector<8x128xf32>
    %67 = arith.mulf %66, %66 : vector<8x128xf32>
    %68 = vector.broadcast %18 : f32 to vector<8x128xf32>
    %69 = arith.mulf %67, %68 : vector<8x128xf32>
    %70 = math.exp %69 : vector<8x128xf32>
    %71 = vector.broadcast %33 : vector<1x128xf32> to vector<8x128xf32>
    %72 = arith.mulf %70, %71 : vector<8x128xf32>
    %c1_i32_36 = arith.constant 1 : i32
    %73 = tpu.dynamic_rotate %70 by %c1_i32_36 dim 1 : vector<8x128xf32>, i32 -> vector<8x128xf32>
    %74 = vector.broadcast %37 : vector<1x128xf32> to vector<8x128xf32>
    %75 = arith.mulf %73, %74 : vector<8x128xf32>
    %c29 = arith.constant 29 : index
    %c0_37 = arith.constant 0 : index
    %c0_38 = arith.constant 0 : index
    %76 = vector.load %arg7[%c29, %c0_37, %c0_38] : memref<54x8x128xf32, #tpu.memory_space<vmem>>, vector<1x8x128xf32>
    %77 = vector.shape_cast %76 : vector<1x8x128xf32> to vector<8x128xf32>
    %78 = vector.shape_cast %72 : vector<8x128xf32> to vector<1x8x128xf32>
    tpu.vector_store %arg7[%c29, %c0_37, %c0_38], %78 {strides = array<i32>} : memref<54x8x128xf32, #tpu.memory_space<vmem>>, vector<1x8x128xf32>,
    %c25 = arith.constant 25 : index
    %c0_39 = arith.constant 0 : index
    %c0_40 = arith.constant 0 : index
    %79 = vector.load %arg7[%c25, %c0_39, %c0_40] : memref<54x8x128xf32, #tpu.memory_space<vmem>>, vector<1x8x128xf32>
    %80 = vector.shape_cast %79 : vector<1x8x128xf32> to vector<8x128xf32>
    %81 = vector.shape_cast %75 : vector<8x128xf32> to vector<1x8x128xf32>
    tpu.vector_store %arg7[%c25, %c0_39, %c0_40], %81 {strides = array<i32>} : memref<54x8x128xf32, #tpu.memory_space<vmem>>, vector<1x8x128xf32>,
    %82 = arith.addf %19, %72 : vector<8x128xf32>
    %83 = arith.addf %82, %75 : vector<8x128xf32>
    %c113_i32 = arith.constant 113 : i32
    %84 = tpu.dynamic_rotate %4 by %c113_i32 dim 1 : vector<8x128xf32>, i32 -> vector<8x128xf32>
    %c113_i32_41 = arith.constant 113 : i32
    %85 = tpu.dynamic_rotate %6 by %c113_i32_41 dim 1 : vector<8x128xf32>, i32 -> vector<8x128xf32>
    %c113_i32_42 = arith.constant 113 : i32
    %86 = tpu.dynamic_rotate %8 by %c113_i32_42 dim 1 : vector<8x128xf32>, i32 -> vector<8x128xf32>
    %c113_i32_43 = arith.constant 113 : i32
    %87 = tpu.dynamic_rotate %10 by %c113_i32_43 dim 1 : vector<8x128xf32>, i32 -> vector<8x128xf32>
    %c7_i32 = arith.constant 7 : i32
    %88 = vector.broadcast %c7_i32 : i32 to vector<1x128xi32>
    %89 = arith.cmpi slt, %1, %88 : vector<1x128xi32>
    %c1_i32_44 = arith.constant 1 : i32
    %90 = vector.broadcast %c1_i32_44 : i32 to vector<1x128xi32>
    %91 = arith.cmpi sge, %2, %90 : vector<1x128xi32>
    %92 = arith.andi %89, %91 : vector<1x128xi1>
    %93 = arith.extui %92 : vector<1x128xi1> to vector<1x128xi32>
    %94 = arith.sitofp %93 : vector<1x128xi32> to vector<1x128xf32>
    %c1_i32_45 = arith.constant 1 : i32
    %95 = vector.broadcast %c1_i32_45 : i32 to vector<1x128xi32>
    %96 = arith.cmpi sge, %1, %95 : vector<1x128xi32>
    %c15_i32_46 = arith.constant 15 : i32
    %97 = vector.broadcast %c15_i32_46 : i32 to vector<1x128xi32>
    %98 = arith.cmpi slt, %2, %97 : vector<1x128xi32>
    %99 = arith.andi %96, %98 : vector<1x128xi1>
    %100 = arith.extui %99 : vector<1x128xi1> to vector<1x128xi32>
    %101 = arith.sitofp %100 : vector<1x128xi32> to vector<1x128xf32>
    %102 = arith.subf %84, %4 : vector<8x128xf32>
    %103 = arith.mulf %102, %102 : vector<8x128xf32>
    %104 = vector.broadcast %12 : f32 to vector<8x128xf32>
    %105 = arith.mulf %103, %104 : vector<8x128xf32>
    %106 = arith.subf %85, %6 : vector<8x128xf32>
    %107 = arith.mulf %106, %106 : vector<8x128xf32>
    %108 = vector.broadcast %14 : f32 to vector<8x128xf32>
    %109 = arith.mulf %107, %108 : vector<8x128xf32>
    %110 = arith.addf %105, %109 : vector<8x128xf32>
    %111 = arith.subf %86, %8 : vector<8x128xf32>
    %112 = arith.mulf %111, %111 : vector<8x128xf32>
    %113 = vector.broadcast %16 : f32 to vector<8x128xf32>
    %114 = arith.mulf %112, %113 : vector<8x128xf32>
    %115 = arith.addf %110, %114 : vector<8x128xf32>
    %116 = math.exp %115 : vector<8x128xf32>
    %117 = vector.broadcast %94 : vector<1x128xf32> to vector<8x128xf32>
    %118 = arith.mulf %116, %117 : vector<8x128xf32>
    %c15_i32_47 = arith.constant 15 : i32
    %119 = tpu.dynamic_rotate %116 by %c15_i32_47 dim 1 : vector<8x128xf32>, i32 -> vector<8x128xf32>
    %120 = vector.broadcast %101 : vector<1x128xf32> to vector<8x128xf32>
    %121 = arith.mulf %119, %120 : vector<8x128xf32>
    %c30 = arith.constant 30 : index
    %c0_48 = arith.constant 0 : index
    %c0_49 = arith.constant 0 : index
    %122 = vector.load %arg7[%c30, %c0_48, %c0_49] : memref<54x8x128xf32, #tpu.memory_space<vmem>>, vector<1x8x128xf32>
    %123 = vector.shape_cast %122 : vector<1x8x128xf32> to vector<8x128xf32>
    %124 = vector.shape_cast %118 : vector<8x128xf32> to vector<1x8x128xf32>
    tpu.vector_store %arg7[%c30, %c0_48, %c0_49], %124 {strides = array<i32>} : memref<54x8x128xf32, #tpu.memory_space<vmem>>, vector<1x8x128xf32>,
    %c22 = arith.constant 22 : index
    %c0_50 = arith.constant 0 : index
    %c0_51 = arith.constant 0 : index
    %125 = vector.load %arg7[%c22, %c0_50, %c0_51] : memref<54x8x128xf32, #tpu.memory_space<vmem>>, vector<1x8x128xf32>
    %126 = vector.shape_cast %125 : vector<1x8x128xf32> to vector<8x128xf32>
    %127 = vector.shape_cast %121 : vector<8x128xf32> to vector<1x8x128xf32>
    tpu.vector_store %arg7[%c22, %c0_50, %c0_51], %127 {strides = array<i32>} : memref<54x8x128xf32, #tpu.memory_space<vmem>>, vector<1x8x128xf32>,
    %128 = arith.addf %65, %118 : vector<8x128xf32>
    %129 = arith.addf %128, %121 : vector<8x128xf32>
    %130 = arith.subf %87, %10 : vector<8x128xf32>
    %131 = arith.mulf %130, %130 : vector<8x128xf32>
    %132 = vector.broadcast %18 : f32 to vector<8x128xf32>
    %133 = arith.mulf %131, %132 : vector<8x128xf32>
    %134 = math.exp %133 : vector<8x128xf32>
    %135 = vector.broadcast %94 : vector<1x128xf32> to vector<8x128xf32>
    %136 = arith.mulf %134, %135 : vector<8x128xf32>
    %c15_i32_52 = arith.constant 15 : i32
    %137 = tpu.dynamic_rotate %134 by %c15_i32_52 dim 1 : vector<8x128xf32>, i32 -> vector<8x128xf32>
    %138 = vector.broadcast %101 : vector<1x128xf32> to vector<8x128xf32>
    %139 = arith.mulf %137, %138 : vector<8x128xf32>
    %c31 = arith.constant 31 : index
    %c0_53 = arith.constant 0 : index
    %c0_54 = arith.constant 0 : index
    %140 = vector.load %arg7[%c31, %c0_53, %c0_54] : memref<54x8x128xf32, #tpu.memory_space<vmem>>, vector<1x8x128xf32>
    %141 = vector.shape_cast %140 : vector<1x8x128xf32> to vector<8x128xf32>
    %142 = vector.shape_cast %136 : vector<8x128xf32> to vector<1x8x128xf32>
    tpu.vector_store %arg7[%c31, %c0_53, %c0_54], %142 {strides = array<i32>} : memref<54x8x128xf32, #tpu.memory_space<vmem>>, vector<1x8x128xf32>,
    %c23 = arith.constant 23 : index
    %c0_55 = arith.constant 0 : index
    %c0_56 = arith.constant 0 : index
    %143 = vector.load %arg7[%c23, %c0_55, %c0_56] : memref<54x8x128xf32, #tpu.memory_space<vmem>>, vector<1x8x128xf32>
    %144 = vector.shape_cast %143 : vector<1x8x128xf32> to vector<8x128xf32>
    %145 = vector.shape_cast %139 : vector<8x128xf32> to vector<1x8x128xf32>
    tpu.vector_store %arg7[%c23, %c0_55, %c0_56], %145 {strides = array<i32>} : memref<54x8x128xf32, #tpu.memory_space<vmem>>, vector<1x8x128xf32>,
    %146 = arith.addf %83, %136 : vector<8x128xf32>
    %147 = arith.addf %146, %139 : vector<8x128xf32>
    %c112_i32 = arith.constant 112 : i32
    %148 = tpu.dynamic_rotate %4 by %c112_i32 dim 1 : vector<8x128xf32>, i32 -> vector<8x128xf32>
    %c112_i32_57 = arith.constant 112 : i32
    %149 = tpu.dynamic_rotate %6 by %c112_i32_57 dim 1 : vector<8x128xf32>, i32 -> vector<8x128xf32>
    %c112_i32_58 = arith.constant 112 : i32
    %150 = tpu.dynamic_rotate %8 by %c112_i32_58 dim 1 : vector<8x128xf32>, i32 -> vector<8x128xf32>
    %c112_i32_59 = arith.constant 112 : i32
    %151 = tpu.dynamic_rotate %10 by %c112_i32_59 dim 1 : vector<8x128xf32>, i32 -> vector<8x128xf32>
    %c7_i32_60 = arith.constant 7 : i32
    %152 = vector.broadcast %c7_i32_60 : i32 to vector<1x128xi32>
    %153 = arith.cmpi slt, %1, %152 : vector<1x128xi32>
    %154 = arith.extui %153 : vector<1x128xi1> to vector<1x128xi32>
    %155 = arith.sitofp %154 : vector<1x128xi32> to vector<1x128xf32>
    %c1_i32_61 = arith.constant 1 : i32
    %156 = vector.broadcast %c1_i32_61 : i32 to vector<1x128xi32>
    %157 = arith.cmpi sge, %1, %156 : vector<1x128xi32>
    %158 = arith.extui %157 : vector<1x128xi1> to vector<1x128xi32>
    %159 = arith.sitofp %158 : vector<1x128xi32> to vector<1x128xf32>
    %160 = arith.subf %148, %4 : vector<8x128xf32>
    %161 = arith.mulf %160, %160 : vector<8x128xf32>
    %162 = vector.broadcast %12 : f32 to vector<8x128xf32>
    %163 = arith.mulf %161, %162 : vector<8x128xf32>
    %164 = arith.subf %149, %6 : vector<8x128xf32>
    %165 = arith.mulf %164, %164 : vector<8x128xf32>
    %166 = vector.broadcast %14 : f32 to vector<8x128xf32>
    %167 = arith.mulf %165, %166 : vector<8x128xf32>
    %168 = arith.addf %163, %167 : vector<8x128xf32>
    %169 = arith.subf %150, %8 : vector<8x128xf32>
    %170 = arith.mulf %169, %169 : vector<8x128xf32>
    %171 = vector.broadcast %16 : f32 to vector<8x128xf32>
    %172 = arith.mulf %170, %171 : vector<8x128xf32>
    %173 = arith.addf %168, %172 : vector<8x128xf32>
    %174 = math.exp %173 : vector<8x128xf32>
    %175 = vector.broadcast %155 : vector<1x128xf32> to vector<8x128xf32>
    %176 = arith.mulf %174, %175 : vector<8x128xf32>
    %c16_i32 = arith.constant 16 : i32
    %177 = tpu.dynamic_rotate %174 by %c16_i32 dim 1 : vector<8x128xf32>, i32 -> vector<8x128xf32>
    %178 = vector.broadcast %159 : vector<1x128xf32> to vector<8x128xf32>
    %179 = arith.mulf %177, %178 : vector<8x128xf32>
    %c32 = arith.constant 32 : index
    %c0_62 = arith.constant 0 : index
    %c0_63 = arith.constant 0 : index
    %180 = vector.load %arg7[%c32, %c0_62, %c0_63] : memref<54x8x128xf32, #tpu.memory_space<vmem>>, vector<1x8x128xf32>
    %181 = vector.shape_cast %180 : vector<1x8x128xf32> to vector<8x128xf32>
    %182 = vector.shape_cast %176 : vector<8x128xf32> to vector<1x8x128xf32>
    tpu.vector_store %arg7[%c32, %c0_62, %c0_63], %182 {strides = array<i32>} : memref<54x8x128xf32, #tpu.memory_space<vmem>>, vector<1x8x128xf32>,
    %c20 = arith.constant 20 : index
    %c0_64 = arith.constant 0 : index
    %c0_65 = arith.constant 0 : index
    %183 = vector.load %arg7[%c20, %c0_64, %c0_65] : memref<54x8x128xf32, #tpu.memory_space<vmem>>, vector<1x8x128xf32>
    %184 = vector.shape_cast %183 : vector<1x8x128xf32> to vector<8x128xf32>
    %185 = vector.shape_cast %179 : vector<8x128xf32> to vector<1x8x128xf32>
    tpu.vector_store %arg7[%c20, %c0_64, %c0_65], %185 {strides = array<i32>} : memref<54x8x128xf32, #tpu.memory_space<vmem>>, vector<1x8x128xf32>,
    %186 = arith.addf %129, %176 : vector<8x128xf32>
    %187 = arith.addf %186, %179 : vector<8x128xf32>
    %188 = arith.subf %151, %10 : vector<8x128xf32>
    %189 = arith.mulf %188, %188 : vector<8x128xf32>
    %190 = vector.broadcast %18 : f32 to vector<8x128xf32>
    %191 = arith.mulf %189, %190 : vector<8x128xf32>
    %192 = math.exp %191 : vector<8x128xf32>
    %193 = vector.broadcast %155 : vector<1x128xf32> to vector<8x128xf32>
    %194 = arith.mulf %192, %193 : vector<8x128xf32>
    %c16_i32_66 = arith.constant 16 : i32
    %195 = tpu.dynamic_rotate %192 by %c16_i32_66 dim 1 : vector<8x128xf32>, i32 -> vector<8x128xf32>
    %196 = vector.broadcast %159 : vector<1x128xf32> to vector<8x128xf32>
    %197 = arith.mulf %195, %196 : vector<8x128xf32>
    %c33 = arith.constant 33 : index
    %c0_67 = arith.constant 0 : index
    %c0_68 = arith.constant 0 : index
    %198 = vector.load %arg7[%c33, %c0_67, %c0_68] : memref<54x8x128xf32, #tpu.memory_space<vmem>>, vector<1x8x128xf32>
    %199 = vector.shape_cast %198 : vector<1x8x128xf32> to vector<8x128xf32>
    %200 = vector.shape_cast %194 : vector<8x128xf32> to vector<1x8x128xf32>
    tpu.vector_store %arg7[%c33, %c0_67, %c0_68], %200 {strides = array<i32>} : memref<54x8x128xf32, #tpu.memory_space<vmem>>, vector<1x8x128xf32>,
    %c21 = arith.constant 21 : index
    %c0_69 = arith.constant 0 : index
    %c0_70 = arith.constant 0 : index
    %201 = vector.load %arg7[%c21, %c0_69, %c0_70] : memref<54x8x128xf32, #tpu.memory_space<vmem>>, vector<1x8x128xf32>
    %202 = vector.shape_cast %201 : vector<1x8x128xf32> to vector<8x128xf32>
    %203 = vector.shape_cast %197 : vector<8x128xf32> to vector<1x8x128xf32>
    tpu.vector_store %arg7[%c21, %c0_69, %c0_70], %203 {strides = array<i32>} : memref<54x8x128xf32, #tpu.memory_space<vmem>>, vector<1x8x128xf32>,
    %204 = arith.addf %147, %194 : vector<8x128xf32>
    %205 = arith.addf %204, %197 : vector<8x128xf32>
    %c111_i32 = arith.constant 111 : i32
    %206 = tpu.dynamic_rotate %4 by %c111_i32 dim 1 : vector<8x128xf32>, i32 -> vector<8x128xf32>
    %c111_i32_71 = arith.constant 111 : i32
    %207 = tpu.dynamic_rotate %6 by %c111_i32_71 dim 1 : vector<8x128xf32>, i32 -> vector<8x128xf32>
    %c111_i32_72 = arith.constant 111 : i32
    %208 = tpu.dynamic_rotate %8 by %c111_i32_72 dim 1 : vector<8x128xf32>, i32 -> vector<8x128xf32>
    %c111_i32_73 = arith.constant 111 : i32
    %209 = tpu.dynamic_rotate %10 by %c111_i32_73 dim 1 : vector<8x128xf32>, i32 -> vector<8x128xf32>
    %c7_i32_74 = arith.constant 7 : i32
    %210 = vector.broadcast %c7_i32_74 : i32 to vector<1x128xi32>
    %211 = arith.cmpi slt, %1, %210 : vector<1x128xi32>
    %c15_i32_75 = arith.constant 15 : i32
    %212 = vector.broadcast %c15_i32_75 : i32 to vector<1x128xi32>
    %213 = arith.cmpi slt, %2, %212 : vector<1x128xi32>
    %214 = arith.andi %211, %213 : vector<1x128xi1>
    %215 = arith.extui %214 : vector<1x128xi1> to vector<1x128xi32>
    %216 = arith.sitofp %215 : vector<1x128xi32> to vector<1x128xf32>
    %c1_i32_76 = arith.constant 1 : i32
    %217 = vector.broadcast %c1_i32_76 : i32 to vector<1x128xi32>
    %218 = arith.cmpi sge, %1, %217 : vector<1x128xi32>
    %c1_i32_77 = arith.constant 1 : i32
    %219 = vector.broadcast %c1_i32_77 : i32 to vector<1x128xi32>
    %220 = arith.cmpi sge, %2, %219 : vector<1x128xi32>
    %221 = arith.andi %218, %220 : vector<1x128xi1>
    %222 = arith.extui %221 : vector<1x128xi1> to vector<1x128xi32>
    %223 = arith.sitofp %222 : vector<1x128xi32> to vector<1x128xf32>
    %224 = arith.subf %206, %4 : vector<8x128xf32>
    %225 = arith.mulf %224, %224 : vector<8x128xf32>
    %226 = vector.broadcast %12 : f32 to vector<8x128xf32>
    %227 = arith.mulf %225, %226 : vector<8x128xf32>
    %228 = arith.subf %207, %6 : vector<8x128xf32>
    %229 = arith.mulf %228, %228 : vector<8x128xf32>
    %230 = vector.broadcast %14 : f32 to vector<8x128xf32>
    %231 = arith.mulf %229, %230 : vector<8x128xf32>
    %232 = arith.addf %227, %231 : vector<8x128xf32>
    %233 = arith.subf %208, %8 : vector<8x128xf32>
    %234 = arith.mulf %233, %233 : vector<8x128xf32>
    %235 = vector.broadcast %16 : f32 to vector<8x128xf32>
    %236 = arith.mulf %234, %235 : vector<8x128xf32>
    %237 = arith.addf %232, %236 : vector<8x128xf32>
    %238 = math.exp %237 : vector<8x128xf32>
    %239 = vector.broadcast %216 : vector<1x128xf32> to vector<8x128xf32>
    %240 = arith.mulf %238, %239 : vector<8x128xf32>
    %c17_i32 = arith.constant 17 : i32
    %241 = tpu.dynamic_rotate %238 by %c17_i32 dim 1 : vector<8x128xf32>, i32 -> vector<8x128xf32>
    %242 = vector.broadcast %223 : vector<1x128xf32> to vector<8x128xf32>
    %243 = arith.mulf %241, %242 : vector<8x128xf32>
    %c34 = arith.constant 34 : index
    %c0_78 = arith.constant 0 : index
    %c0_79 = arith.constant 0 : index
    %244 = vector.load %arg7[%c34, %c0_78, %c0_79] : memref<54x8x128xf32, #tpu.memory_space<vmem>>, vector<1x8x128xf32>
    %245 = vector.shape_cast %244 : vector<1x8x128xf32> to vector<8x128xf32>
    %246 = vector.shape_cast %240 : vector<8x128xf32> to vector<1x8x128xf32>
    tpu.vector_store %arg7[%c34, %c0_78, %c0_79], %246 {strides = array<i32>} : memref<54x8x128xf32, #tpu.memory_space<vmem>>, vector<1x8x128xf32>,
    %c18 = arith.constant 18 : index
    %c0_80 = arith.constant 0 : index
    %c0_81 = arith.constant 0 : index
    %247 = vector.load %arg7[%c18, %c0_80, %c0_81] : memref<54x8x128xf32, #tpu.memory_space<vmem>>, vector<1x8x128xf32>
    %248 = vector.shape_cast %247 : vector<1x8x128xf32> to vector<8x128xf32>
    %249 = vector.shape_cast %243 : vector<8x128xf32> to vector<1x8x128xf32>
    tpu.vector_store %arg7[%c18, %c0_80, %c0_81], %249 {strides = array<i32>} : memref<54x8x128xf32, #tpu.memory_space<vmem>>, vector<1x8x128xf32>,
    %250 = arith.addf %187, %240 : vector<8x128xf32>
    %251 = arith.addf %250, %243 : vector<8x128xf32>
    %252 = arith.subf %209, %10 : vector<8x128xf32>
    %253 = arith.mulf %252, %252 : vector<8x128xf32>
    %254 = vector.broadcast %18 : f32 to vector<8x128xf32>
    %255 = arith.mulf %253, %254 : vector<8x128xf32>
    %256 = math.exp %255 : vector<8x128xf32>
    %257 = vector.broadcast %216 : vector<1x128xf32> to vector<8x128xf32>
    %258 = arith.mulf %256, %257 : vector<8x128xf32>
    %c17_i32_82 = arith.constant 17 : i32
    %259 = tpu.dynamic_rotate %256 by %c17_i32_82 dim 1 : vector<8x128xf32>, i32 -> vector<8x128xf32>
    %260 = vector.broadcast %223 : vector<1x128xf32> to vector<8x128xf32>
    %261 = arith.mulf %259, %260 : vector<8x128xf32>
    %c35 = arith.constant 35 : index
    %c0_83 = arith.constant 0 : index
    %c0_84 = arith.constant 0 : index
    %262 = vector.load %arg7[%c35, %c0_83, %c0_84] : memref<54x8x128xf32, #tpu.memory_space<vmem>>, vector<1x8x128xf32>
    %263 = vector.shape_cast %262 : vector<1x8x128xf32> to vector<8x128xf32>
    %264 = vector.shape_cast %258 : vector<8x128xf32> to vector<1x8x128xf32>
    tpu.vector_store %arg7[%c35, %c0_83, %c0_84], %264 {strides = array<i32>} : memref<54x8x128xf32, #tpu.memory_space<vmem>>, vector<1x8x128xf32>,
    %c19 = arith.constant 19 : index
    %c0_85 = arith.constant 0 : index
    %c0_86 = arith.constant 0 : index
    %265 = vector.load %arg7[%c19, %c0_85, %c0_86] : memref<54x8x128xf32, #tpu.memory_space<vmem>>, vector<1x8x128xf32>
    %266 = vector.shape_cast %265 : vector<1x8x128xf32> to vector<8x128xf32>
    %267 = vector.shape_cast %261 : vector<8x128xf32> to vector<1x8x128xf32>
    tpu.vector_store %arg7[%c19, %c0_85, %c0_86], %267 {strides = array<i32>} : memref<54x8x128xf32, #tpu.memory_space<vmem>>, vector<1x8x128xf32>,
    %268 = arith.addf %205, %258 : vector<8x128xf32>
    %269 = arith.addf %268, %261 : vector<8x128xf32>
    %c7_i32_87 = arith.constant 7 : i32
    %270 = tpu.dynamic_rotate %4 by %c7_i32_87 dim 0 : vector<8x128xf32>, i32 -> vector<8x128xf32>
    %c7_i32_88 = arith.constant 7 : i32
    %271 = tpu.dynamic_rotate %6 by %c7_i32_88 dim 0 : vector<8x128xf32>, i32 -> vector<8x128xf32>
    %c7_i32_89 = arith.constant 7 : i32
    %272 = tpu.dynamic_rotate %8 by %c7_i32_89 dim 0 : vector<8x128xf32>, i32 -> vector<8x128xf32>
    %c7_i32_90 = arith.constant 7 : i32
    %273 = tpu.dynamic_rotate %10 by %c7_i32_90 dim 0 : vector<8x128xf32>, i32 -> vector<8x128xf32>
    %c17_i32_91 = arith.constant 17 : i32
    %274 = tpu.dynamic_rotate %270 by %c17_i32_91 dim 1 : vector<8x128xf32>, i32 -> vector<8x128xf32>
    %c17_i32_92 = arith.constant 17 : i32
    %275 = tpu.dynamic_rotate %271 by %c17_i32_92 dim 1 : vector<8x128xf32>, i32 -> vector<8x128xf32>
    %c17_i32_93 = arith.constant 17 : i32
    %276 = tpu.dynamic_rotate %272 by %c17_i32_93 dim 1 : vector<8x128xf32>, i32 -> vector<8x128xf32>
    %c17_i32_94 = arith.constant 17 : i32
    %277 = tpu.dynamic_rotate %273 by %c17_i32_94 dim 1 : vector<8x128xf32>, i32 -> vector<8x128xf32>
    %c7_i32_95 = arith.constant 7 : i32
    %278 = vector.broadcast %c7_i32_95 : i32 to vector<8x1xi32>
    %279 = arith.cmpi slt, %0, %278 : vector<8x1xi32>
    %c1_i32_96 = arith.constant 1 : i32
    %280 = vector.broadcast %c1_i32_96 : i32 to vector<1x128xi32>
    %281 = arith.cmpi sge, %1, %280 : vector<1x128xi32>
    %c1_i32_97 = arith.constant 1 : i32
    %282 = vector.broadcast %c1_i32_97 : i32 to vector<1x128xi32>
    %283 = arith.cmpi sge, %2, %282 : vector<1x128xi32>
    %284 = arith.andi %281, %283 : vector<1x128xi1>
    %285 = arith.extui %279 : vector<8x1xi1> to vector<8x1xi32>
    %286 = arith.sitofp %285 : vector<8x1xi32> to vector<8x1xf32>
    %287 = arith.extui %284 : vector<1x128xi1> to vector<1x128xi32>
    %288 = arith.sitofp %287 : vector<1x128xi32> to vector<1x128xf32>
    %289 = vector.broadcast %286 : vector<8x1xf32> to vector<8x128xf32>
    %290 = vector.broadcast %288 : vector<1x128xf32> to vector<8x128xf32>
    %291 = arith.mulf %289, %290 : vector<8x128xf32>
    %c1_i32_98 = arith.constant 1 : i32
    %292 = vector.broadcast %c1_i32_98 : i32 to vector<8x1xi32>
    %293 = arith.cmpi sge, %0, %292 : vector<8x1xi32>
    %c7_i32_99 = arith.constant 7 : i32
    %294 = vector.broadcast %c7_i32_99 : i32 to vector<1x128xi32>
    %295 = arith.cmpi slt, %1, %294 : vector<1x128xi32>
    %c15_i32_100 = arith.constant 15 : i32
    %296 = vector.broadcast %c15_i32_100 : i32 to vector<1x128xi32>
    %297 = arith.cmpi slt, %2, %296 : vector<1x128xi32>
    %298 = arith.andi %295, %297 : vector<1x128xi1>
    %299 = arith.extui %293 : vector<8x1xi1> to vector<8x1xi32>
    %300 = arith.sitofp %299 : vector<8x1xi32> to vector<8x1xf32>
    %301 = arith.extui %298 : vector<1x128xi1> to vector<1x128xi32>
    %302 = arith.sitofp %301 : vector<1x128xi32> to vector<1x128xf32>
    %303 = vector.broadcast %300 : vector<8x1xf32> to vector<8x128xf32>
    %304 = vector.broadcast %302 : vector<1x128xf32> to vector<8x128xf32>
    %305 = arith.mulf %303, %304 : vector<8x128xf32>
    %306 = arith.subf %274, %4 : vector<8x128xf32>
    %307 = arith.mulf %306, %306 : vector<8x128xf32>
    %308 = vector.broadcast %12 : f32 to vector<8x128xf32>
    %309 = arith.mulf %307, %308 : vector<8x128xf32>
    %310 = arith.subf %275, %6 : vector<8x128xf32>
    %311 = arith.mulf %310, %310 : vector<8x128xf32>
    %312 = vector.broadcast %14 : f32 to vector<8x128xf32>
    %313 = arith.mulf %311, %312 : vector<8x128xf32>
    %314 = arith.addf %309, %313 : vector<8x128xf32>
    %315 = arith.subf %276, %8 : vector<8x128xf32>
    %316 = arith.mulf %315, %315 : vector<8x128xf32>
    %317 = vector.broadcast %16 : f32 to vector<8x128xf32>
    %318 = arith.mulf %316, %317 : vector<8x128xf32>
    %319 = arith.addf %314, %318 : vector<8x128xf32>
    %320 = math.exp %319 : vector<8x128xf32>
    %321 = arith.mulf %320, %291 : vector<8x128xf32>
    %c1_i32_101 = arith.constant 1 : i32
    %322 = tpu.dynamic_rotate %320 by %c1_i32_101 dim 0 : vector<8x128xf32>, i32 -> vector<8x128xf32>
    %c111_i32_102 = arith.constant 111 : i32
    %323 = tpu.dynamic_rotate %322 by %c111_i32_102 dim 1 : vector<8x128xf32>, i32 -> vector<8x128xf32>
    %324 = arith.mulf %323, %305 : vector<8x128xf32>
    %c36 = arith.constant 36 : index
    %c0_103 = arith.constant 0 : index
    %c0_104 = arith.constant 0 : index
    %325 = vector.load %arg7[%c36, %c0_103, %c0_104] : memref<54x8x128xf32, #tpu.memory_space<vmem>>, vector<1x8x128xf32>
    %326 = vector.shape_cast %325 : vector<1x8x128xf32> to vector<8x128xf32>
    %327 = vector.shape_cast %321 : vector<8x128xf32> to vector<1x8x128xf32>
    tpu.vector_store %arg7[%c36, %c0_103, %c0_104], %327 {strides = array<i32>} : memref<54x8x128xf32, #tpu.memory_space<vmem>>, vector<1x8x128xf32>,
    %c16 = arith.constant 16 : index
    %c0_105 = arith.constant 0 : index
    %c0_106 = arith.constant 0 : index
    %328 = vector.load %arg7[%c16, %c0_105, %c0_106] : memref<54x8x128xf32, #tpu.memory_space<vmem>>, vector<1x8x128xf32>
    %329 = vector.shape_cast %328 : vector<1x8x128xf32> to vector<8x128xf32>
    %330 = vector.shape_cast %324 : vector<8x128xf32> to vector<1x8x128xf32>
    tpu.vector_store %arg7[%c16, %c0_105, %c0_106], %330 {strides = array<i32>} : memref<54x8x128xf32, #tpu.memory_space<vmem>>, vector<1x8x128xf32>,
    %331 = arith.addf %251, %321 : vector<8x128xf32>
    %332 = arith.addf %331, %324 : vector<8x128xf32>
    %333 = arith.subf %277, %10 : vector<8x128xf32>
    %334 = arith.mulf %333, %333 : vector<8x128xf32>
    %335 = vector.broadcast %18 : f32 to vector<8x128xf32>
    %336 = arith.mulf %334, %335 : vector<8x128xf32>
    %337 = math.exp %336 : vector<8x128xf32>
    %338 = arith.mulf %337, %291 : vector<8x128xf32>
    %c1_i32_107 = arith.constant 1 : i32
    %339 = tpu.dynamic_rotate %337 by %c1_i32_107 dim 0 : vector<8x128xf32>, i32 -> vector<8x128xf32>
    %c111_i32_108 = arith.constant 111 : i32
    %340 = tpu.dynamic_rotate %339 by %c111_i32_108 dim 1 : vector<8x128xf32>, i32 -> vector<8x128xf32>
    %341 = arith.mulf %340, %305 : vector<8x128xf32>
    %c37 = arith.constant 37 : index
    %c0_109 = arith.constant 0 : index
    %c0_110 = arith.constant 0 : index
    %342 = vector.load %arg7[%c37, %c0_109, %c0_110] : memref<54x8x128xf32, #tpu.memory_space<vmem>>, vector<1x8x128xf32>
    %343 = vector.shape_cast %342 : vector<1x8x128xf32> to vector<8x128xf32>
    %344 = vector.shape_cast %338 : vector<8x128xf32> to vector<1x8x128xf32>
    tpu.vector_store %arg7[%c37, %c0_109, %c0_110], %344 {strides = array<i32>} : memref<54x8x128xf32, #tpu.memory_space<vmem>>, vector<1x8x128xf32>,
    %c17 = arith.constant 17 : index
    %c0_111 = arith.constant 0 : index
    %c0_112 = arith.constant 0 : index
    %345 = vector.load %arg7[%c17, %c0_111, %c0_112] : memref<54x8x128xf32, #tpu.memory_space<vmem>>, vector<1x8x128xf32>
    %346 = vector.shape_cast %345 : vector<1x8x128xf32> to vector<8x128xf32>
    %347 = vector.shape_cast %341 : vector<8x128xf32> to vector<1x8x128xf32>
    tpu.vector_store %arg7[%c17, %c0_111, %c0_112], %347 {strides = array<i32>} : memref<54x8x128xf32, #tpu.memory_space<vmem>>, vector<1x8x128xf32>,
    %348 = arith.addf %269, %338 : vector<8x128xf32>
    %349 = arith.addf %348, %341 : vector<8x128xf32>
    %c16_i32_113 = arith.constant 16 : i32
    %350 = tpu.dynamic_rotate %270 by %c16_i32_113 dim 1 : vector<8x128xf32>, i32 -> vector<8x128xf32>
    %c16_i32_114 = arith.constant 16 : i32
    %351 = tpu.dynamic_rotate %271 by %c16_i32_114 dim 1 : vector<8x128xf32>, i32 -> vector<8x128xf32>
    %c16_i32_115 = arith.constant 16 : i32
    %352 = tpu.dynamic_rotate %272 by %c16_i32_115 dim 1 : vector<8x128xf32>, i32 -> vector<8x128xf32>
    %c16_i32_116 = arith.constant 16 : i32
    %353 = tpu.dynamic_rotate %273 by %c16_i32_116 dim 1 : vector<8x128xf32>, i32 -> vector<8x128xf32>
    %c7_i32_117 = arith.constant 7 : i32
    %354 = vector.broadcast %c7_i32_117 : i32 to vector<8x1xi32>
    %355 = arith.cmpi slt, %0, %354 : vector<8x1xi32>
    %c1_i32_118 = arith.constant 1 : i32
    %356 = vector.broadcast %c1_i32_118 : i32 to vector<1x128xi32>
    %357 = arith.cmpi sge, %1, %356 : vector<1x128xi32>
    %358 = arith.extui %355 : vector<8x1xi1> to vector<8x1xi32>
    %359 = arith.sitofp %358 : vector<8x1xi32> to vector<8x1xf32>
    %360 = arith.extui %357 : vector<1x128xi1> to vector<1x128xi32>
    %361 = arith.sitofp %360 : vector<1x128xi32> to vector<1x128xf32>
    %362 = vector.broadcast %359 : vector<8x1xf32> to vector<8x128xf32>
    %363 = vector.broadcast %361 : vector<1x128xf32> to vector<8x128xf32>
    %364 = arith.mulf %362, %363 : vector<8x128xf32>
    %c1_i32_119 = arith.constant 1 : i32
    %365 = vector.broadcast %c1_i32_119 : i32 to vector<8x1xi32>
    %366 = arith.cmpi sge, %0, %365 : vector<8x1xi32>
    %c7_i32_120 = arith.constant 7 : i32
    %367 = vector.broadcast %c7_i32_120 : i32 to vector<1x128xi32>
    %368 = arith.cmpi slt, %1, %367 : vector<1x128xi32>
    %369 = arith.extui %366 : vector<8x1xi1> to vector<8x1xi32>
    %370 = arith.sitofp %369 : vector<8x1xi32> to vector<8x1xf32>
    %371 = arith.extui %368 : vector<1x128xi1> to vector<1x128xi32>
    %372 = arith.sitofp %371 : vector<1x128xi32> to vector<1x128xf32>
    %373 = vector.broadcast %370 : vector<8x1xf32> to vector<8x128xf32>
    %374 = vector.broadcast %372 : vector<1x128xf32> to vector<8x128xf32>
    %375 = arith.mulf %373, %374 : vector<8x128xf32>
    %376 = arith.subf %350, %4 : vector<8x128xf32>
    %377 = arith.mulf %376, %376 : vector<8x128xf32>
    %378 = vector.broadcast %12 : f32 to vector<8x128xf32>
    %379 = arith.mulf %377, %378 : vector<8x128xf32>
    %380 = arith.subf %351, %6 : vector<8x128xf32>
    %381 = arith.mulf %380, %380 : vector<8x128xf32>
    %382 = vector.broadcast %14 : f32 to vector<8x128xf32>
    %383 = arith.mulf %381, %382 : vector<8x128xf32>
    %384 = arith.addf %379, %383 : vector<8x128xf32>
    %385 = arith.subf %352, %8 : vector<8x128xf32>
    %386 = arith.mulf %385, %385 : vector<8x128xf32>
    %387 = vector.broadcast %16 : f32 to vector<8x128xf32>
    %388 = arith.mulf %386, %387 : vector<8x128xf32>
    %389 = arith.addf %384, %388 : vector<8x128xf32>
    %390 = math.exp %389 : vector<8x128xf32>
    %391 = arith.mulf %390, %364 : vector<8x128xf32>
    %c1_i32_121 = arith.constant 1 : i32
    %392 = tpu.dynamic_rotate %390 by %c1_i32_121 dim 0 : vector<8x128xf32>, i32 -> vector<8x128xf32>
    %c112_i32_122 = arith.constant 112 : i32
    %393 = tpu.dynamic_rotate %392 by %c112_i32_122 dim 1 : vector<8x128xf32>, i32 -> vector<8x128xf32>
    %394 = arith.mulf %393, %375 : vector<8x128xf32>
    %c38 = arith.constant 38 : index
    %c0_123 = arith.constant 0 : index
    %c0_124 = arith.constant 0 : index
    %395 = vector.load %arg7[%c38, %c0_123, %c0_124] : memref<54x8x128xf32, #tpu.memory_space<vmem>>, vector<1x8x128xf32>
    %396 = vector.shape_cast %395 : vector<1x8x128xf32> to vector<8x128xf32>
    %397 = vector.shape_cast %391 : vector<8x128xf32> to vector<1x8x128xf32>
    tpu.vector_store %arg7[%c38, %c0_123, %c0_124], %397 {strides = array<i32>} : memref<54x8x128xf32, #tpu.memory_space<vmem>>, vector<1x8x128xf32>,
    %c14 = arith.constant 14 : index
    %c0_125 = arith.constant 0 : index
    %c0_126 = arith.constant 0 : index
    %398 = vector.load %arg7[%c14, %c0_125, %c0_126] : memref<54x8x128xf32, #tpu.memory_space<vmem>>, vector<1x8x128xf32>
    %399 = vector.shape_cast %398 : vector<1x8x128xf32> to vector<8x128xf32>
    %400 = vector.shape_cast %394 : vector<8x128xf32> to vector<1x8x128xf32>
    tpu.vector_store %arg7[%c14, %c0_125, %c0_126], %400 {strides = array<i32>} : memref<54x8x128xf32, #tpu.memory_space<vmem>>, vector<1x8x128xf32>,
    %401 = arith.addf %332, %391 : vector<8x128xf32>
    %402 = arith.addf %401, %394 : vector<8x128xf32>
    %403 = arith.subf %353, %10 : vector<8x128xf32>
    %404 = arith.mulf %403, %403 : vector<8x128xf32>
    %405 = vector.broadcast %18 : f32 to vector<8x128xf32>
    %406 = arith.mulf %404, %405 : vector<8x128xf32>
    %407 = math.exp %406 : vector<8x128xf32>
    %408 = arith.mulf %407, %364 : vector<8x128xf32>
    %c1_i32_127 = arith.constant 1 : i32
    %409 = tpu.dynamic_rotate %407 by %c1_i32_127 dim 0 : vector<8x128xf32>, i32 -> vector<8x128xf32>
    %c112_i32_128 = arith.constant 112 : i32
    %410 = tpu.dynamic_rotate %409 by %c112_i32_128 dim 1 : vector<8x128xf32>, i32 -> vector<8x128xf32>
    %411 = arith.mulf %410, %375 : vector<8x128xf32>
    %c39 = arith.constant 39 : index
    %c0_129 = arith.constant 0 : index
    %c0_130 = arith.constant 0 : index
    %412 = vector.load %arg7[%c39, %c0_129, %c0_130] : memref<54x8x128xf32, #tpu.memory_space<vmem>>, vector<1x8x128xf32>
    %413 = vector.shape_cast %412 : vector<1x8x128xf32> to vector<8x128xf32>
    %414 = vector.shape_cast %408 : vector<8x128xf32> to vector<1x8x128xf32>
    tpu.vector_store %arg7[%c39, %c0_129, %c0_130], %414 {strides = array<i32>} : memref<54x8x128xf32, #tpu.memory_space<vmem>>, vector<1x8x128xf32>,
    %c15 = arith.constant 15 : index
    %c0_131 = arith.constant 0 : index
    %c0_132 = arith.constant 0 : index
    %415 = vector.load %arg7[%c15, %c0_131, %c0_132] : memref<54x8x128xf32, #tpu.memory_space<vmem>>, vector<1x8x128xf32>
    %416 = vector.shape_cast %415 : vector<1x8x128xf32> to vector<8x128xf32>
    %417 = vector.shape_cast %411 : vector<8x128xf32> to vector<1x8x128xf32>
    tpu.vector_store %arg7[%c15, %c0_131, %c0_132], %417 {strides = array<i32>} : memref<54x8x128xf32, #tpu.memory_space<vmem>>, vector<1x8x128xf32>,
    %418 = arith.addf %349, %408 : vector<8x128xf32>
    %419 = arith.addf %418, %411 : vector<8x128xf32>
    %c15_i32_133 = arith.constant 15 : i32
    %420 = tpu.dynamic_rotate %270 by %c15_i32_133 dim 1 : vector<8x128xf32>, i32 -> vector<8x128xf32>
    %c15_i32_134 = arith.constant 15 : i32
    %421 = tpu.dynamic_rotate %271 by %c15_i32_134 dim 1 : vector<8x128xf32>, i32 -> vector<8x128xf32>
    %c15_i32_135 = arith.constant 15 : i32
    %422 = tpu.dynamic_rotate %272 by %c15_i32_135 dim 1 : vector<8x128xf32>, i32 -> vector<8x128xf32>
    %c15_i32_136 = arith.constant 15 : i32
    %423 = tpu.dynamic_rotate %273 by %c15_i32_136 dim 1 : vector<8x128xf32>, i32 -> vector<8x128xf32>
    %c7_i32_137 = arith.constant 7 : i32
    %424 = vector.broadcast %c7_i32_137 : i32 to vector<8x1xi32>
    %425 = arith.cmpi slt, %0, %424 : vector<8x1xi32>
    %c1_i32_138 = arith.constant 1 : i32
    %426 = vector.broadcast %c1_i32_138 : i32 to vector<1x128xi32>
    %427 = arith.cmpi sge, %1, %426 : vector<1x128xi32>
    %c15_i32_139 = arith.constant 15 : i32
    %428 = vector.broadcast %c15_i32_139 : i32 to vector<1x128xi32>
    %429 = arith.cmpi slt, %2, %428 : vector<1x128xi32>
    %430 = arith.andi %427, %429 : vector<1x128xi1>
    %431 = arith.extui %425 : vector<8x1xi1> to vector<8x1xi32>
    %432 = arith.sitofp %431 : vector<8x1xi32> to vector<8x1xf32>
    %433 = arith.extui %430 : vector<1x128xi1> to vector<1x128xi32>
    %434 = arith.sitofp %433 : vector<1x128xi32> to vector<1x128xf32>
    %435 = vector.broadcast %432 : vector<8x1xf32> to vector<8x128xf32>
    %436 = vector.broadcast %434 : vector<1x128xf32> to vector<8x128xf32>
    %437 = arith.mulf %435, %436 : vector<8x128xf32>
    %c1_i32_140 = arith.constant 1 : i32
    %438 = vector.broadcast %c1_i32_140 : i32 to vector<8x1xi32>
    %439 = arith.cmpi sge, %0, %438 : vector<8x1xi32>
    %c7_i32_141 = arith.constant 7 : i32
    %440 = vector.broadcast %c7_i32_141 : i32 to vector<1x128xi32>
    %441 = arith.cmpi slt, %1, %440 : vector<1x128xi32>
    %c1_i32_142 = arith.constant 1 : i32
    %442 = vector.broadcast %c1_i32_142 : i32 to vector<1x128xi32>
    %443 = arith.cmpi sge, %2, %442 : vector<1x128xi32>
    %444 = arith.andi %441, %443 : vector<1x128xi1>
    %445 = arith.extui %439 : vector<8x1xi1> to vector<8x1xi32>
    %446 = arith.sitofp %445 : vector<8x1xi32> to vector<8x1xf32>
    %447 = arith.extui %444 : vector<1x128xi1> to vector<1x128xi32>
    %448 = arith.sitofp %447 : vector<1x128xi32> to vector<1x128xf32>
    %449 = vector.broadcast %446 : vector<8x1xf32> to vector<8x128xf32>
    %450 = vector.broadcast %448 : vector<1x128xf32> to vector<8x128xf32>
    %451 = arith.mulf %449, %450 : vector<8x128xf32>
    %452 = arith.subf %420, %4 : vector<8x128xf32>
    %453 = arith.mulf %452, %452 : vector<8x128xf32>
    %454 = vector.broadcast %12 : f32 to vector<8x128xf32>
    %455 = arith.mulf %453, %454 : vector<8x128xf32>
    %456 = arith.subf %421, %6 : vector<8x128xf32>
    %457 = arith.mulf %456, %456 : vector<8x128xf32>
    %458 = vector.broadcast %14 : f32 to vector<8x128xf32>
    %459 = arith.mulf %457, %458 : vector<8x128xf32>
    %460 = arith.addf %455, %459 : vector<8x128xf32>
    %461 = arith.subf %422, %8 : vector<8x128xf32>
    %462 = arith.mulf %461, %461 : vector<8x128xf32>
    %463 = vector.broadcast %16 : f32 to vector<8x128xf32>
    %464 = arith.mulf %462, %463 : vector<8x128xf32>
    %465 = arith.addf %460, %464 : vector<8x128xf32>
    %466 = math.exp %465 : vector<8x128xf32>
    %467 = arith.mulf %466, %437 : vector<8x128xf32>
    %c1_i32_143 = arith.constant 1 : i32
    %468 = tpu.dynamic_rotate %466 by %c1_i32_143 dim 0 : vector<8x128xf32>, i32 -> vector<8x128xf32>
    %c113_i32_144 = arith.constant 113 : i32
    %469 = tpu.dynamic_rotate %468 by %c113_i32_144 dim 1 : vector<8x128xf32>, i32 -> vector<8x128xf32>
    %470 = arith.mulf %469, %451 : vector<8x128xf32>
    %c40 = arith.constant 40 : index
    %c0_145 = arith.constant 0 : index
    %c0_146 = arith.constant 0 : index
    %471 = vector.load %arg7[%c40, %c0_145, %c0_146] : memref<54x8x128xf32, #tpu.memory_space<vmem>>, vector<1x8x128xf32>
    %472 = vector.shape_cast %471 : vector<1x8x128xf32> to vector<8x128xf32>
    %473 = vector.shape_cast %467 : vector<8x128xf32> to vector<1x8x128xf32>
    tpu.vector_store %arg7[%c40, %c0_145, %c0_146], %473 {strides = array<i32>} : memref<54x8x128xf32, #tpu.memory_space<vmem>>, vector<1x8x128xf32>,
    %c12 = arith.constant 12 : index
    %c0_147 = arith.constant 0 : index
    %c0_148 = arith.constant 0 : index
    %474 = vector.load %arg7[%c12, %c0_147, %c0_148] : memref<54x8x128xf32, #tpu.memory_space<vmem>>, vector<1x8x128xf32>
    %475 = vector.shape_cast %474 : vector<1x8x128xf32> to vector<8x128xf32>
    %476 = vector.shape_cast %470 : vector<8x128xf32> to vector<1x8x128xf32>
    tpu.vector_store %arg7[%c12, %c0_147, %c0_148], %476 {strides = array<i32>} : memref<54x8x128xf32, #tpu.memory_space<vmem>>, vector<1x8x128xf32>,
    %477 = arith.addf %402, %467 : vector<8x128xf32>
    %478 = arith.addf %477, %470 : vector<8x128xf32>
    %479 = arith.subf %423, %10 : vector<8x128xf32>
    %480 = arith.mulf %479, %479 : vector<8x128xf32>
    %481 = vector.broadcast %18 : f32 to vector<8x128xf32>
    %482 = arith.mulf %480, %481 : vector<8x128xf32>
    %483 = math.exp %482 : vector<8x128xf32>
    %484 = arith.mulf %483, %437 : vector<8x128xf32>
    %c1_i32_149 = arith.constant 1 : i32
    %485 = tpu.dynamic_rotate %483 by %c1_i32_149 dim 0 : vector<8x128xf32>, i32 -> vector<8x128xf32>
    %c113_i32_150 = arith.constant 113 : i32
    %486 = tpu.dynamic_rotate %485 by %c113_i32_150 dim 1 : vector<8x128xf32>, i32 -> vector<8x128xf32>
    %487 = arith.mulf %486, %451 : vector<8x128xf32>
    %c41 = arith.constant 41 : index
    %c0_151 = arith.constant 0 : index
    %c0_152 = arith.constant 0 : index
    %488 = vector.load %arg7[%c41, %c0_151, %c0_152] : memref<54x8x128xf32, #tpu.memory_space<vmem>>, vector<1x8x128xf32>
    %489 = vector.shape_cast %488 : vector<1x8x128xf32> to vector<8x128xf32>
    %490 = vector.shape_cast %484 : vector<8x128xf32> to vector<1x8x128xf32>
    tpu.vector_store %arg7[%c41, %c0_151, %c0_152], %490 {strides = array<i32>} : memref<54x8x128xf32, #tpu.memory_space<vmem>>, vector<1x8x128xf32>,
    %c13 = arith.constant 13 : index
    %c0_153 = arith.constant 0 : index
    %c0_154 = arith.constant 0 : index
    %491 = vector.load %arg7[%c13, %c0_153, %c0_154] : memref<54x8x128xf32, #tpu.memory_space<vmem>>, vector<1x8x128xf32>
    %492 = vector.shape_cast %491 : vector<1x8x128xf32> to vector<8x128xf32>
    %493 = vector.shape_cast %487 : vector<8x128xf32> to vector<1x8x128xf32>
    tpu.vector_store %arg7[%c13, %c0_153, %c0_154], %493 {strides = array<i32>} : memref<54x8x128xf32, #tpu.memory_space<vmem>>, vector<1x8x128xf32>,
    %494 = arith.addf %419, %484 : vector<8x128xf32>
    %495 = arith.addf %494, %487 : vector<8x128xf32>
    %c1_i32_155 = arith.constant 1 : i32
    %496 = tpu.dynamic_rotate %270 by %c1_i32_155 dim 1 : vector<8x128xf32>, i32 -> vector<8x128xf32>
    %c1_i32_156 = arith.constant 1 : i32
    %497 = tpu.dynamic_rotate %271 by %c1_i32_156 dim 1 : vector<8x128xf32>, i32 -> vector<8x128xf32>
    %c1_i32_157 = arith.constant 1 : i32
    %498 = tpu.dynamic_rotate %272 by %c1_i32_157 dim 1 : vector<8x128xf32>, i32 -> vector<8x128xf32>
    %c1_i32_158 = arith.constant 1 : i32
    %499 = tpu.dynamic_rotate %273 by %c1_i32_158 dim 1 : vector<8x128xf32>, i32 -> vector<8x128xf32>
    %c7_i32_159 = arith.constant 7 : i32
    %500 = vector.broadcast %c7_i32_159 : i32 to vector<8x1xi32>
    %501 = arith.cmpi slt, %0, %500 : vector<8x1xi32>
    %c1_i32_160 = arith.constant 1 : i32
    %502 = vector.broadcast %c1_i32_160 : i32 to vector<1x128xi32>
    %503 = arith.cmpi sge, %2, %502 : vector<1x128xi32>
    %504 = arith.extui %501 : vector<8x1xi1> to vector<8x1xi32>
    %505 = arith.sitofp %504 : vector<8x1xi32> to vector<8x1xf32>
    %506 = arith.extui %503 : vector<1x128xi1> to vector<1x128xi32>
    %507 = arith.sitofp %506 : vector<1x128xi32> to vector<1x128xf32>
    %508 = vector.broadcast %505 : vector<8x1xf32> to vector<8x128xf32>
    %509 = vector.broadcast %507 : vector<1x128xf32> to vector<8x128xf32>
    %510 = arith.mulf %508, %509 : vector<8x128xf32>
    %c1_i32_161 = arith.constant 1 : i32
    %511 = vector.broadcast %c1_i32_161 : i32 to vector<8x1xi32>
    %512 = arith.cmpi sge, %0, %511 : vector<8x1xi32>
    %c15_i32_162 = arith.constant 15 : i32
    %513 = vector.broadcast %c15_i32_162 : i32 to vector<1x128xi32>
    %514 = arith.cmpi slt, %2, %513 : vector<1x128xi32>
    %515 = arith.extui %512 : vector<8x1xi1> to vector<8x1xi32>
    %516 = arith.sitofp %515 : vector<8x1xi32> to vector<8x1xf32>
    %517 = arith.extui %514 : vector<1x128xi1> to vector<1x128xi32>
    %518 = arith.sitofp %517 : vector<1x128xi32> to vector<1x128xf32>
    %519 = vector.broadcast %516 : vector<8x1xf32> to vector<8x128xf32>
    %520 = vector.broadcast %518 : vector<1x128xf32> to vector<8x128xf32>
    %521 = arith.mulf %519, %520 : vector<8x128xf32>
    %522 = arith.subf %496, %4 : vector<8x128xf32>
    %523 = arith.mulf %522, %522 : vector<8x128xf32>
    %524 = vector.broadcast %12 : f32 to vector<8x128xf32>
    %525 = arith.mulf %523, %524 : vector<8x128xf32>
    %526 = arith.subf %497, %6 : vector<8x128xf32>
    %527 = arith.mulf %526, %526 : vector<8x128xf32>
    %528 = vector.broadcast %14 : f32 to vector<8x128xf32>
    %529 = arith.mulf %527, %528 : vector<8x128xf32>
    %530 = arith.addf %525, %529 : vector<8x128xf32>
    %531 = arith.subf %498, %8 : vector<8x128xf32>
    %532 = arith.mulf %531, %531 : vector<8x128xf32>
    %533 = vector.broadcast %16 : f32 to vector<8x128xf32>
    %534 = arith.mulf %532, %533 : vector<8x128xf32>
    %535 = arith.addf %530, %534 : vector<8x128xf32>
    %536 = math.exp %535 : vector<8x128xf32>
    %537 = arith.mulf %536, %510 : vector<8x128xf32>
    %c1_i32_163 = arith.constant 1 : i32
    %538 = tpu.dynamic_rotate %536 by %c1_i32_163 dim 0 : vector<8x128xf32>, i32 -> vector<8x128xf32>
    %c127_i32_164 = arith.constant 127 : i32
    %539 = tpu.dynamic_rotate %538 by %c127_i32_164 dim 1 : vector<8x128xf32>, i32 -> vector<8x128xf32>
    %540 = arith.mulf %539, %521 : vector<8x128xf32>
    %c42 = arith.constant 42 : index
    %c0_165 = arith.constant 0 : index
    %c0_166 = arith.constant 0 : index
    %541 = vector.load %arg7[%c42, %c0_165, %c0_166] : memref<54x8x128xf32, #tpu.memory_space<vmem>>, vector<1x8x128xf32>
    %542 = vector.shape_cast %541 : vector<1x8x128xf32> to vector<8x128xf32>
    %543 = vector.shape_cast %537 : vector<8x128xf32> to vector<1x8x128xf32>
    tpu.vector_store %arg7[%c42, %c0_165, %c0_166], %543 {strides = array<i32>} : memref<54x8x128xf32, #tpu.memory_space<vmem>>, vector<1x8x128xf32>,
    %c10 = arith.constant 10 : index
    %c0_167 = arith.constant 0 : index
    %c0_168 = arith.constant 0 : index
    %544 = vector.load %arg7[%c10, %c0_167, %c0_168] : memref<54x8x128xf32, #tpu.memory_space<vmem>>, vector<1x8x128xf32>
    %545 = vector.shape_cast %544 : vector<1x8x128xf32> to vector<8x128xf32>
    %546 = vector.shape_cast %540 : vector<8x128xf32> to vector<1x8x128xf32>
    tpu.vector_store %arg7[%c10, %c0_167, %c0_168], %546 {strides = array<i32>} : memref<54x8x128xf32, #tpu.memory_space<vmem>>, vector<1x8x128xf32>,
    %547 = arith.addf %478, %537 : vector<8x128xf32>
    %548 = arith.addf %547, %540 : vector<8x128xf32>
    %549 = arith.subf %499, %10 : vector<8x128xf32>
    %550 = arith.mulf %549, %549 : vector<8x128xf32>
    %551 = vector.broadcast %18 : f32 to vector<8x128xf32>
    %552 = arith.mulf %550, %551 : vector<8x128xf32>
    %553 = math.exp %552 : vector<8x128xf32>
    %554 = arith.mulf %553, %510 : vector<8x128xf32>
    %c1_i32_169 = arith.constant 1 : i32
    %555 = tpu.dynamic_rotate %553 by %c1_i32_169 dim 0 : vector<8x128xf32>, i32 -> vector<8x128xf32>
    %c127_i32_170 = arith.constant 127 : i32
    %556 = tpu.dynamic_rotate %555 by %c127_i32_170 dim 1 : vector<8x128xf32>, i32 -> vector<8x128xf32>
    %557 = arith.mulf %556, %521 : vector<8x128xf32>
    %c43 = arith.constant 43 : index
    %c0_171 = arith.constant 0 : index
    %c0_172 = arith.constant 0 : index
    %558 = vector.load %arg7[%c43, %c0_171, %c0_172] : memref<54x8x128xf32, #tpu.memory_space<vmem>>, vector<1x8x128xf32>
    %559 = vector.shape_cast %558 : vector<1x8x128xf32> to vector<8x128xf32>
    %560 = vector.shape_cast %554 : vector<8x128xf32> to vector<1x8x128xf32>
    tpu.vector_store %arg7[%c43, %c0_171, %c0_172], %560 {strides = array<i32>} : memref<54x8x128xf32, #tpu.memory_space<vmem>>, vector<1x8x128xf32>,
    %c11 = arith.constant 11 : index
    %c0_173 = arith.constant 0 : index
    %c0_174 = arith.constant 0 : index
    %561 = vector.load %arg7[%c11, %c0_173, %c0_174] : memref<54x8x128xf32, #tpu.memory_space<vmem>>, vector<1x8x128xf32>
    %562 = vector.shape_cast %561 : vector<1x8x128xf32> to vector<8x128xf32>
    %563 = vector.shape_cast %557 : vector<8x128xf32> to vector<1x8x128xf32>
    tpu.vector_store %arg7[%c11, %c0_173, %c0_174], %563 {strides = array<i32>} : memref<54x8x128xf32, #tpu.memory_space<vmem>>, vector<1x8x128xf32>,
    %564 = arith.addf %495, %554 : vector<8x128xf32>
    %565 = arith.addf %564, %557 : vector<8x128xf32>
    %c7_i32_175 = arith.constant 7 : i32
    %566 = vector.broadcast %c7_i32_175 : i32 to vector<8x1xi32>
    %567 = arith.cmpi slt, %0, %566 : vector<8x1xi32>
    %568 = arith.extui %567 : vector<8x1xi1> to vector<8x1xi32>
    %569 = arith.sitofp %568 : vector<8x1xi32> to vector<8x1xf32>
    %c1_i32_176 = arith.constant 1 : i32
    %570 = vector.broadcast %c1_i32_176 : i32 to vector<8x1xi32>
    %571 = arith.cmpi sge, %0, %570 : vector<8x1xi32>
    %572 = arith.extui %571 : vector<8x1xi1> to vector<8x1xi32>
    %573 = arith.sitofp %572 : vector<8x1xi32> to vector<8x1xf32>
    %574 = arith.subf %270, %4 : vector<8x128xf32>
    %575 = arith.mulf %574, %574 : vector<8x128xf32>
    %576 = vector.broadcast %12 : f32 to vector<8x128xf32>
    %577 = arith.mulf %575, %576 : vector<8x128xf32>
    %578 = arith.subf %271, %6 : vector<8x128xf32>
    %579 = arith.mulf %578, %578 : vector<8x128xf32>
    %580 = vector.broadcast %14 : f32 to vector<8x128xf32>
    %581 = arith.mulf %579, %580 : vector<8x128xf32>
    %582 = arith.addf %577, %581 : vector<8x128xf32>
    %583 = arith.subf %272, %8 : vector<8x128xf32>
    %584 = arith.mulf %583, %583 : vector<8x128xf32>
    %585 = vector.broadcast %16 : f32 to vector<8x128xf32>
    %586 = arith.mulf %584, %585 : vector<8x128xf32>
    %587 = arith.addf %582, %586 : vector<8x128xf32>
    %588 = math.exp %587 : vector<8x128xf32>
    %589 = vector.broadcast %569 : vector<8x1xf32> to vector<8x128xf32>
    %590 = arith.mulf %588, %589 : vector<8x128xf32>
    %c1_i32_177 = arith.constant 1 : i32
    %591 = tpu.dynamic_rotate %588 by %c1_i32_177 dim 0 : vector<8x128xf32>, i32 -> vector<8x128xf32>
    %592 = vector.broadcast %573 : vector<8x1xf32> to vector<8x128xf32>
    %593 = arith.mulf %591, %592 : vector<8x128xf32>
    %c44 = arith.constant 44 : index
    %c0_178 = arith.constant 0 : index
    %c0_179 = arith.constant 0 : index
    %594 = vector.load %arg7[%c44, %c0_178, %c0_179] : memref<54x8x128xf32, #tpu.memory_space<vmem>>, vector<1x8x128xf32>
    %595 = vector.shape_cast %594 : vector<1x8x128xf32> to vector<8x128xf32>
    %596 = vector.shape_cast %590 : vector<8x128xf32> to vector<1x8x128xf32>
    tpu.vector_store %arg7[%c44, %c0_178, %c0_179], %596 {strides = array<i32>} : memref<54x8x128xf32, #tpu.memory_space<vmem>>, vector<1x8x128xf32>,
    %c8 = arith.constant 8 : index
    %c0_180 = arith.constant 0 : index
    %c0_181 = arith.constant 0 : index
    %597 = vector.load %arg7[%c8, %c0_180, %c0_181] : memref<54x8x128xf32, #tpu.memory_space<vmem>>, vector<1x8x128xf32>
    %598 = vector.shape_cast %597 : vector<1x8x128xf32> to vector<8x128xf32>
    %599 = vector.shape_cast %593 : vector<8x128xf32> to vector<1x8x128xf32>
    tpu.vector_store %arg7[%c8, %c0_180, %c0_181], %599 {strides = array<i32>} : memref<54x8x128xf32, #tpu.memory_space<vmem>>, vector<1x8x128xf32>,
    %600 = arith.addf %548, %590 : vector<8x128xf32>
    %601 = arith.addf %600, %593 : vector<8x128xf32>
    %602 = arith.subf %273, %10 : vector<8x128xf32>
    %603 = arith.mulf %602, %602 : vector<8x128xf32>
    %604 = vector.broadcast %18 : f32 to vector<8x128xf32>
    %605 = arith.mulf %603, %604 : vector<8x128xf32>
    %606 = math.exp %605 : vector<8x128xf32>
    %607 = vector.broadcast %569 : vector<8x1xf32> to vector<8x128xf32>
    %608 = arith.mulf %606, %607 : vector<8x128xf32>
    %c1_i32_182 = arith.constant 1 : i32
    %609 = tpu.dynamic_rotate %606 by %c1_i32_182 dim 0 : vector<8x128xf32>, i32 -> vector<8x128xf32>
    %610 = vector.broadcast %573 : vector<8x1xf32> to vector<8x128xf32>
    %611 = arith.mulf %609, %610 : vector<8x128xf32>
    %c45 = arith.constant 45 : index
    %c0_183 = arith.constant 0 : index
    %c0_184 = arith.constant 0 : index
    %612 = vector.load %arg7[%c45, %c0_183, %c0_184] : memref<54x8x128xf32, #tpu.memory_space<vmem>>, vector<1x8x128xf32>
    %613 = vector.shape_cast %612 : vector<1x8x128xf32> to vector<8x128xf32>
    %614 = vector.shape_cast %608 : vector<8x128xf32> to vector<1x8x128xf32>
    tpu.vector_store %arg7[%c45, %c0_183, %c0_184], %614 {strides = array<i32>} : memref<54x8x128xf32, #tpu.memory_space<vmem>>, vector<1x8x128xf32>,
    %c9 = arith.constant 9 : index
    %c0_185 = arith.constant 0 : index
    %c0_186 = arith.constant 0 : index
    %615 = vector.load %arg7[%c9, %c0_185, %c0_186] : memref<54x8x128xf32, #tpu.memory_space<vmem>>, vector<1x8x128xf32>
    %616 = vector.shape_cast %615 : vector<1x8x128xf32> to vector<8x128xf32>
    %617 = vector.shape_cast %611 : vector<8x128xf32> to vector<1x8x128xf32>
    tpu.vector_store %arg7[%c9, %c0_185, %c0_186], %617 {strides = array<i32>} : memref<54x8x128xf32, #tpu.memory_space<vmem>>, vector<1x8x128xf32>,
    %618 = arith.addf %565, %608 : vector<8x128xf32>
    %619 = arith.addf %618, %611 : vector<8x128xf32>
    %c127_i32_187 = arith.constant 127 : i32
    %620 = tpu.dynamic_rotate %270 by %c127_i32_187 dim 1 : vector<8x128xf32>, i32 -> vector<8x128xf32>
    %c127_i32_188 = arith.constant 127 : i32
    %621 = tpu.dynamic_rotate %271 by %c127_i32_188 dim 1 : vector<8x128xf32>, i32 -> vector<8x128xf32>
    %c127_i32_189 = arith.constant 127 : i32
    %622 = tpu.dynamic_rotate %272 by %c127_i32_189 dim 1 : vector<8x128xf32>, i32 -> vector<8x128xf32>
    %c127_i32_190 = arith.constant 127 : i32
    %623 = tpu.dynamic_rotate %273 by %c127_i32_190 dim 1 : vector<8x128xf32>, i32 -> vector<8x128xf32>
    %c7_i32_191 = arith.constant 7 : i32
    %624 = vector.broadcast %c7_i32_191 : i32 to vector<8x1xi32>
    %625 = arith.cmpi slt, %0, %624 : vector<8x1xi32>
    %c15_i32_192 = arith.constant 15 : i32
    %626 = vector.broadcast %c15_i32_192 : i32 to vector<1x128xi32>
    %627 = arith.cmpi slt, %2, %626 : vector<1x128xi32>
    %628 = arith.extui %625 : vector<8x1xi1> to vector<8x1xi32>
    %629 = arith.sitofp %628 : vector<8x1xi32> to vector<8x1xf32>
    %630 = arith.extui %627 : vector<1x128xi1> to vector<1x128xi32>
    %631 = arith.sitofp %630 : vector<1x128xi32> to vector<1x128xf32>
    %632 = vector.broadcast %629 : vector<8x1xf32> to vector<8x128xf32>
    %633 = vector.broadcast %631 : vector<1x128xf32> to vector<8x128xf32>
    %634 = arith.mulf %632, %633 : vector<8x128xf32>
    %c1_i32_193 = arith.constant 1 : i32
    %635 = vector.broadcast %c1_i32_193 : i32 to vector<8x1xi32>
    %636 = arith.cmpi sge, %0, %635 : vector<8x1xi32>
    %c1_i32_194 = arith.constant 1 : i32
    %637 = vector.broadcast %c1_i32_194 : i32 to vector<1x128xi32>
    %638 = arith.cmpi sge, %2, %637 : vector<1x128xi32>
    %639 = arith.extui %636 : vector<8x1xi1> to vector<8x1xi32>
    %640 = arith.sitofp %639 : vector<8x1xi32> to vector<8x1xf32>
    %641 = arith.extui %638 : vector<1x128xi1> to vector<1x128xi32>
    %642 = arith.sitofp %641 : vector<1x128xi32> to vector<1x128xf32>
    %643 = vector.broadcast %640 : vector<8x1xf32> to vector<8x128xf32>
    %644 = vector.broadcast %642 : vector<1x128xf32> to vector<8x128xf32>
    %645 = arith.mulf %643, %644 : vector<8x128xf32>
    %646 = arith.subf %620, %4 : vector<8x128xf32>
    %647 = arith.mulf %646, %646 : vector<8x128xf32>
    %648 = vector.broadcast %12 : f32 to vector<8x128xf32>
    %649 = arith.mulf %647, %648 : vector<8x128xf32>
    %650 = arith.subf %621, %6 : vector<8x128xf32>
    %651 = arith.mulf %650, %650 : vector<8x128xf32>
    %652 = vector.broadcast %14 : f32 to vector<8x128xf32>
    %653 = arith.mulf %651, %652 : vector<8x128xf32>
    %654 = arith.addf %649, %653 : vector<8x128xf32>
    %655 = arith.subf %622, %8 : vector<8x128xf32>
    %656 = arith.mulf %655, %655 : vector<8x128xf32>
    %657 = vector.broadcast %16 : f32 to vector<8x128xf32>
    %658 = arith.mulf %656, %657 : vector<8x128xf32>
    %659 = arith.addf %654, %658 : vector<8x128xf32>
    %660 = math.exp %659 : vector<8x128xf32>
    %661 = arith.mulf %660, %634 : vector<8x128xf32>
    %c1_i32_195 = arith.constant 1 : i32
    %662 = tpu.dynamic_rotate %660 by %c1_i32_195 dim 0 : vector<8x128xf32>, i32 -> vector<8x128xf32>
    %c1_i32_196 = arith.constant 1 : i32
    %663 = tpu.dynamic_rotate %662 by %c1_i32_196 dim 1 : vector<8x128xf32>, i32 -> vector<8x128xf32>
    %664 = arith.mulf %663, %645 : vector<8x128xf32>
    %c46 = arith.constant 46 : index
    %c0_197 = arith.constant 0 : index
    %c0_198 = arith.constant 0 : index
    %665 = vector.load %arg7[%c46, %c0_197, %c0_198] : memref<54x8x128xf32, #tpu.memory_space<vmem>>, vector<1x8x128xf32>
    %666 = vector.shape_cast %665 : vector<1x8x128xf32> to vector<8x128xf32>
    %667 = vector.shape_cast %661 : vector<8x128xf32> to vector<1x8x128xf32>
    tpu.vector_store %arg7[%c46, %c0_197, %c0_198], %667 {strides = array<i32>} : memref<54x8x128xf32, #tpu.memory_space<vmem>>, vector<1x8x128xf32>,
    %c6 = arith.constant 6 : index
    %c0_199 = arith.constant 0 : index
    %c0_200 = arith.constant 0 : index
    %668 = vector.load %arg7[%c6, %c0_199, %c0_200] : memref<54x8x128xf32, #tpu.memory_space<vmem>>, vector<1x8x128xf32>
    %669 = vector.shape_cast %668 : vector<1x8x128xf32> to vector<8x128xf32>
    %670 = vector.shape_cast %664 : vector<8x128xf32> to vector<1x8x128xf32>
    tpu.vector_store %arg7[%c6, %c0_199, %c0_200], %670 {strides = array<i32>} : memref<54x8x128xf32, #tpu.memory_space<vmem>>, vector<1x8x128xf32>,
    %671 = arith.addf %601, %661 : vector<8x128xf32>
    %672 = arith.addf %671, %664 : vector<8x128xf32>
    %673 = arith.subf %623, %10 : vector<8x128xf32>
    %674 = arith.mulf %673, %673 : vector<8x128xf32>
    %675 = vector.broadcast %18 : f32 to vector<8x128xf32>
    %676 = arith.mulf %674, %675 : vector<8x128xf32>
    %677 = math.exp %676 : vector<8x128xf32>
    %678 = arith.mulf %677, %634 : vector<8x128xf32>
    %c1_i32_201 = arith.constant 1 : i32
    %679 = tpu.dynamic_rotate %677 by %c1_i32_201 dim 0 : vector<8x128xf32>, i32 -> vector<8x128xf32>
    %c1_i32_202 = arith.constant 1 : i32
    %680 = tpu.dynamic_rotate %679 by %c1_i32_202 dim 1 : vector<8x128xf32>, i32 -> vector<8x128xf32>
    %681 = arith.mulf %680, %645 : vector<8x128xf32>
    %c47 = arith.constant 47 : index
    %c0_203 = arith.constant 0 : index
    %c0_204 = arith.constant 0 : index
    %682 = vector.load %arg7[%c47, %c0_203, %c0_204] : memref<54x8x128xf32, #tpu.memory_space<vmem>>, vector<1x8x128xf32>
    %683 = vector.shape_cast %682 : vector<1x8x128xf32> to vector<8x128xf32>
    %684 = vector.shape_cast %678 : vector<8x128xf32> to vector<1x8x128xf32>
    tpu.vector_store %arg7[%c47, %c0_203, %c0_204], %684 {strides = array<i32>} : memref<54x8x128xf32, #tpu.memory_space<vmem>>, vector<1x8x128xf32>,
    %c7 = arith.constant 7 : index
    %c0_205 = arith.constant 0 : index
    %c0_206 = arith.constant 0 : index
    %685 = vector.load %arg7[%c7, %c0_205, %c0_206] : memref<54x8x128xf32, #tpu.memory_space<vmem>>, vector<1x8x128xf32>
    %686 = vector.shape_cast %685 : vector<1x8x128xf32> to vector<8x128xf32>
    %687 = vector.shape_cast %681 : vector<8x128xf32> to vector<1x8x128xf32>
    tpu.vector_store %arg7[%c7, %c0_205, %c0_206], %687 {strides = array<i32>} : memref<54x8x128xf32, #tpu.memory_space<vmem>>, vector<1x8x128xf32>,
    %688 = arith.addf %619, %678 : vector<8x128xf32>
    %689 = arith.addf %688, %681 : vector<8x128xf32>
    %c113_i32_207 = arith.constant 113 : i32
    %690 = tpu.dynamic_rotate %270 by %c113_i32_207 dim 1 : vector<8x128xf32>, i32 -> vector<8x128xf32>
    %c113_i32_208 = arith.constant 113 : i32
    %691 = tpu.dynamic_rotate %271 by %c113_i32_208 dim 1 : vector<8x128xf32>, i32 -> vector<8x128xf32>
    %c113_i32_209 = arith.constant 113 : i32
    %692 = tpu.dynamic_rotate %272 by %c113_i32_209 dim 1 : vector<8x128xf32>, i32 -> vector<8x128xf32>
    %c113_i32_210 = arith.constant 113 : i32
    %693 = tpu.dynamic_rotate %273 by %c113_i32_210 dim 1 : vector<8x128xf32>, i32 -> vector<8x128xf32>
    %c7_i32_211 = arith.constant 7 : i32
    %694 = vector.broadcast %c7_i32_211 : i32 to vector<8x1xi32>
    %695 = arith.cmpi slt, %0, %694 : vector<8x1xi32>
    %c7_i32_212 = arith.constant 7 : i32
    %696 = vector.broadcast %c7_i32_212 : i32 to vector<1x128xi32>
    %697 = arith.cmpi slt, %1, %696 : vector<1x128xi32>
    %c1_i32_213 = arith.constant 1 : i32
    %698 = vector.broadcast %c1_i32_213 : i32 to vector<1x128xi32>
    %699 = arith.cmpi sge, %2, %698 : vector<1x128xi32>
    %700 = arith.andi %697, %699 : vector<1x128xi1>
    %701 = arith.extui %695 : vector<8x1xi1> to vector<8x1xi32>
    %702 = arith.sitofp %701 : vector<8x1xi32> to vector<8x1xf32>
    %703 = arith.extui %700 : vector<1x128xi1> to vector<1x128xi32>
    %704 = arith.sitofp %703 : vector<1x128xi32> to vector<1x128xf32>
    %705 = vector.broadcast %702 : vector<8x1xf32> to vector<8x128xf32>
    %706 = vector.broadcast %704 : vector<1x128xf32> to vector<8x128xf32>
    %707 = arith.mulf %705, %706 : vector<8x128xf32>
    %c1_i32_214 = arith.constant 1 : i32
    %708 = vector.broadcast %c1_i32_214 : i32 to vector<8x1xi32>
    %709 = arith.cmpi sge, %0, %708 : vector<8x1xi32>
    %c1_i32_215 = arith.constant 1 : i32
    %710 = vector.broadcast %c1_i32_215 : i32 to vector<1x128xi32>
    %711 = arith.cmpi sge, %1, %710 : vector<1x128xi32>
    %c15_i32_216 = arith.constant 15 : i32
    %712 = vector.broadcast %c15_i32_216 : i32 to vector<1x128xi32>
    %713 = arith.cmpi slt, %2, %712 : vector<1x128xi32>
    %714 = arith.andi %711, %713 : vector<1x128xi1>
    %715 = arith.extui %709 : vector<8x1xi1> to vector<8x1xi32>
    %716 = arith.sitofp %715 : vector<8x1xi32> to vector<8x1xf32>
    %717 = arith.extui %714 : vector<1x128xi1> to vector<1x128xi32>
    %718 = arith.sitofp %717 : vector<1x128xi32> to vector<1x128xf32>
    %719 = vector.broadcast %716 : vector<8x1xf32> to vector<8x128xf32>
    %720 = vector.broadcast %718 : vector<1x128xf32> to vector<8x128xf32>
    %721 = arith.mulf %719, %720 : vector<8x128xf32>
    %722 = arith.subf %690, %4 : vector<8x128xf32>
    %723 = arith.mulf %722, %722 : vector<8x128xf32>
    %724 = vector.broadcast %12 : f32 to vector<8x128xf32>
    %725 = arith.mulf %723, %724 : vector<8x128xf32>
    %726 = arith.subf %691, %6 : vector<8x128xf32>
    %727 = arith.mulf %726, %726 : vector<8x128xf32>
    %728 = vector.broadcast %14 : f32 to vector<8x128xf32>
    %729 = arith.mulf %727, %728 : vector<8x128xf32>
    %730 = arith.addf %725, %729 : vector<8x128xf32>
    %731 = arith.subf %692, %8 : vector<8x128xf32>
    %732 = arith.mulf %731, %731 : vector<8x128xf32>
    %733 = vector.broadcast %16 : f32 to vector<8x128xf32>
    %734 = arith.mulf %732, %733 : vector<8x128xf32>
    %735 = arith.addf %730, %734 : vector<8x128xf32>
    %736 = math.exp %735 : vector<8x128xf32>
    %737 = arith.mulf %736, %707 : vector<8x128xf32>
    %c1_i32_217 = arith.constant 1 : i32
    %738 = tpu.dynamic_rotate %736 by %c1_i32_217 dim 0 : vector<8x128xf32>, i32 -> vector<8x128xf32>
    %c15_i32_218 = arith.constant 15 : i32
    %739 = tpu.dynamic_rotate %738 by %c15_i32_218 dim 1 : vector<8x128xf32>, i32 -> vector<8x128xf32>
    %740 = arith.mulf %739, %721 : vector<8x128xf32>
    %c48 = arith.constant 48 : index
    %c0_219 = arith.constant 0 : index
    %c0_220 = arith.constant 0 : index
    %741 = vector.load %arg7[%c48, %c0_219, %c0_220] : memref<54x8x128xf32, #tpu.memory_space<vmem>>, vector<1x8x128xf32>
    %742 = vector.shape_cast %741 : vector<1x8x128xf32> to vector<8x128xf32>
    %743 = vector.shape_cast %737 : vector<8x128xf32> to vector<1x8x128xf32>
    tpu.vector_store %arg7[%c48, %c0_219, %c0_220], %743 {strides = array<i32>} : memref<54x8x128xf32, #tpu.memory_space<vmem>>, vector<1x8x128xf32>,
    %c4 = arith.constant 4 : index
    %c0_221 = arith.constant 0 : index
    %c0_222 = arith.constant 0 : index
    %744 = vector.load %arg7[%c4, %c0_221, %c0_222] : memref<54x8x128xf32, #tpu.memory_space<vmem>>, vector<1x8x128xf32>
    %745 = vector.shape_cast %744 : vector<1x8x128xf32> to vector<8x128xf32>
    %746 = vector.shape_cast %740 : vector<8x128xf32> to vector<1x8x128xf32>
    tpu.vector_store %arg7[%c4, %c0_221, %c0_222], %746 {strides = array<i32>} : memref<54x8x128xf32, #tpu.memory_space<vmem>>, vector<1x8x128xf32>,
    %747 = arith.addf %672, %737 : vector<8x128xf32>
    %748 = arith.addf %747, %740 : vector<8x128xf32>
    %749 = arith.subf %693, %10 : vector<8x128xf32>
    %750 = arith.mulf %749, %749 : vector<8x128xf32>
    %751 = vector.broadcast %18 : f32 to vector<8x128xf32>
    %752 = arith.mulf %750, %751 : vector<8x128xf32>
    %753 = math.exp %752 : vector<8x128xf32>
    %754 = arith.mulf %753, %707 : vector<8x128xf32>
    %c1_i32_223 = arith.constant 1 : i32
    %755 = tpu.dynamic_rotate %753 by %c1_i32_223 dim 0 : vector<8x128xf32>, i32 -> vector<8x128xf32>
    %c15_i32_224 = arith.constant 15 : i32
    %756 = tpu.dynamic_rotate %755 by %c15_i32_224 dim 1 : vector<8x128xf32>, i32 -> vector<8x128xf32>
    %757 = arith.mulf %756, %721 : vector<8x128xf32>
    %c49 = arith.constant 49 : index
    %c0_225 = arith.constant 0 : index
    %c0_226 = arith.constant 0 : index
    %758 = vector.load %arg7[%c49, %c0_225, %c0_226] : memref<54x8x128xf32, #tpu.memory_space<vmem>>, vector<1x8x128xf32>
    %759 = vector.shape_cast %758 : vector<1x8x128xf32> to vector<8x128xf32>
    %760 = vector.shape_cast %754 : vector<8x128xf32> to vector<1x8x128xf32>
    tpu.vector_store %arg7[%c49, %c0_225, %c0_226], %760 {strides = array<i32>} : memref<54x8x128xf32, #tpu.memory_space<vmem>>, vector<1x8x128xf32>,
    %c5 = arith.constant 5 : index
    %c0_227 = arith.constant 0 : index
    %c0_228 = arith.constant 0 : index
    %761 = vector.load %arg7[%c5, %c0_227, %c0_228] : memref<54x8x128xf32, #tpu.memory_space<vmem>>, vector<1x8x128xf32>
    %762 = vector.shape_cast %761 : vector<1x8x128xf32> to vector<8x128xf32>
    %763 = vector.shape_cast %757 : vector<8x128xf32> to vector<1x8x128xf32>
    tpu.vector_store %arg7[%c5, %c0_227, %c0_228], %763 {strides = array<i32>} : memref<54x8x128xf32, #tpu.memory_space<vmem>>, vector<1x8x128xf32>,
    %764 = arith.addf %689, %754 : vector<8x128xf32>
    %765 = arith.addf %764, %757 : vector<8x128xf32>
    %c112_i32_229 = arith.constant 112 : i32
    %766 = tpu.dynamic_rotate %270 by %c112_i32_229 dim 1 : vector<8x128xf32>, i32 -> vector<8x128xf32>
    %c112_i32_230 = arith.constant 112 : i32
    %767 = tpu.dynamic_rotate %271 by %c112_i32_230 dim 1 : vector<8x128xf32>, i32 -> vector<8x128xf32>
    %c112_i32_231 = arith.constant 112 : i32
    %768 = tpu.dynamic_rotate %272 by %c112_i32_231 dim 1 : vector<8x128xf32>, i32 -> vector<8x128xf32>
    %c112_i32_232 = arith.constant 112 : i32
    %769 = tpu.dynamic_rotate %273 by %c112_i32_232 dim 1 : vector<8x128xf32>, i32 -> vector<8x128xf32>
    %c7_i32_233 = arith.constant 7 : i32
    %770 = vector.broadcast %c7_i32_233 : i32 to vector<8x1xi32>
    %771 = arith.cmpi slt, %0, %770 : vector<8x1xi32>
    %c7_i32_234 = arith.constant 7 : i32
    %772 = vector.broadcast %c7_i32_234 : i32 to vector<1x128xi32>
    %773 = arith.cmpi slt, %1, %772 : vector<1x128xi32>
    %774 = arith.extui %771 : vector<8x1xi1> to vector<8x1xi32>
    %775 = arith.sitofp %774 : vector<8x1xi32> to vector<8x1xf32>
    %776 = arith.extui %773 : vector<1x128xi1> to vector<1x128xi32>
    %777 = arith.sitofp %776 : vector<1x128xi32> to vector<1x128xf32>
    %778 = vector.broadcast %775 : vector<8x1xf32> to vector<8x128xf32>
    %779 = vector.broadcast %777 : vector<1x128xf32> to vector<8x128xf32>
    %780 = arith.mulf %778, %779 : vector<8x128xf32>
    %c1_i32_235 = arith.constant 1 : i32
    %781 = vector.broadcast %c1_i32_235 : i32 to vector<8x1xi32>
    %782 = arith.cmpi sge, %0, %781 : vector<8x1xi32>
    %c1_i32_236 = arith.constant 1 : i32
    %783 = vector.broadcast %c1_i32_236 : i32 to vector<1x128xi32>
    %784 = arith.cmpi sge, %1, %783 : vector<1x128xi32>
    %785 = arith.extui %782 : vector<8x1xi1> to vector<8x1xi32>
    %786 = arith.sitofp %785 : vector<8x1xi32> to vector<8x1xf32>
    %787 = arith.extui %784 : vector<1x128xi1> to vector<1x128xi32>
    %788 = arith.sitofp %787 : vector<1x128xi32> to vector<1x128xf32>
    %789 = vector.broadcast %786 : vector<8x1xf32> to vector<8x128xf32>
    %790 = vector.broadcast %788 : vector<1x128xf32> to vector<8x128xf32>
    %791 = arith.mulf %789, %790 : vector<8x128xf32>
    %792 = arith.subf %766, %4 : vector<8x128xf32>
    %793 = arith.mulf %792, %792 : vector<8x128xf32>
    %794 = vector.broadcast %12 : f32 to vector<8x128xf32>
    %795 = arith.mulf %793, %794 : vector<8x128xf32>
    %796 = arith.subf %767, %6 : vector<8x128xf32>
    %797 = arith.mulf %796, %796 : vector<8x128xf32>
    %798 = vector.broadcast %14 : f32 to vector<8x128xf32>
    %799 = arith.mulf %797, %798 : vector<8x128xf32>
    %800 = arith.addf %795, %799 : vector<8x128xf32>
    %801 = arith.subf %768, %8 : vector<8x128xf32>
    %802 = arith.mulf %801, %801 : vector<8x128xf32>
    %803 = vector.broadcast %16 : f32 to vector<8x128xf32>
    %804 = arith.mulf %802, %803 : vector<8x128xf32>
    %805 = arith.addf %800, %804 : vector<8x128xf32>
    %806 = math.exp %805 : vector<8x128xf32>
    %807 = arith.mulf %806, %780 : vector<8x128xf32>
    %c1_i32_237 = arith.constant 1 : i32
    %808 = tpu.dynamic_rotate %806 by %c1_i32_237 dim 0 : vector<8x128xf32>, i32 -> vector<8x128xf32>
    %c16_i32_238 = arith.constant 16 : i32
    %809 = tpu.dynamic_rotate %808 by %c16_i32_238 dim 1 : vector<8x128xf32>, i32 -> vector<8x128xf32>
    %810 = arith.mulf %809, %791 : vector<8x128xf32>
    %c50 = arith.constant 50 : index
    %c0_239 = arith.constant 0 : index
    %c0_240 = arith.constant 0 : index
    %811 = vector.load %arg7[%c50, %c0_239, %c0_240] : memref<54x8x128xf32, #tpu.memory_space<vmem>>, vector<1x8x128xf32>
    %812 = vector.shape_cast %811 : vector<1x8x128xf32> to vector<8x128xf32>
    %813 = vector.shape_cast %807 : vector<8x128xf32> to vector<1x8x128xf32>
    tpu.vector_store %arg7[%c50, %c0_239, %c0_240], %813 {strides = array<i32>} : memref<54x8x128xf32, #tpu.memory_space<vmem>>, vector<1x8x128xf32>,
    %c2_241 = arith.constant 2 : index
    %c0_242 = arith.constant 0 : index
    %c0_243 = arith.constant 0 : index
    %814 = vector.load %arg7[%c2_241, %c0_242, %c0_243] : memref<54x8x128xf32, #tpu.memory_space<vmem>>, vector<1x8x128xf32>
    %815 = vector.shape_cast %814 : vector<1x8x128xf32> to vector<8x128xf32>
    %816 = vector.shape_cast %810 : vector<8x128xf32> to vector<1x8x128xf32>
    tpu.vector_store %arg7[%c2_241, %c0_242, %c0_243], %816 {strides = array<i32>} : memref<54x8x128xf32, #tpu.memory_space<vmem>>, vector<1x8x128xf32>,
    %817 = arith.addf %748, %807 : vector<8x128xf32>
    %818 = arith.addf %817, %810 : vector<8x128xf32>
    %819 = arith.subf %769, %10 : vector<8x128xf32>
    %820 = arith.mulf %819, %819 : vector<8x128xf32>
    %821 = vector.broadcast %18 : f32 to vector<8x128xf32>
    %822 = arith.mulf %820, %821 : vector<8x128xf32>
    %823 = math.exp %822 : vector<8x128xf32>
    %824 = arith.mulf %823, %780 : vector<8x128xf32>
    %c1_i32_244 = arith.constant 1 : i32
    %825 = tpu.dynamic_rotate %823 by %c1_i32_244 dim 0 : vector<8x128xf32>, i32 -> vector<8x128xf32>
    %c16_i32_245 = arith.constant 16 : i32
    %826 = tpu.dynamic_rotate %825 by %c16_i32_245 dim 1 : vector<8x128xf32>, i32 -> vector<8x128xf32>
    %827 = arith.mulf %826, %791 : vector<8x128xf32>
    %c51 = arith.constant 51 : index
    %c0_246 = arith.constant 0 : index
    %c0_247 = arith.constant 0 : index
    %828 = vector.load %arg7[%c51, %c0_246, %c0_247] : memref<54x8x128xf32, #tpu.memory_space<vmem>>, vector<1x8x128xf32>
    %829 = vector.shape_cast %828 : vector<1x8x128xf32> to vector<8x128xf32>
    %830 = vector.shape_cast %824 : vector<8x128xf32> to vector<1x8x128xf32>
    tpu.vector_store %arg7[%c51, %c0_246, %c0_247], %830 {strides = array<i32>} : memref<54x8x128xf32, #tpu.memory_space<vmem>>, vector<1x8x128xf32>,
    %c3_248 = arith.constant 3 : index
    %c0_249 = arith.constant 0 : index
    %c0_250 = arith.constant 0 : index
    %831 = vector.load %arg7[%c3_248, %c0_249, %c0_250] : memref<54x8x128xf32, #tpu.memory_space<vmem>>, vector<1x8x128xf32>
    %832 = vector.shape_cast %831 : vector<1x8x128xf32> to vector<8x128xf32>
    %833 = vector.shape_cast %827 : vector<8x128xf32> to vector<1x8x128xf32>
    tpu.vector_store %arg7[%c3_248, %c0_249, %c0_250], %833 {strides = array<i32>} : memref<54x8x128xf32, #tpu.memory_space<vmem>>, vector<1x8x128xf32>,
    %834 = arith.addf %765, %824 : vector<8x128xf32>
    %835 = arith.addf %834, %827 : vector<8x128xf32>
    %c111_i32_251 = arith.constant 111 : i32
    %836 = tpu.dynamic_rotate %270 by %c111_i32_251 dim 1 : vector<8x128xf32>, i32 -> vector<8x128xf32>
    %c111_i32_252 = arith.constant 111 : i32
    %837 = tpu.dynamic_rotate %271 by %c111_i32_252 dim 1 : vector<8x128xf32>, i32 -> vector<8x128xf32>
    %c111_i32_253 = arith.constant 111 : i32
    %838 = tpu.dynamic_rotate %272 by %c111_i32_253 dim 1 : vector<8x128xf32>, i32 -> vector<8x128xf32>
    %c111_i32_254 = arith.constant 111 : i32
    %839 = tpu.dynamic_rotate %273 by %c111_i32_254 dim 1 : vector<8x128xf32>, i32 -> vector<8x128xf32>
    %c7_i32_255 = arith.constant 7 : i32
    %840 = vector.broadcast %c7_i32_255 : i32 to vector<8x1xi32>
    %841 = arith.cmpi slt, %0, %840 : vector<8x1xi32>
    %c7_i32_256 = arith.constant 7 : i32
    %842 = vector.broadcast %c7_i32_256 : i32 to vector<1x128xi32>
    %843 = arith.cmpi slt, %1, %842 : vector<1x128xi32>
    %c15_i32_257 = arith.constant 15 : i32
    %844 = vector.broadcast %c15_i32_257 : i32 to vector<1x128xi32>
    %845 = arith.cmpi slt, %2, %844 : vector<1x128xi32>
    %846 = arith.andi %843, %845 : vector<1x128xi1>
    %847 = arith.extui %841 : vector<8x1xi1> to vector<8x1xi32>
    %848 = arith.sitofp %847 : vector<8x1xi32> to vector<8x1xf32>
    %849 = arith.extui %846 : vector<1x128xi1> to vector<1x128xi32>
    %850 = arith.sitofp %849 : vector<1x128xi32> to vector<1x128xf32>
    %851 = vector.broadcast %848 : vector<8x1xf32> to vector<8x128xf32>
    %852 = vector.broadcast %850 : vector<1x128xf32> to vector<8x128xf32>
    %853 = arith.mulf %851, %852 : vector<8x128xf32>
    %c1_i32_258 = arith.constant 1 : i32
    %854 = vector.broadcast %c1_i32_258 : i32 to vector<8x1xi32>
    %855 = arith.cmpi sge, %0, %854 : vector<8x1xi32>
    %c1_i32_259 = arith.constant 1 : i32
    %856 = vector.broadcast %c1_i32_259 : i32 to vector<1x128xi32>
    %857 = arith.cmpi sge, %1, %856 : vector<1x128xi32>
    %c1_i32_260 = arith.constant 1 : i32
    %858 = vector.broadcast %c1_i32_260 : i32 to vector<1x128xi32>
    %859 = arith.cmpi sge, %2, %858 : vector<1x128xi32>
    %860 = arith.andi %857, %859 : vector<1x128xi1>
    %861 = arith.extui %855 : vector<8x1xi1> to vector<8x1xi32>
    %862 = arith.sitofp %861 : vector<8x1xi32> to vector<8x1xf32>
    %863 = arith.extui %860 : vector<1x128xi1> to vector<1x128xi32>
    %864 = arith.sitofp %863 : vector<1x128xi32> to vector<1x128xf32>
    %865 = vector.broadcast %862 : vector<8x1xf32> to vector<8x128xf32>
    %866 = vector.broadcast %864 : vector<1x128xf32> to vector<8x128xf32>
    %867 = arith.mulf %865, %866 : vector<8x128xf32>
    %868 = arith.subf %836, %4 : vector<8x128xf32>
    %869 = arith.mulf %868, %868 : vector<8x128xf32>
    %870 = vector.broadcast %12 : f32 to vector<8x128xf32>
    %871 = arith.mulf %869, %870 : vector<8x128xf32>
    %872 = arith.subf %837, %6 : vector<8x128xf32>
    %873 = arith.mulf %872, %872 : vector<8x128xf32>
    %874 = vector.broadcast %14 : f32 to vector<8x128xf32>
    %875 = arith.mulf %873, %874 : vector<8x128xf32>
    %876 = arith.addf %871, %875 : vector<8x128xf32>
    %877 = arith.subf %838, %8 : vector<8x128xf32>
    %878 = arith.mulf %877, %877 : vector<8x128xf32>
    %879 = vector.broadcast %16 : f32 to vector<8x128xf32>
    %880 = arith.mulf %878, %879 : vector<8x128xf32>
    %881 = arith.addf %876, %880 : vector<8x128xf32>
    %882 = math.exp %881 : vector<8x128xf32>
    %883 = arith.mulf %882, %853 : vector<8x128xf32>
    %c1_i32_261 = arith.constant 1 : i32
    %884 = tpu.dynamic_rotate %882 by %c1_i32_261 dim 0 : vector<8x128xf32>, i32 -> vector<8x128xf32>
    %c17_i32_262 = arith.constant 17 : i32
    %885 = tpu.dynamic_rotate %884 by %c17_i32_262 dim 1 : vector<8x128xf32>, i32 -> vector<8x128xf32>
    %886 = arith.mulf %885, %867 : vector<8x128xf32>
    %c52 = arith.constant 52 : index
    %c0_263 = arith.constant 0 : index
    %c0_264 = arith.constant 0 : index
    %887 = vector.load %arg7[%c52, %c0_263, %c0_264] : memref<54x8x128xf32, #tpu.memory_space<vmem>>, vector<1x8x128xf32>
    %888 = vector.shape_cast %887 : vector<1x8x128xf32> to vector<8x128xf32>
    %889 = vector.shape_cast %883 : vector<8x128xf32> to vector<1x8x128xf32>
    tpu.vector_store %arg7[%c52, %c0_263, %c0_264], %889 {strides = array<i32>} : memref<54x8x128xf32, #tpu.memory_space<vmem>>, vector<1x8x128xf32>,
    %c0_265 = arith.constant 0 : index
    %c0_266 = arith.constant 0 : index
    %c0_267 = arith.constant 0 : index
    %890 = vector.load %arg7[%c0_265, %c0_266, %c0_267] : memref<54x8x128xf32, #tpu.memory_space<vmem>>, vector<1x8x128xf32>
    %891 = vector.shape_cast %890 : vector<1x8x128xf32> to vector<8x128xf32>
    %892 = vector.shape_cast %886 : vector<8x128xf32> to vector<1x8x128xf32>
    tpu.vector_store %arg7[%c0_265, %c0_266, %c0_267], %892 {strides = array<i32>} : memref<54x8x128xf32, #tpu.memory_space<vmem>>, vector<1x8x128xf32>,
    %893 = arith.addf %818, %883 : vector<8x128xf32>
    %894 = arith.addf %893, %886 : vector<8x128xf32>
    %895 = arith.subf %839, %10 : vector<8x128xf32>
    %896 = arith.mulf %895, %895 : vector<8x128xf32>
    %897 = vector.broadcast %18 : f32 to vector<8x128xf32>
    %898 = arith.mulf %896, %897 : vector<8x128xf32>
    %899 = math.exp %898 : vector<8x128xf32>
    %900 = arith.mulf %899, %853 : vector<8x128xf32>
    %c1_i32_268 = arith.constant 1 : i32
    %901 = tpu.dynamic_rotate %899 by %c1_i32_268 dim 0 : vector<8x128xf32>, i32 -> vector<8x128xf32>
    %c17_i32_269 = arith.constant 17 : i32
    %902 = tpu.dynamic_rotate %901 by %c17_i32_269 dim 1 : vector<8x128xf32>, i32 -> vector<8x128xf32>
    %903 = arith.mulf %902, %867 : vector<8x128xf32>
    %c53 = arith.constant 53 : index
    %c0_270 = arith.constant 0 : index
    %c0_271 = arith.constant 0 : index
    %904 = vector.load %arg7[%c53, %c0_270, %c0_271] : memref<54x8x128xf32, #tpu.memory_space<vmem>>, vector<1x8x128xf32>
    %905 = vector.shape_cast %904 : vector<1x8x128xf32> to vector<8x128xf32>
    %906 = vector.shape_cast %900 : vector<8x128xf32> to vector<1x8x128xf32>
    tpu.vector_store %arg7[%c53, %c0_270, %c0_271], %906 {strides = array<i32>} : memref<54x8x128xf32, #tpu.memory_space<vmem>>, vector<1x8x128xf32>,
    %c1_272 = arith.constant 1 : index
    %c0_273 = arith.constant 0 : index
    %c0_274 = arith.constant 0 : index
    %907 = vector.load %arg7[%c1_272, %c0_273, %c0_274] : memref<54x8x128xf32, #tpu.memory_space<vmem>>, vector<1x8x128xf32>
    %908 = vector.shape_cast %907 : vector<1x8x128xf32> to vector<8x128xf32>
    %909 = vector.shape_cast %903 : vector<8x128xf32> to vector<1x8x128xf32>
    tpu.vector_store %arg7[%c1_272, %c0_273, %c0_274], %909 {strides = array<i32>} : memref<54x8x128xf32, #tpu.memory_space<vmem>>, vector<1x8x128xf32>,
    %910 = arith.addf %835, %900 : vector<8x128xf32>
    %911 = arith.addf %910, %903 : vector<8x128xf32>
    %c0_275 = arith.constant 0 : index
    %912 = memref.load %arg5[%c0_275] : memref<2xf32, #tpu.memory_space<smem>>
    %cst_276 = arith.constant 9.99999968E-21 : f32
    %913 = vector.broadcast %cst_276 : f32 to vector<8x128xf32>
    %914 = arith.addf %894, %913 : vector<8x128xf32>
    %915 = vector.broadcast %912 : f32 to vector<8x128xf32>
    %916 = arith.divf %915, %914 : vector<8x128xf32>
    %c1_277 = arith.constant 1 : index
    %917 = memref.load %arg5[%c1_277] : memref<2xf32, #tpu.memory_space<smem>>
    %cst_278 = arith.constant 9.99999968E-21 : f32
    %918 = vector.broadcast %cst_278 : f32 to vector<8x128xf32>
    %919 = arith.addf %911, %918 : vector<8x128xf32>
    %920 = vector.broadcast %917 : f32 to vector<8x128xf32>
    %921 = arith.divf %920, %919 : vector<8x128xf32>
    %c0_279 = arith.constant 0 : index
    %c0_280 = arith.constant 0 : index
    %c0_281 = arith.constant 0 : index
    %922 = vector.load %arg7[%c0_279, %c0_280, %c0_281] : memref<54x8x128xf32, #tpu.memory_space<vmem>>, vector<1x8x128xf32>
    %923 = vector.shape_cast %922 : vector<1x8x128xf32> to vector<8x128xf32>
    %924 = arith.mulf %923, %916 : vector<8x128xf32>
    %c1_282 = arith.constant 1 : index
    %c0_283 = arith.constant 0 : index
    %c0_284 = arith.constant 0 : index
    %925 = vector.load %arg7[%c1_282, %c0_283, %c0_284] : memref<54x8x128xf32, #tpu.memory_space<vmem>>, vector<1x8x128xf32>
    %926 = vector.shape_cast %925 : vector<1x8x128xf32> to vector<8x128xf32>
    %927 = arith.mulf %926, %921 : vector<8x128xf32>
    %928 = arith.addf %924, %927 : vector<8x128xf32>
    %c0_285 = arith.constant 0 : index
    %c0_286 = arith.constant 0 : index
    %c0_287 = arith.constant 0 : index
    %929 = vector.load %arg7[%c0_285, %c0_286, %c0_287] : memref<54x8x128xf32, #tpu.memory_space<vmem>>, vector<1x8x128xf32>
    %930 = vector.shape_cast %929 : vector<1x8x128xf32> to vector<8x128xf32>
    %931 = vector.shape_cast %928 : vector<8x128xf32> to vector<1x8x128xf32>
    tpu.vector_store %arg7[%c0_285, %c0_286, %c0_287], %931 {strides = array<i32>} : memref<54x8x128xf32, #tpu.memory_space<vmem>>, vector<1x8x128xf32>,
    %c2_288 = arith.constant 2 : index
    %c0_289 = arith.constant 0 : index
    %c0_290 = arith.constant 0 : index
    %932 = vector.load %arg7[%c2_288, %c0_289, %c0_290] : memref<54x8x128xf32, #tpu.memory_space<vmem>>, vector<1x8x128xf32>
    %933 = vector.shape_cast %932 : vector<1x8x128xf32> to vector<8x128xf32>
    %934 = arith.mulf %933, %916 : vector<8x128xf32>
    %c3_291 = arith.constant 3 : index
    %c0_292 = arith.constant 0 : index
    %c0_293 = arith.constant 0 : index
    %935 = vector.load %arg7[%c3_291, %c0_292, %c0_293] : memref<54x8x128xf32, #tpu.memory_space<vmem>>, vector<1x8x128xf32>
    %936 = vector.shape_cast %935 : vector<1x8x128xf32> to vector<8x128xf32>
    %937 = arith.mulf %936, %921 : vector<8x128xf32>
    %938 = arith.addf %934, %937 : vector<8x128xf32>
    %c2_294 = arith.constant 2 : index
    %c0_295 = arith.constant 0 : index
    %c0_296 = arith.constant 0 : index
    %939 = vector.load %arg7[%c2_294, %c0_295, %c0_296] : memref<54x8x128xf32, #tpu.memory_space<vmem>>, vector<1x8x128xf32>
    %940 = vector.shape_cast %939 : vector<1x8x128xf32> to vector<8x128xf32>
    %941 = vector.shape_cast %938 : vector<8x128xf32> to vector<1x8x128xf32>
    tpu.vector_store %arg7[%c2_294, %c0_295, %c0_296], %941 {strides = array<i32>} : memref<54x8x128xf32, #tpu.memory_space<vmem>>, vector<1x8x128xf32>,
    %c4_297 = arith.constant 4 : index
    %c0_298 = arith.constant 0 : index
    %c0_299 = arith.constant 0 : index
    %942 = vector.load %arg7[%c4_297, %c0_298, %c0_299] : memref<54x8x128xf32, #tpu.memory_space<vmem>>, vector<1x8x128xf32>
    %943 = vector.shape_cast %942 : vector<1x8x128xf32> to vector<8x128xf32>
    %944 = arith.mulf %943, %916 : vector<8x128xf32>
    %c5_300 = arith.constant 5 : index
    %c0_301 = arith.constant 0 : index
    %c0_302 = arith.constant 0 : index
    %945 = vector.load %arg7[%c5_300, %c0_301, %c0_302] : memref<54x8x128xf32, #tpu.memory_space<vmem>>, vector<1x8x128xf32>
    %946 = vector.shape_cast %945 : vector<1x8x128xf32> to vector<8x128xf32>
    %947 = arith.mulf %946, %921 : vector<8x128xf32>
    %948 = arith.addf %944, %947 : vector<8x128xf32>
    %c4_303 = arith.constant 4 : index
    %c0_304 = arith.constant 0 : index
    %c0_305 = arith.constant 0 : index
    %949 = vector.load %arg7[%c4_303, %c0_304, %c0_305] : memref<54x8x128xf32, #tpu.memory_space<vmem>>, vector<1x8x128xf32>
    %950 = vector.shape_cast %949 : vector<1x8x128xf32> to vector<8x128xf32>
    %951 = vector.shape_cast %948 : vector<8x128xf32> to vector<1x8x128xf32>
    tpu.vector_store %arg7[%c4_303, %c0_304, %c0_305], %951 {strides = array<i32>} : memref<54x8x128xf32, #tpu.memory_space<vmem>>, vector<1x8x128xf32>,
    %c6_306 = arith.constant 6 : index
    %c0_307 = arith.constant 0 : index
    %c0_308 = arith.constant 0 : index
    %952 = vector.load %arg7[%c6_306, %c0_307, %c0_308] : memref<54x8x128xf32, #tpu.memory_space<vmem>>, vector<1x8x128xf32>
    %953 = vector.shape_cast %952 : vector<1x8x128xf32> to vector<8x128xf32>
    %954 = arith.mulf %953, %916 : vector<8x128xf32>
    %c7_309 = arith.constant 7 : index
    %c0_310 = arith.constant 0 : index
    %c0_311 = arith.constant 0 : index
    %955 = vector.load %arg7[%c7_309, %c0_310, %c0_311] : memref<54x8x128xf32, #tpu.memory_space<vmem>>, vector<1x8x128xf32>
    %956 = vector.shape_cast %955 : vector<1x8x128xf32> to vector<8x128xf32>
    %957 = arith.mulf %956, %921 : vector<8x128xf32>
    %958 = arith.addf %954, %957 : vector<8x128xf32>
    %c6_312 = arith.constant 6 : index
    %c0_313 = arith.constant 0 : index
    %c0_314 = arith.constant 0 : index
    %959 = vector.load %arg7[%c6_312, %c0_313, %c0_314] : memref<54x8x128xf32, #tpu.memory_space<vmem>>, vector<1x8x128xf32>
    %960 = vector.shape_cast %959 : vector<1x8x128xf32> to vector<8x128xf32>
    %961 = vector.shape_cast %958 : vector<8x128xf32> to vector<1x8x128xf32>
    tpu.vector_store %arg7[%c6_312, %c0_313, %c0_314], %961 {strides = array<i32>} : memref<54x8x128xf32, #tpu.memory_space<vmem>>, vector<1x8x128xf32>,
    %c8_315 = arith.constant 8 : index
    %c0_316 = arith.constant 0 : index
    %c0_317 = arith.constant 0 : index
    %962 = vector.load %arg7[%c8_315, %c0_316, %c0_317] : memref<54x8x128xf32, #tpu.memory_space<vmem>>, vector<1x8x128xf32>
    %963 = vector.shape_cast %962 : vector<1x8x128xf32> to vector<8x128xf32>
    %964 = arith.mulf %963, %916 : vector<8x128xf32>
    %c9_318 = arith.constant 9 : index
    %c0_319 = arith.constant 0 : index
    %c0_320 = arith.constant 0 : index
    %965 = vector.load %arg7[%c9_318, %c0_319, %c0_320] : memref<54x8x128xf32, #tpu.memory_space<vmem>>, vector<1x8x128xf32>
    %966 = vector.shape_cast %965 : vector<1x8x128xf32> to vector<8x128xf32>
    %967 = arith.mulf %966, %921 : vector<8x128xf32>
    %968 = arith.addf %964, %967 : vector<8x128xf32>
    %c8_321 = arith.constant 8 : index
    %c0_322 = arith.constant 0 : index
    %c0_323 = arith.constant 0 : index
    %969 = vector.load %arg7[%c8_321, %c0_322, %c0_323] : memref<54x8x128xf32, #tpu.memory_space<vmem>>, vector<1x8x128xf32>
    %970 = vector.shape_cast %969 : vector<1x8x128xf32> to vector<8x128xf32>
    %971 = vector.shape_cast %968 : vector<8x128xf32> to vector<1x8x128xf32>
    tpu.vector_store %arg7[%c8_321, %c0_322, %c0_323], %971 {strides = array<i32>} : memref<54x8x128xf32, #tpu.memory_space<vmem>>, vector<1x8x128xf32>,
    %c10_324 = arith.constant 10 : index
    %c0_325 = arith.constant 0 : index
    %c0_326 = arith.constant 0 : index
    %972 = vector.load %arg7[%c10_324, %c0_325, %c0_326] : memref<54x8x128xf32, #tpu.memory_space<vmem>>, vector<1x8x128xf32>
    %973 = vector.shape_cast %972 : vector<1x8x128xf32> to vector<8x128xf32>
    %974 = arith.mulf %973, %916 : vector<8x128xf32>
    %c11_327 = arith.constant 11 : index
    %c0_328 = arith.constant 0 : index
    %c0_329 = arith.constant 0 : index
    %975 = vector.load %arg7[%c11_327, %c0_328, %c0_329] : memref<54x8x128xf32, #tpu.memory_space<vmem>>, vector<1x8x128xf32>
    %976 = vector.shape_cast %975 : vector<1x8x128xf32> to vector<8x128xf32>
    %977 = arith.mulf %976, %921 : vector<8x128xf32>
    %978 = arith.addf %974, %977 : vector<8x128xf32>
    %c10_330 = arith.constant 10 : index
    %c0_331 = arith.constant 0 : index
    %c0_332 = arith.constant 0 : index
    %979 = vector.load %arg7[%c10_330, %c0_331, %c0_332] : memref<54x8x128xf32, #tpu.memory_space<vmem>>, vector<1x8x128xf32>
    %980 = vector.shape_cast %979 : vector<1x8x128xf32> to vector<8x128xf32>
    %981 = vector.shape_cast %978 : vector<8x128xf32> to vector<1x8x128xf32>
    tpu.vector_store %arg7[%c10_330, %c0_331, %c0_332], %981 {strides = array<i32>} : memref<54x8x128xf32, #tpu.memory_space<vmem>>, vector<1x8x128xf32>,
    %c12_333 = arith.constant 12 : index
    %c0_334 = arith.constant 0 : index
    %c0_335 = arith.constant 0 : index
    %982 = vector.load %arg7[%c12_333, %c0_334, %c0_335] : memref<54x8x128xf32, #tpu.memory_space<vmem>>, vector<1x8x128xf32>
    %983 = vector.shape_cast %982 : vector<1x8x128xf32> to vector<8x128xf32>
    %984 = arith.mulf %983, %916 : vector<8x128xf32>
    %c13_336 = arith.constant 13 : index
    %c0_337 = arith.constant 0 : index
    %c0_338 = arith.constant 0 : index
    %985 = vector.load %arg7[%c13_336, %c0_337, %c0_338] : memref<54x8x128xf32, #tpu.memory_space<vmem>>, vector<1x8x128xf32>
    %986 = vector.shape_cast %985 : vector<1x8x128xf32> to vector<8x128xf32>
    %987 = arith.mulf %986, %921 : vector<8x128xf32>
    %988 = arith.addf %984, %987 : vector<8x128xf32>
    %c12_339 = arith.constant 12 : index
    %c0_340 = arith.constant 0 : index
    %c0_341 = arith.constant 0 : index
    %989 = vector.load %arg7[%c12_339, %c0_340, %c0_341] : memref<54x8x128xf32, #tpu.memory_space<vmem>>, vector<1x8x128xf32>
    %990 = vector.shape_cast %989 : vector<1x8x128xf32> to vector<8x128xf32>
    %991 = vector.shape_cast %988 : vector<8x128xf32> to vector<1x8x128xf32>
    tpu.vector_store %arg7[%c12_339, %c0_340, %c0_341], %991 {strides = array<i32>} : memref<54x8x128xf32, #tpu.memory_space<vmem>>, vector<1x8x128xf32>,
    %c14_342 = arith.constant 14 : index
    %c0_343 = arith.constant 0 : index
    %c0_344 = arith.constant 0 : index
    %992 = vector.load %arg7[%c14_342, %c0_343, %c0_344] : memref<54x8x128xf32, #tpu.memory_space<vmem>>, vector<1x8x128xf32>
    %993 = vector.shape_cast %992 : vector<1x8x128xf32> to vector<8x128xf32>
    %994 = arith.mulf %993, %916 : vector<8x128xf32>
    %c15_345 = arith.constant 15 : index
    %c0_346 = arith.constant 0 : index
    %c0_347 = arith.constant 0 : index
    %995 = vector.load %arg7[%c15_345, %c0_346, %c0_347] : memref<54x8x128xf32, #tpu.memory_space<vmem>>, vector<1x8x128xf32>
    %996 = vector.shape_cast %995 : vector<1x8x128xf32> to vector<8x128xf32>
    %997 = arith.mulf %996, %921 : vector<8x128xf32>
    %998 = arith.addf %994, %997 : vector<8x128xf32>
    %c14_348 = arith.constant 14 : index
    %c0_349 = arith.constant 0 : index
    %c0_350 = arith.constant 0 : index
    %999 = vector.load %arg7[%c14_348, %c0_349, %c0_350] : memref<54x8x128xf32, #tpu.memory_space<vmem>>, vector<1x8x128xf32>
    %1000 = vector.shape_cast %999 : vector<1x8x128xf32> to vector<8x128xf32>
    %1001 = vector.shape_cast %998 : vector<8x128xf32> to vector<1x8x128xf32>
    tpu.vector_store %arg7[%c14_348, %c0_349, %c0_350], %1001 {strides = array<i32>} : memref<54x8x128xf32, #tpu.memory_space<vmem>>, vector<1x8x128xf32>,
    %c16_351 = arith.constant 16 : index
    %c0_352 = arith.constant 0 : index
    %c0_353 = arith.constant 0 : index
    %1002 = vector.load %arg7[%c16_351, %c0_352, %c0_353] : memref<54x8x128xf32, #tpu.memory_space<vmem>>, vector<1x8x128xf32>
    %1003 = vector.shape_cast %1002 : vector<1x8x128xf32> to vector<8x128xf32>
    %1004 = arith.mulf %1003, %916 : vector<8x128xf32>
    %c17_354 = arith.constant 17 : index
    %c0_355 = arith.constant 0 : index
    %c0_356 = arith.constant 0 : index
    %1005 = vector.load %arg7[%c17_354, %c0_355, %c0_356] : memref<54x8x128xf32, #tpu.memory_space<vmem>>, vector<1x8x128xf32>
    %1006 = vector.shape_cast %1005 : vector<1x8x128xf32> to vector<8x128xf32>
    %1007 = arith.mulf %1006, %921 : vector<8x128xf32>
    %1008 = arith.addf %1004, %1007 : vector<8x128xf32>
    %c16_357 = arith.constant 16 : index
    %c0_358 = arith.constant 0 : index
    %c0_359 = arith.constant 0 : index
    %1009 = vector.load %arg7[%c16_357, %c0_358, %c0_359] : memref<54x8x128xf32, #tpu.memory_space<vmem>>, vector<1x8x128xf32>
    %1010 = vector.shape_cast %1009 : vector<1x8x128xf32> to vector<8x128xf32>
    %1011 = vector.shape_cast %1008 : vector<8x128xf32> to vector<1x8x128xf32>
    tpu.vector_store %arg7[%c16_357, %c0_358, %c0_359], %1011 {strides = array<i32>} : memref<54x8x128xf32, #tpu.memory_space<vmem>>, vector<1x8x128xf32>,
    %c18_360 = arith.constant 18 : index
    %c0_361 = arith.constant 0 : index
    %c0_362 = arith.constant 0 : index
    %1012 = vector.load %arg7[%c18_360, %c0_361, %c0_362] : memref<54x8x128xf32, #tpu.memory_space<vmem>>, vector<1x8x128xf32>
    %1013 = vector.shape_cast %1012 : vector<1x8x128xf32> to vector<8x128xf32>
    %1014 = arith.mulf %1013, %916 : vector<8x128xf32>
    %c19_363 = arith.constant 19 : index
    %c0_364 = arith.constant 0 : index
    %c0_365 = arith.constant 0 : index
    %1015 = vector.load %arg7[%c19_363, %c0_364, %c0_365] : memref<54x8x128xf32, #tpu.memory_space<vmem>>, vector<1x8x128xf32>
    %1016 = vector.shape_cast %1015 : vector<1x8x128xf32> to vector<8x128xf32>
    %1017 = arith.mulf %1016, %921 : vector<8x128xf32>
    %1018 = arith.addf %1014, %1017 : vector<8x128xf32>
    %c18_366 = arith.constant 18 : index
    %c0_367 = arith.constant 0 : index
    %c0_368 = arith.constant 0 : index
    %1019 = vector.load %arg7[%c18_366, %c0_367, %c0_368] : memref<54x8x128xf32, #tpu.memory_space<vmem>>, vector<1x8x128xf32>
    %1020 = vector.shape_cast %1019 : vector<1x8x128xf32> to vector<8x128xf32>
    %1021 = vector.shape_cast %1018 : vector<8x128xf32> to vector<1x8x128xf32>
    tpu.vector_store %arg7[%c18_366, %c0_367, %c0_368], %1021 {strides = array<i32>} : memref<54x8x128xf32, #tpu.memory_space<vmem>>, vector<1x8x128xf32>,
    %c20_369 = arith.constant 20 : index
    %c0_370 = arith.constant 0 : index
    %c0_371 = arith.constant 0 : index
    %1022 = vector.load %arg7[%c20_369, %c0_370, %c0_371] : memref<54x8x128xf32, #tpu.memory_space<vmem>>, vector<1x8x128xf32>
    %1023 = vector.shape_cast %1022 : vector<1x8x128xf32> to vector<8x128xf32>
    %1024 = arith.mulf %1023, %916 : vector<8x128xf32>
    %c21_372 = arith.constant 21 : index
    %c0_373 = arith.constant 0 : index
    %c0_374 = arith.constant 0 : index
    %1025 = vector.load %arg7[%c21_372, %c0_373, %c0_374] : memref<54x8x128xf32, #tpu.memory_space<vmem>>, vector<1x8x128xf32>
    %1026 = vector.shape_cast %1025 : vector<1x8x128xf32> to vector<8x128xf32>
    %1027 = arith.mulf %1026, %921 : vector<8x128xf32>
    %1028 = arith.addf %1024, %1027 : vector<8x128xf32>
    %c20_375 = arith.constant 20 : index
    %c0_376 = arith.constant 0 : index
    %c0_377 = arith.constant 0 : index
    %1029 = vector.load %arg7[%c20_375, %c0_376, %c0_377] : memref<54x8x128xf32, #tpu.memory_space<vmem>>, vector<1x8x128xf32>
    %1030 = vector.shape_cast %1029 : vector<1x8x128xf32> to vector<8x128xf32>
    %1031 = vector.shape_cast %1028 : vector<8x128xf32> to vector<1x8x128xf32>
    tpu.vector_store %arg7[%c20_375, %c0_376, %c0_377], %1031 {strides = array<i32>} : memref<54x8x128xf32, #tpu.memory_space<vmem>>, vector<1x8x128xf32>,
    %c22_378 = arith.constant 22 : index
    %c0_379 = arith.constant 0 : index
    %c0_380 = arith.constant 0 : index
    %1032 = vector.load %arg7[%c22_378, %c0_379, %c0_380] : memref<54x8x128xf32, #tpu.memory_space<vmem>>, vector<1x8x128xf32>
    %1033 = vector.shape_cast %1032 : vector<1x8x128xf32> to vector<8x128xf32>
    %1034 = arith.mulf %1033, %916 : vector<8x128xf32>
    %c23_381 = arith.constant 23 : index
    %c0_382 = arith.constant 0 : index
    %c0_383 = arith.constant 0 : index
    %1035 = vector.load %arg7[%c23_381, %c0_382, %c0_383] : memref<54x8x128xf32, #tpu.memory_space<vmem>>, vector<1x8x128xf32>
    %1036 = vector.shape_cast %1035 : vector<1x8x128xf32> to vector<8x128xf32>
    %1037 = arith.mulf %1036, %921 : vector<8x128xf32>
    %1038 = arith.addf %1034, %1037 : vector<8x128xf32>
    %c22_384 = arith.constant 22 : index
    %c0_385 = arith.constant 0 : index
    %c0_386 = arith.constant 0 : index
    %1039 = vector.load %arg7[%c22_384, %c0_385, %c0_386] : memref<54x8x128xf32, #tpu.memory_space<vmem>>, vector<1x8x128xf32>
    %1040 = vector.shape_cast %1039 : vector<1x8x128xf32> to vector<8x128xf32>
    %1041 = vector.shape_cast %1038 : vector<8x128xf32> to vector<1x8x128xf32>
    tpu.vector_store %arg7[%c22_384, %c0_385, %c0_386], %1041 {strides = array<i32>} : memref<54x8x128xf32, #tpu.memory_space<vmem>>, vector<1x8x128xf32>,
    %c24_387 = arith.constant 24 : index
    %c0_388 = arith.constant 0 : index
    %c0_389 = arith.constant 0 : index
    %1042 = vector.load %arg7[%c24_387, %c0_388, %c0_389] : memref<54x8x128xf32, #tpu.memory_space<vmem>>, vector<1x8x128xf32>
    %1043 = vector.shape_cast %1042 : vector<1x8x128xf32> to vector<8x128xf32>
    %1044 = arith.mulf %1043, %916 : vector<8x128xf32>
    %c25_390 = arith.constant 25 : index
    %c0_391 = arith.constant 0 : index
    %c0_392 = arith.constant 0 : index
    %1045 = vector.load %arg7[%c25_390, %c0_391, %c0_392] : memref<54x8x128xf32, #tpu.memory_space<vmem>>, vector<1x8x128xf32>
    %1046 = vector.shape_cast %1045 : vector<1x8x128xf32> to vector<8x128xf32>
    %1047 = arith.mulf %1046, %921 : vector<8x128xf32>
    %1048 = arith.addf %1044, %1047 : vector<8x128xf32>
    %c24_393 = arith.constant 24 : index
    %c0_394 = arith.constant 0 : index
    %c0_395 = arith.constant 0 : index
    %1049 = vector.load %arg7[%c24_393, %c0_394, %c0_395] : memref<54x8x128xf32, #tpu.memory_space<vmem>>, vector<1x8x128xf32>
    %1050 = vector.shape_cast %1049 : vector<1x8x128xf32> to vector<8x128xf32>
    %1051 = vector.shape_cast %1048 : vector<8x128xf32> to vector<1x8x128xf32>
    tpu.vector_store %arg7[%c24_393, %c0_394, %c0_395], %1051 {strides = array<i32>} : memref<54x8x128xf32, #tpu.memory_space<vmem>>, vector<1x8x128xf32>,
    %c26_396 = arith.constant 26 : index
    %c0_397 = arith.constant 0 : index
    %c0_398 = arith.constant 0 : index
    %1052 = vector.load %arg7[%c26_396, %c0_397, %c0_398] : memref<54x8x128xf32, #tpu.memory_space<vmem>>, vector<1x8x128xf32>
    %1053 = vector.shape_cast %1052 : vector<1x8x128xf32> to vector<8x128xf32>
    %1054 = arith.mulf %1053, %916 : vector<8x128xf32>
    %c27_399 = arith.constant 27 : index
    %c0_400 = arith.constant 0 : index
    %c0_401 = arith.constant 0 : index
    %1055 = vector.load %arg7[%c27_399, %c0_400, %c0_401] : memref<54x8x128xf32, #tpu.memory_space<vmem>>, vector<1x8x128xf32>
    %1056 = vector.shape_cast %1055 : vector<1x8x128xf32> to vector<8x128xf32>
    %1057 = arith.mulf %1056, %921 : vector<8x128xf32>
    %1058 = arith.addf %1054, %1057 : vector<8x128xf32>
    %c26_402 = arith.constant 26 : index
    %c0_403 = arith.constant 0 : index
    %c0_404 = arith.constant 0 : index
    %1059 = vector.load %arg7[%c26_402, %c0_403, %c0_404] : memref<54x8x128xf32, #tpu.memory_space<vmem>>, vector<1x8x128xf32>
    %1060 = vector.shape_cast %1059 : vector<1x8x128xf32> to vector<8x128xf32>
    %1061 = vector.shape_cast %1058 : vector<8x128xf32> to vector<1x8x128xf32>
    tpu.vector_store %arg7[%c26_402, %c0_403, %c0_404], %1061 {strides = array<i32>} : memref<54x8x128xf32, #tpu.memory_space<vmem>>, vector<1x8x128xf32>,
    %c28_405 = arith.constant 28 : index
    %c0_406 = arith.constant 0 : index
    %c0_407 = arith.constant 0 : index
    %1062 = vector.load %arg7[%c28_405, %c0_406, %c0_407] : memref<54x8x128xf32, #tpu.memory_space<vmem>>, vector<1x8x128xf32>
    %1063 = vector.shape_cast %1062 : vector<1x8x128xf32> to vector<8x128xf32>
    %1064 = arith.mulf %1063, %916 : vector<8x128xf32>
    %c29_408 = arith.constant 29 : index
    %c0_409 = arith.constant 0 : index
    %c0_410 = arith.constant 0 : index
    %1065 = vector.load %arg7[%c29_408, %c0_409, %c0_410] : memref<54x8x128xf32, #tpu.memory_space<vmem>>, vector<1x8x128xf32>
    %1066 = vector.shape_cast %1065 : vector<1x8x128xf32> to vector<8x128xf32>
    %1067 = arith.mulf %1066, %921 : vector<8x128xf32>
    %1068 = arith.addf %1064, %1067 : vector<8x128xf32>
    %c28_411 = arith.constant 28 : index
    %c0_412 = arith.constant 0 : index
    %c0_413 = arith.constant 0 : index
    %1069 = vector.load %arg7[%c28_411, %c0_412, %c0_413] : memref<54x8x128xf32, #tpu.memory_space<vmem>>, vector<1x8x128xf32>
    %1070 = vector.shape_cast %1069 : vector<1x8x128xf32> to vector<8x128xf32>
    %1071 = vector.shape_cast %1068 : vector<8x128xf32> to vector<1x8x128xf32>
    tpu.vector_store %arg7[%c28_411, %c0_412, %c0_413], %1071 {strides = array<i32>} : memref<54x8x128xf32, #tpu.memory_space<vmem>>, vector<1x8x128xf32>,
    %c30_414 = arith.constant 30 : index
    %c0_415 = arith.constant 0 : index
    %c0_416 = arith.constant 0 : index
    %1072 = vector.load %arg7[%c30_414, %c0_415, %c0_416] : memref<54x8x128xf32, #tpu.memory_space<vmem>>, vector<1x8x128xf32>
    %1073 = vector.shape_cast %1072 : vector<1x8x128xf32> to vector<8x128xf32>
    %1074 = arith.mulf %1073, %916 : vector<8x128xf32>
    %c31_417 = arith.constant 31 : index
    %c0_418 = arith.constant 0 : index
    %c0_419 = arith.constant 0 : index
    %1075 = vector.load %arg7[%c31_417, %c0_418, %c0_419] : memref<54x8x128xf32, #tpu.memory_space<vmem>>, vector<1x8x128xf32>
    %1076 = vector.shape_cast %1075 : vector<1x8x128xf32> to vector<8x128xf32>
    %1077 = arith.mulf %1076, %921 : vector<8x128xf32>
    %1078 = arith.addf %1074, %1077 : vector<8x128xf32>
    %c30_420 = arith.constant 30 : index
    %c0_421 = arith.constant 0 : index
    %c0_422 = arith.constant 0 : index
    %1079 = vector.load %arg7[%c30_420, %c0_421, %c0_422] : memref<54x8x128xf32, #tpu.memory_space<vmem>>, vector<1x8x128xf32>
    %1080 = vector.shape_cast %1079 : vector<1x8x128xf32> to vector<8x128xf32>
    %1081 = vector.shape_cast %1078 : vector<8x128xf32> to vector<1x8x128xf32>
    tpu.vector_store %arg7[%c30_420, %c0_421, %c0_422], %1081 {strides = array<i32>} : memref<54x8x128xf32, #tpu.memory_space<vmem>>, vector<1x8x128xf32>,
    %c32_423 = arith.constant 32 : index
    %c0_424 = arith.constant 0 : index
    %c0_425 = arith.constant 0 : index
    %1082 = vector.load %arg7[%c32_423, %c0_424, %c0_425] : memref<54x8x128xf32, #tpu.memory_space<vmem>>, vector<1x8x128xf32>
    %1083 = vector.shape_cast %1082 : vector<1x8x128xf32> to vector<8x128xf32>
    %1084 = arith.mulf %1083, %916 : vector<8x128xf32>
    %c33_426 = arith.constant 33 : index
    %c0_427 = arith.constant 0 : index
    %c0_428 = arith.constant 0 : index
    %1085 = vector.load %arg7[%c33_426, %c0_427, %c0_428] : memref<54x8x128xf32, #tpu.memory_space<vmem>>, vector<1x8x128xf32>
    %1086 = vector.shape_cast %1085 : vector<1x8x128xf32> to vector<8x128xf32>
    %1087 = arith.mulf %1086, %921 : vector<8x128xf32>
    %1088 = arith.addf %1084, %1087 : vector<8x128xf32>
    %c32_429 = arith.constant 32 : index
    %c0_430 = arith.constant 0 : index
    %c0_431 = arith.constant 0 : index
    %1089 = vector.load %arg7[%c32_429, %c0_430, %c0_431] : memref<54x8x128xf32, #tpu.memory_space<vmem>>, vector<1x8x128xf32>
    %1090 = vector.shape_cast %1089 : vector<1x8x128xf32> to vector<8x128xf32>
    %1091 = vector.shape_cast %1088 : vector<8x128xf32> to vector<1x8x128xf32>
    tpu.vector_store %arg7[%c32_429, %c0_430, %c0_431], %1091 {strides = array<i32>} : memref<54x8x128xf32, #tpu.memory_space<vmem>>, vector<1x8x128xf32>,
    %c34_432 = arith.constant 34 : index
    %c0_433 = arith.constant 0 : index
    %c0_434 = arith.constant 0 : index
    %1092 = vector.load %arg7[%c34_432, %c0_433, %c0_434] : memref<54x8x128xf32, #tpu.memory_space<vmem>>, vector<1x8x128xf32>
    %1093 = vector.shape_cast %1092 : vector<1x8x128xf32> to vector<8x128xf32>
    %1094 = arith.mulf %1093, %916 : vector<8x128xf32>
    %c35_435 = arith.constant 35 : index
    %c0_436 = arith.constant 0 : index
    %c0_437 = arith.constant 0 : index
    %1095 = vector.load %arg7[%c35_435, %c0_436, %c0_437] : memref<54x8x128xf32, #tpu.memory_space<vmem>>, vector<1x8x128xf32>
    %1096 = vector.shape_cast %1095 : vector<1x8x128xf32> to vector<8x128xf32>
    %1097 = arith.mulf %1096, %921 : vector<8x128xf32>
    %1098 = arith.addf %1094, %1097 : vector<8x128xf32>
    %c34_438 = arith.constant 34 : index
    %c0_439 = arith.constant 0 : index
    %c0_440 = arith.constant 0 : index
    %1099 = vector.load %arg7[%c34_438, %c0_439, %c0_440] : memref<54x8x128xf32, #tpu.memory_space<vmem>>, vector<1x8x128xf32>
    %1100 = vector.shape_cast %1099 : vector<1x8x128xf32> to vector<8x128xf32>
    %1101 = vector.shape_cast %1098 : vector<8x128xf32> to vector<1x8x128xf32>
    tpu.vector_store %arg7[%c34_438, %c0_439, %c0_440], %1101 {strides = array<i32>} : memref<54x8x128xf32, #tpu.memory_space<vmem>>, vector<1x8x128xf32>,
    %c36_441 = arith.constant 36 : index
    %c0_442 = arith.constant 0 : index
    %c0_443 = arith.constant 0 : index
    %1102 = vector.load %arg7[%c36_441, %c0_442, %c0_443] : memref<54x8x128xf32, #tpu.memory_space<vmem>>, vector<1x8x128xf32>
    %1103 = vector.shape_cast %1102 : vector<1x8x128xf32> to vector<8x128xf32>
    %1104 = arith.mulf %1103, %916 : vector<8x128xf32>
    %c37_444 = arith.constant 37 : index
    %c0_445 = arith.constant 0 : index
    %c0_446 = arith.constant 0 : index
    %1105 = vector.load %arg7[%c37_444, %c0_445, %c0_446] : memref<54x8x128xf32, #tpu.memory_space<vmem>>, vector<1x8x128xf32>
    %1106 = vector.shape_cast %1105 : vector<1x8x128xf32> to vector<8x128xf32>
    %1107 = arith.mulf %1106, %921 : vector<8x128xf32>
    %1108 = arith.addf %1104, %1107 : vector<8x128xf32>
    %c36_447 = arith.constant 36 : index
    %c0_448 = arith.constant 0 : index
    %c0_449 = arith.constant 0 : index
    %1109 = vector.load %arg7[%c36_447, %c0_448, %c0_449] : memref<54x8x128xf32, #tpu.memory_space<vmem>>, vector<1x8x128xf32>
    %1110 = vector.shape_cast %1109 : vector<1x8x128xf32> to vector<8x128xf32>
    %1111 = vector.shape_cast %1108 : vector<8x128xf32> to vector<1x8x128xf32>
    tpu.vector_store %arg7[%c36_447, %c0_448, %c0_449], %1111 {strides = array<i32>} : memref<54x8x128xf32, #tpu.memory_space<vmem>>, vector<1x8x128xf32>,
    %c38_450 = arith.constant 38 : index
    %c0_451 = arith.constant 0 : index
    %c0_452 = arith.constant 0 : index
    %1112 = vector.load %arg7[%c38_450, %c0_451, %c0_452] : memref<54x8x128xf32, #tpu.memory_space<vmem>>, vector<1x8x128xf32>
    %1113 = vector.shape_cast %1112 : vector<1x8x128xf32> to vector<8x128xf32>
    %1114 = arith.mulf %1113, %916 : vector<8x128xf32>
    %c39_453 = arith.constant 39 : index
    %c0_454 = arith.constant 0 : index
    %c0_455 = arith.constant 0 : index
    %1115 = vector.load %arg7[%c39_453, %c0_454, %c0_455] : memref<54x8x128xf32, #tpu.memory_space<vmem>>, vector<1x8x128xf32>
    %1116 = vector.shape_cast %1115 : vector<1x8x128xf32> to vector<8x128xf32>
    %1117 = arith.mulf %1116, %921 : vector<8x128xf32>
    %1118 = arith.addf %1114, %1117 : vector<8x128xf32>
    %c38_456 = arith.constant 38 : index
    %c0_457 = arith.constant 0 : index
    %c0_458 = arith.constant 0 : index
    %1119 = vector.load %arg7[%c38_456, %c0_457, %c0_458] : memref<54x8x128xf32, #tpu.memory_space<vmem>>, vector<1x8x128xf32>
    %1120 = vector.shape_cast %1119 : vector<1x8x128xf32> to vector<8x128xf32>
    %1121 = vector.shape_cast %1118 : vector<8x128xf32> to vector<1x8x128xf32>
    tpu.vector_store %arg7[%c38_456, %c0_457, %c0_458], %1121 {strides = array<i32>} : memref<54x8x128xf32, #tpu.memory_space<vmem>>, vector<1x8x128xf32>,
    %c40_459 = arith.constant 40 : index
    %c0_460 = arith.constant 0 : index
    %c0_461 = arith.constant 0 : index
    %1122 = vector.load %arg7[%c40_459, %c0_460, %c0_461] : memref<54x8x128xf32, #tpu.memory_space<vmem>>, vector<1x8x128xf32>
    %1123 = vector.shape_cast %1122 : vector<1x8x128xf32> to vector<8x128xf32>
    %1124 = arith.mulf %1123, %916 : vector<8x128xf32>
    %c41_462 = arith.constant 41 : index
    %c0_463 = arith.constant 0 : index
    %c0_464 = arith.constant 0 : index
    %1125 = vector.load %arg7[%c41_462, %c0_463, %c0_464] : memref<54x8x128xf32, #tpu.memory_space<vmem>>, vector<1x8x128xf32>
    %1126 = vector.shape_cast %1125 : vector<1x8x128xf32> to vector<8x128xf32>
    %1127 = arith.mulf %1126, %921 : vector<8x128xf32>
    %1128 = arith.addf %1124, %1127 : vector<8x128xf32>
    %c40_465 = arith.constant 40 : index
    %c0_466 = arith.constant 0 : index
    %c0_467 = arith.constant 0 : index
    %1129 = vector.load %arg7[%c40_465, %c0_466, %c0_467] : memref<54x8x128xf32, #tpu.memory_space<vmem>>, vector<1x8x128xf32>
    %1130 = vector.shape_cast %1129 : vector<1x8x128xf32> to vector<8x128xf32>
    %1131 = vector.shape_cast %1128 : vector<8x128xf32> to vector<1x8x128xf32>
    tpu.vector_store %arg7[%c40_465, %c0_466, %c0_467], %1131 {strides = array<i32>} : memref<54x8x128xf32, #tpu.memory_space<vmem>>, vector<1x8x128xf32>,
    %c42_468 = arith.constant 42 : index
    %c0_469 = arith.constant 0 : index
    %c0_470 = arith.constant 0 : index
    %1132 = vector.load %arg7[%c42_468, %c0_469, %c0_470] : memref<54x8x128xf32, #tpu.memory_space<vmem>>, vector<1x8x128xf32>
    %1133 = vector.shape_cast %1132 : vector<1x8x128xf32> to vector<8x128xf32>
    %1134 = arith.mulf %1133, %916 : vector<8x128xf32>
    %c43_471 = arith.constant 43 : index
    %c0_472 = arith.constant 0 : index
    %c0_473 = arith.constant 0 : index
    %1135 = vector.load %arg7[%c43_471, %c0_472, %c0_473] : memref<54x8x128xf32, #tpu.memory_space<vmem>>, vector<1x8x128xf32>
    %1136 = vector.shape_cast %1135 : vector<1x8x128xf32> to vector<8x128xf32>
    %1137 = arith.mulf %1136, %921 : vector<8x128xf32>
    %1138 = arith.addf %1134, %1137 : vector<8x128xf32>
    %c42_474 = arith.constant 42 : index
    %c0_475 = arith.constant 0 : index
    %c0_476 = arith.constant 0 : index
    %1139 = vector.load %arg7[%c42_474, %c0_475, %c0_476] : memref<54x8x128xf32, #tpu.memory_space<vmem>>, vector<1x8x128xf32>
    %1140 = vector.shape_cast %1139 : vector<1x8x128xf32> to vector<8x128xf32>
    %1141 = vector.shape_cast %1138 : vector<8x128xf32> to vector<1x8x128xf32>
    tpu.vector_store %arg7[%c42_474, %c0_475, %c0_476], %1141 {strides = array<i32>} : memref<54x8x128xf32, #tpu.memory_space<vmem>>, vector<1x8x128xf32>,
    %c44_477 = arith.constant 44 : index
    %c0_478 = arith.constant 0 : index
    %c0_479 = arith.constant 0 : index
    %1142 = vector.load %arg7[%c44_477, %c0_478, %c0_479] : memref<54x8x128xf32, #tpu.memory_space<vmem>>, vector<1x8x128xf32>
    %1143 = vector.shape_cast %1142 : vector<1x8x128xf32> to vector<8x128xf32>
    %1144 = arith.mulf %1143, %916 : vector<8x128xf32>
    %c45_480 = arith.constant 45 : index
    %c0_481 = arith.constant 0 : index
    %c0_482 = arith.constant 0 : index
    %1145 = vector.load %arg7[%c45_480, %c0_481, %c0_482] : memref<54x8x128xf32, #tpu.memory_space<vmem>>, vector<1x8x128xf32>
    %1146 = vector.shape_cast %1145 : vector<1x8x128xf32> to vector<8x128xf32>
    %1147 = arith.mulf %1146, %921 : vector<8x128xf32>
    %1148 = arith.addf %1144, %1147 : vector<8x128xf32>
    %c44_483 = arith.constant 44 : index
    %c0_484 = arith.constant 0 : index
    %c0_485 = arith.constant 0 : index
    %1149 = vector.load %arg7[%c44_483, %c0_484, %c0_485] : memref<54x8x128xf32, #tpu.memory_space<vmem>>, vector<1x8x128xf32>
    %1150 = vector.shape_cast %1149 : vector<1x8x128xf32> to vector<8x128xf32>
    %1151 = vector.shape_cast %1148 : vector<8x128xf32> to vector<1x8x128xf32>
    tpu.vector_store %arg7[%c44_483, %c0_484, %c0_485], %1151 {strides = array<i32>} : memref<54x8x128xf32, #tpu.memory_space<vmem>>, vector<1x8x128xf32>,
    %c46_486 = arith.constant 46 : index
    %c0_487 = arith.constant 0 : index
    %c0_488 = arith.constant 0 : index
    %1152 = vector.load %arg7[%c46_486, %c0_487, %c0_488] : memref<54x8x128xf32, #tpu.memory_space<vmem>>, vector<1x8x128xf32>
    %1153 = vector.shape_cast %1152 : vector<1x8x128xf32> to vector<8x128xf32>
    %1154 = arith.mulf %1153, %916 : vector<8x128xf32>
    %c47_489 = arith.constant 47 : index
    %c0_490 = arith.constant 0 : index
    %c0_491 = arith.constant 0 : index
    %1155 = vector.load %arg7[%c47_489, %c0_490, %c0_491] : memref<54x8x128xf32, #tpu.memory_space<vmem>>, vector<1x8x128xf32>
    %1156 = vector.shape_cast %1155 : vector<1x8x128xf32> to vector<8x128xf32>
    %1157 = arith.mulf %1156, %921 : vector<8x128xf32>
    %1158 = arith.addf %1154, %1157 : vector<8x128xf32>
    %c46_492 = arith.constant 46 : index
    %c0_493 = arith.constant 0 : index
    %c0_494 = arith.constant 0 : index
    %1159 = vector.load %arg7[%c46_492, %c0_493, %c0_494] : memref<54x8x128xf32, #tpu.memory_space<vmem>>, vector<1x8x128xf32>
    %1160 = vector.shape_cast %1159 : vector<1x8x128xf32> to vector<8x128xf32>
    %1161 = vector.shape_cast %1158 : vector<8x128xf32> to vector<1x8x128xf32>
    tpu.vector_store %arg7[%c46_492, %c0_493, %c0_494], %1161 {strides = array<i32>} : memref<54x8x128xf32, #tpu.memory_space<vmem>>, vector<1x8x128xf32>,
    %c48_495 = arith.constant 48 : index
    %c0_496 = arith.constant 0 : index
    %c0_497 = arith.constant 0 : index
    %1162 = vector.load %arg7[%c48_495, %c0_496, %c0_497] : memref<54x8x128xf32, #tpu.memory_space<vmem>>, vector<1x8x128xf32>
    %1163 = vector.shape_cast %1162 : vector<1x8x128xf32> to vector<8x128xf32>
    %1164 = arith.mulf %1163, %916 : vector<8x128xf32>
    %c49_498 = arith.constant 49 : index
    %c0_499 = arith.constant 0 : index
    %c0_500 = arith.constant 0 : index
    %1165 = vector.load %arg7[%c49_498, %c0_499, %c0_500] : memref<54x8x128xf32, #tpu.memory_space<vmem>>, vector<1x8x128xf32>
    %1166 = vector.shape_cast %1165 : vector<1x8x128xf32> to vector<8x128xf32>
    %1167 = arith.mulf %1166, %921 : vector<8x128xf32>
    %1168 = arith.addf %1164, %1167 : vector<8x128xf32>
    %c48_501 = arith.constant 48 : index
    %c0_502 = arith.constant 0 : index
    %c0_503 = arith.constant 0 : index
    %1169 = vector.load %arg7[%c48_501, %c0_502, %c0_503] : memref<54x8x128xf32, #tpu.memory_space<vmem>>, vector<1x8x128xf32>
    %1170 = vector.shape_cast %1169 : vector<1x8x128xf32> to vector<8x128xf32>
    %1171 = vector.shape_cast %1168 : vector<8x128xf32> to vector<1x8x128xf32>
    tpu.vector_store %arg7[%c48_501, %c0_502, %c0_503], %1171 {strides = array<i32>} : memref<54x8x128xf32, #tpu.memory_space<vmem>>, vector<1x8x128xf32>,
    %c50_504 = arith.constant 50 : index
    %c0_505 = arith.constant 0 : index
    %c0_506 = arith.constant 0 : index
    %1172 = vector.load %arg7[%c50_504, %c0_505, %c0_506] : memref<54x8x128xf32, #tpu.memory_space<vmem>>, vector<1x8x128xf32>
    %1173 = vector.shape_cast %1172 : vector<1x8x128xf32> to vector<8x128xf32>
    %1174 = arith.mulf %1173, %916 : vector<8x128xf32>
    %c51_507 = arith.constant 51 : index
    %c0_508 = arith.constant 0 : index
    %c0_509 = arith.constant 0 : index
    %1175 = vector.load %arg7[%c51_507, %c0_508, %c0_509] : memref<54x8x128xf32, #tpu.memory_space<vmem>>, vector<1x8x128xf32>
    %1176 = vector.shape_cast %1175 : vector<1x8x128xf32> to vector<8x128xf32>
    %1177 = arith.mulf %1176, %921 : vector<8x128xf32>
    %1178 = arith.addf %1174, %1177 : vector<8x128xf32>
    %c50_510 = arith.constant 50 : index
    %c0_511 = arith.constant 0 : index
    %c0_512 = arith.constant 0 : index
    %1179 = vector.load %arg7[%c50_510, %c0_511, %c0_512] : memref<54x8x128xf32, #tpu.memory_space<vmem>>, vector<1x8x128xf32>
    %1180 = vector.shape_cast %1179 : vector<1x8x128xf32> to vector<8x128xf32>
    %1181 = vector.shape_cast %1178 : vector<8x128xf32> to vector<1x8x128xf32>
    tpu.vector_store %arg7[%c50_510, %c0_511, %c0_512], %1181 {strides = array<i32>} : memref<54x8x128xf32, #tpu.memory_space<vmem>>, vector<1x8x128xf32>,
    %c52_513 = arith.constant 52 : index
    %c0_514 = arith.constant 0 : index
    %c0_515 = arith.constant 0 : index
    %1182 = vector.load %arg7[%c52_513, %c0_514, %c0_515] : memref<54x8x128xf32, #tpu.memory_space<vmem>>, vector<1x8x128xf32>
    %1183 = vector.shape_cast %1182 : vector<1x8x128xf32> to vector<8x128xf32>
    %1184 = arith.mulf %1183, %916 : vector<8x128xf32>
    %c53_516 = arith.constant 53 : index
    %c0_517 = arith.constant 0 : index
    %c0_518 = arith.constant 0 : index
    %1185 = vector.load %arg7[%c53_516, %c0_517, %c0_518] : memref<54x8x128xf32, #tpu.memory_space<vmem>>, vector<1x8x128xf32>
    %1186 = vector.shape_cast %1185 : vector<1x8x128xf32> to vector<8x128xf32>
    %1187 = arith.mulf %1186, %921 : vector<8x128xf32>
    %1188 = arith.addf %1184, %1187 : vector<8x128xf32>
    %c52_519 = arith.constant 52 : index
    %c0_520 = arith.constant 0 : index
    %c0_521 = arith.constant 0 : index
    %1189 = vector.load %arg7[%c52_519, %c0_520, %c0_521] : memref<54x8x128xf32, #tpu.memory_space<vmem>>, vector<1x8x128xf32>
    %1190 = vector.shape_cast %1189 : vector<1x8x128xf32> to vector<8x128xf32>
    %1191 = vector.shape_cast %1188 : vector<8x128xf32> to vector<1x8x128xf32>
    tpu.vector_store %arg7[%c52_519, %c0_520, %c0_521], %1191 {strides = array<i32>} : memref<54x8x128xf32, #tpu.memory_space<vmem>>, vector<1x8x128xf32>,
    %c0_522 = arith.constant 0 : index
    %c0_523 = arith.constant 0 : index
    %c0_524 = arith.constant 0 : index
    %c0_525 = arith.constant 0 : index
    %1192 = vector.load %arg2[%c0_522, %c0_523, %c0_524, %c0_525] : memref<1x2x8x128xf32, #tpu.memory_space<vmem>>, vector<1x1x8x128xf32>
    %1193 = vector.shape_cast %1192 : vector<1x1x8x128xf32> to vector<8x128xf32>
    %c0_526 = arith.constant 0 : index
    %c1_527 = arith.constant 1 : index
    %c0_528 = arith.constant 0 : index
    %c0_529 = arith.constant 0 : index
    %1194 = vector.load %arg2[%c0_526, %c1_527, %c0_528, %c0_529] : memref<1x2x8x128xf32, #tpu.memory_space<vmem>>, vector<1x1x8x128xf32>
    %1195 = vector.shape_cast %1194 : vector<1x1x8x128xf32> to vector<8x128xf32>
    %cst_530 = arith.constant 1.000000e+00 : f32
    %1196 = vector.broadcast %cst_530 : f32 to vector<1x1xf32>
    %cst_531 = arith.constant 2.000000e-01 : f32
    %1197 = vector.broadcast %cst_531 : f32 to vector<1x1xf32>
    %1198 = arith.mulf %1196, %1197 : vector<1x1xf32>
    %cst_532 = arith.constant 0.000000e+00 : f32
    %1199 = vector.broadcast %cst_532 : f32 to vector<8x128xf32>
    %cst_533 = arith.constant 0.000000e+00 : f32
    %1200 = vector.broadcast %cst_533 : f32 to vector<8x128xf32>
    %c1_i32_534 = arith.constant 1 : i32
    %1201 = tpu.dynamic_rotate %1193 by %c1_i32_534 dim 0 : vector<8x128xf32>, i32 -> vector<8x128xf32>
    %c1_i32_535 = arith.constant 1 : i32
    %1202 = tpu.dynamic_rotate %1195 by %c1_i32_535 dim 0 : vector<8x128xf32>, i32 -> vector<8x128xf32>
    %c17_i32_536 = arith.constant 17 : i32
    %1203 = tpu.dynamic_rotate %1201 by %c17_i32_536 dim 1 : vector<8x128xf32>, i32 -> vector<8x128xf32>
    %c17_i32_537 = arith.constant 17 : i32
    %1204 = tpu.dynamic_rotate %1202 by %c17_i32_537 dim 1 : vector<8x128xf32>, i32 -> vector<8x128xf32>
    %c0_538 = arith.constant 0 : index
    %c0_539 = arith.constant 0 : index
    %c0_540 = arith.constant 0 : index
    %1205 = vector.load %arg7[%c0_538, %c0_539, %c0_540] : memref<54x8x128xf32, #tpu.memory_space<vmem>>, vector<1x8x128xf32>
    %1206 = vector.shape_cast %1205 : vector<1x8x128xf32> to vector<8x128xf32>
    %1207 = arith.mulf %1206, %1203 : vector<8x128xf32>
    %1208 = arith.addf %1199, %1207 : vector<8x128xf32>
    %1209 = arith.mulf %1206, %1204 : vector<8x128xf32>
    %1210 = arith.addf %1200, %1209 : vector<8x128xf32>
    %c16_i32_541 = arith.constant 16 : i32
    %1211 = tpu.dynamic_rotate %1201 by %c16_i32_541 dim 1 : vector<8x128xf32>, i32 -> vector<8x128xf32>
    %c16_i32_542 = arith.constant 16 : i32
    %1212 = tpu.dynamic_rotate %1202 by %c16_i32_542 dim 1 : vector<8x128xf32>, i32 -> vector<8x128xf32>
    %c2_543 = arith.constant 2 : index
    %c0_544 = arith.constant 0 : index
    %c0_545 = arith.constant 0 : index
    %1213 = vector.load %arg7[%c2_543, %c0_544, %c0_545] : memref<54x8x128xf32, #tpu.memory_space<vmem>>, vector<1x8x128xf32>
    %1214 = vector.shape_cast %1213 : vector<1x8x128xf32> to vector<8x128xf32>
    %1215 = arith.mulf %1214, %1211 : vector<8x128xf32>
    %1216 = arith.addf %1208, %1215 : vector<8x128xf32>
    %1217 = arith.mulf %1214, %1212 : vector<8x128xf32>
    %1218 = arith.addf %1210, %1217 : vector<8x128xf32>
    %c15_i32_546 = arith.constant 15 : i32
    %1219 = tpu.dynamic_rotate %1201 by %c15_i32_546 dim 1 : vector<8x128xf32>, i32 -> vector<8x128xf32>
    %c15_i32_547 = arith.constant 15 : i32
    %1220 = tpu.dynamic_rotate %1202 by %c15_i32_547 dim 1 : vector<8x128xf32>, i32 -> vector<8x128xf32>
    %c4_548 = arith.constant 4 : index
    %c0_549 = arith.constant 0 : index
    %c0_550 = arith.constant 0 : index
    %1221 = vector.load %arg7[%c4_548, %c0_549, %c0_550] : memref<54x8x128xf32, #tpu.memory_space<vmem>>, vector<1x8x128xf32>
    %1222 = vector.shape_cast %1221 : vector<1x8x128xf32> to vector<8x128xf32>
    %1223 = arith.mulf %1222, %1219 : vector<8x128xf32>
    %1224 = arith.addf %1216, %1223 : vector<8x128xf32>
    %1225 = arith.mulf %1222, %1220 : vector<8x128xf32>
    %1226 = arith.addf %1218, %1225 : vector<8x128xf32>
    %c1_i32_551 = arith.constant 1 : i32
    %1227 = tpu.dynamic_rotate %1201 by %c1_i32_551 dim 1 : vector<8x128xf32>, i32 -> vector<8x128xf32>
    %c1_i32_552 = arith.constant 1 : i32
    %1228 = tpu.dynamic_rotate %1202 by %c1_i32_552 dim 1 : vector<8x128xf32>, i32 -> vector<8x128xf32>
    %c6_553 = arith.constant 6 : index
    %c0_554 = arith.constant 0 : index
    %c0_555 = arith.constant 0 : index
    %1229 = vector.load %arg7[%c6_553, %c0_554, %c0_555] : memref<54x8x128xf32, #tpu.memory_space<vmem>>, vector<1x8x128xf32>
    %1230 = vector.shape_cast %1229 : vector<1x8x128xf32> to vector<8x128xf32>
    %1231 = arith.mulf %1230, %1227 : vector<8x128xf32>
    %1232 = arith.addf %1224, %1231 : vector<8x128xf32>
    %1233 = arith.mulf %1230, %1228 : vector<8x128xf32>
    %1234 = arith.addf %1226, %1233 : vector<8x128xf32>
    %c8_556 = arith.constant 8 : index
    %c0_557 = arith.constant 0 : index
    %c0_558 = arith.constant 0 : index
    %1235 = vector.load %arg7[%c8_556, %c0_557, %c0_558] : memref<54x8x128xf32, #tpu.memory_space<vmem>>, vector<1x8x128xf32>
    %1236 = vector.shape_cast %1235 : vector<1x8x128xf32> to vector<8x128xf32>
    %1237 = arith.mulf %1236, %1201 : vector<8x128xf32>
    %1238 = arith.addf %1232, %1237 : vector<8x128xf32>
    %1239 = arith.mulf %1236, %1202 : vector<8x128xf32>
    %1240 = arith.addf %1234, %1239 : vector<8x128xf32>
    %c127_i32_559 = arith.constant 127 : i32
    %1241 = tpu.dynamic_rotate %1201 by %c127_i32_559 dim 1 : vector<8x128xf32>, i32 -> vector<8x128xf32>
    %c127_i32_560 = arith.constant 127 : i32
    %1242 = tpu.dynamic_rotate %1202 by %c127_i32_560 dim 1 : vector<8x128xf32>, i32 -> vector<8x128xf32>
    %c10_561 = arith.constant 10 : index
    %c0_562 = arith.constant 0 : index
    %c0_563 = arith.constant 0 : index
    %1243 = vector.load %arg7[%c10_561, %c0_562, %c0_563] : memref<54x8x128xf32, #tpu.memory_space<vmem>>, vector<1x8x128xf32>
    %1244 = vector.shape_cast %1243 : vector<1x8x128xf32> to vector<8x128xf32>
    %1245 = arith.mulf %1244, %1241 : vector<8x128xf32>
    %1246 = arith.addf %1238, %1245 : vector<8x128xf32>
    %1247 = arith.mulf %1244, %1242 : vector<8x128xf32>
    %1248 = arith.addf %1240, %1247 : vector<8x128xf32>
    %c113_i32_564 = arith.constant 113 : i32
    %1249 = tpu.dynamic_rotate %1201 by %c113_i32_564 dim 1 : vector<8x128xf32>, i32 -> vector<8x128xf32>
    %c113_i32_565 = arith.constant 113 : i32
    %1250 = tpu.dynamic_rotate %1202 by %c113_i32_565 dim 1 : vector<8x128xf32>, i32 -> vector<8x128xf32>
    %c12_566 = arith.constant 12 : index
    %c0_567 = arith.constant 0 : index
    %c0_568 = arith.constant 0 : index
    %1251 = vector.load %arg7[%c12_566, %c0_567, %c0_568] : memref<54x8x128xf32, #tpu.memory_space<vmem>>, vector<1x8x128xf32>
    %1252 = vector.shape_cast %1251 : vector<1x8x128xf32> to vector<8x128xf32>
    %1253 = arith.mulf %1252, %1249 : vector<8x128xf32>
    %1254 = arith.addf %1246, %1253 : vector<8x128xf32>
    %1255 = arith.mulf %1252, %1250 : vector<8x128xf32>
    %1256 = arith.addf %1248, %1255 : vector<8x128xf32>
    %c112_i32_569 = arith.constant 112 : i32
    %1257 = tpu.dynamic_rotate %1201 by %c112_i32_569 dim 1 : vector<8x128xf32>, i32 -> vector<8x128xf32>
    %c112_i32_570 = arith.constant 112 : i32
    %1258 = tpu.dynamic_rotate %1202 by %c112_i32_570 dim 1 : vector<8x128xf32>, i32 -> vector<8x128xf32>
    %c14_571 = arith.constant 14 : index
    %c0_572 = arith.constant 0 : index
    %c0_573 = arith.constant 0 : index
    %1259 = vector.load %arg7[%c14_571, %c0_572, %c0_573] : memref<54x8x128xf32, #tpu.memory_space<vmem>>, vector<1x8x128xf32>
    %1260 = vector.shape_cast %1259 : vector<1x8x128xf32> to vector<8x128xf32>
    %1261 = arith.mulf %1260, %1257 : vector<8x128xf32>
    %1262 = arith.addf %1254, %1261 : vector<8x128xf32>
    %1263 = arith.mulf %1260, %1258 : vector<8x128xf32>
    %1264 = arith.addf %1256, %1263 : vector<8x128xf32>
    %c111_i32_574 = arith.constant 111 : i32
    %1265 = tpu.dynamic_rotate %1201 by %c111_i32_574 dim 1 : vector<8x128xf32>, i32 -> vector<8x128xf32>
    %c111_i32_575 = arith.constant 111 : i32
    %1266 = tpu.dynamic_rotate %1202 by %c111_i32_575 dim 1 : vector<8x128xf32>, i32 -> vector<8x128xf32>
    %c16_576 = arith.constant 16 : index
    %c0_577 = arith.constant 0 : index
    %c0_578 = arith.constant 0 : index
    %1267 = vector.load %arg7[%c16_576, %c0_577, %c0_578] : memref<54x8x128xf32, #tpu.memory_space<vmem>>, vector<1x8x128xf32>
    %1268 = vector.shape_cast %1267 : vector<1x8x128xf32> to vector<8x128xf32>
    %1269 = arith.mulf %1268, %1265 : vector<8x128xf32>
    %1270 = arith.addf %1262, %1269 : vector<8x128xf32>
    %1271 = arith.mulf %1268, %1266 : vector<8x128xf32>
    %1272 = arith.addf %1264, %1271 : vector<8x128xf32>
    %c17_i32_579 = arith.constant 17 : i32
    %1273 = tpu.dynamic_rotate %1193 by %c17_i32_579 dim 1 : vector<8x128xf32>, i32 -> vector<8x128xf32>
    %c17_i32_580 = arith.constant 17 : i32
    %1274 = tpu.dynamic_rotate %1195 by %c17_i32_580 dim 1 : vector<8x128xf32>, i32 -> vector<8x128xf32>
    %c18_581 = arith.constant 18 : index
    %c0_582 = arith.constant 0 : index
    %c0_583 = arith.constant 0 : index
    %1275 = vector.load %arg7[%c18_581, %c0_582, %c0_583] : memref<54x8x128xf32, #tpu.memory_space<vmem>>, vector<1x8x128xf32>
    %1276 = vector.shape_cast %1275 : vector<1x8x128xf32> to vector<8x128xf32>
    %1277 = arith.mulf %1276, %1273 : vector<8x128xf32>
    %1278 = arith.addf %1270, %1277 : vector<8x128xf32>
    %1279 = arith.mulf %1276, %1274 : vector<8x128xf32>
    %1280 = arith.addf %1272, %1279 : vector<8x128xf32>
    %c16_i32_584 = arith.constant 16 : i32
    %1281 = tpu.dynamic_rotate %1193 by %c16_i32_584 dim 1 : vector<8x128xf32>, i32 -> vector<8x128xf32>
    %c16_i32_585 = arith.constant 16 : i32
    %1282 = tpu.dynamic_rotate %1195 by %c16_i32_585 dim 1 : vector<8x128xf32>, i32 -> vector<8x128xf32>
    %c20_586 = arith.constant 20 : index
    %c0_587 = arith.constant 0 : index
    %c0_588 = arith.constant 0 : index
    %1283 = vector.load %arg7[%c20_586, %c0_587, %c0_588] : memref<54x8x128xf32, #tpu.memory_space<vmem>>, vector<1x8x128xf32>
    %1284 = vector.shape_cast %1283 : vector<1x8x128xf32> to vector<8x128xf32>
    %1285 = arith.mulf %1284, %1281 : vector<8x128xf32>
    %1286 = arith.addf %1278, %1285 : vector<8x128xf32>
    %1287 = arith.mulf %1284, %1282 : vector<8x128xf32>
    %1288 = arith.addf %1280, %1287 : vector<8x128xf32>
    %c15_i32_589 = arith.constant 15 : i32
    %1289 = tpu.dynamic_rotate %1193 by %c15_i32_589 dim 1 : vector<8x128xf32>, i32 -> vector<8x128xf32>
    %c15_i32_590 = arith.constant 15 : i32
    %1290 = tpu.dynamic_rotate %1195 by %c15_i32_590 dim 1 : vector<8x128xf32>, i32 -> vector<8x128xf32>
    %c22_591 = arith.constant 22 : index
    %c0_592 = arith.constant 0 : index
    %c0_593 = arith.constant 0 : index
    %1291 = vector.load %arg7[%c22_591, %c0_592, %c0_593] : memref<54x8x128xf32, #tpu.memory_space<vmem>>, vector<1x8x128xf32>
    %1292 = vector.shape_cast %1291 : vector<1x8x128xf32> to vector<8x128xf32>
    %1293 = arith.mulf %1292, %1289 : vector<8x128xf32>
    %1294 = arith.addf %1286, %1293 : vector<8x128xf32>
    %1295 = arith.mulf %1292, %1290 : vector<8x128xf32>
    %1296 = arith.addf %1288, %1295 : vector<8x128xf32>
    %c1_i32_594 = arith.constant 1 : i32
    %1297 = tpu.dynamic_rotate %1193 by %c1_i32_594 dim 1 : vector<8x128xf32>, i32 -> vector<8x128xf32>
    %c1_i32_595 = arith.constant 1 : i32
    %1298 = tpu.dynamic_rotate %1195 by %c1_i32_595 dim 1 : vector<8x128xf32>, i32 -> vector<8x128xf32>
    %c24_596 = arith.constant 24 : index
    %c0_597 = arith.constant 0 : index
    %c0_598 = arith.constant 0 : index
    %1299 = vector.load %arg7[%c24_596, %c0_597, %c0_598] : memref<54x8x128xf32, #tpu.memory_space<vmem>>, vector<1x8x128xf32>
    %1300 = vector.shape_cast %1299 : vector<1x8x128xf32> to vector<8x128xf32>
    %1301 = arith.mulf %1300, %1297 : vector<8x128xf32>
    %1302 = arith.addf %1294, %1301 : vector<8x128xf32>
    %1303 = arith.mulf %1300, %1298 : vector<8x128xf32>
    %1304 = arith.addf %1296, %1303 : vector<8x128xf32>
    %c26_599 = arith.constant 26 : index
    %c0_600 = arith.constant 0 : index
    %c0_601 = arith.constant 0 : index
    %1305 = vector.load %arg7[%c26_599, %c0_600, %c0_601] : memref<54x8x128xf32, #tpu.memory_space<vmem>>, vector<1x8x128xf32>
    %1306 = vector.shape_cast %1305 : vector<1x8x128xf32> to vector<8x128xf32>
    %1307 = arith.mulf %1306, %1193 : vector<8x128xf32>
    %1308 = arith.addf %1302, %1307 : vector<8x128xf32>
    %1309 = arith.mulf %1306, %1195 : vector<8x128xf32>
    %1310 = arith.addf %1304, %1309 : vector<8x128xf32>
    %c127_i32_602 = arith.constant 127 : i32
    %1311 = tpu.dynamic_rotate %1193 by %c127_i32_602 dim 1 : vector<8x128xf32>, i32 -> vector<8x128xf32>
    %c127_i32_603 = arith.constant 127 : i32
    %1312 = tpu.dynamic_rotate %1195 by %c127_i32_603 dim 1 : vector<8x128xf32>, i32 -> vector<8x128xf32>
    %c28_604 = arith.constant 28 : index
    %c0_605 = arith.constant 0 : index
    %c0_606 = arith.constant 0 : index
    %1313 = vector.load %arg7[%c28_604, %c0_605, %c0_606] : memref<54x8x128xf32, #tpu.memory_space<vmem>>, vector<1x8x128xf32>
    %1314 = vector.shape_cast %1313 : vector<1x8x128xf32> to vector<8x128xf32>
    %1315 = arith.mulf %1314, %1311 : vector<8x128xf32>
    %1316 = arith.addf %1308, %1315 : vector<8x128xf32>
    %1317 = arith.mulf %1314, %1312 : vector<8x128xf32>
    %1318 = arith.addf %1310, %1317 : vector<8x128xf32>
    %c113_i32_607 = arith.constant 113 : i32
    %1319 = tpu.dynamic_rotate %1193 by %c113_i32_607 dim 1 : vector<8x128xf32>, i32 -> vector<8x128xf32>
    %c113_i32_608 = arith.constant 113 : i32
    %1320 = tpu.dynamic_rotate %1195 by %c113_i32_608 dim 1 : vector<8x128xf32>, i32 -> vector<8x128xf32>
    %c30_609 = arith.constant 30 : index
    %c0_610 = arith.constant 0 : index
    %c0_611 = arith.constant 0 : index
    %1321 = vector.load %arg7[%c30_609, %c0_610, %c0_611] : memref<54x8x128xf32, #tpu.memory_space<vmem>>, vector<1x8x128xf32>
    %1322 = vector.shape_cast %1321 : vector<1x8x128xf32> to vector<8x128xf32>
    %1323 = arith.mulf %1322, %1319 : vector<8x128xf32>
    %1324 = arith.addf %1316, %1323 : vector<8x128xf32>
    %1325 = arith.mulf %1322, %1320 : vector<8x128xf32>
    %1326 = arith.addf %1318, %1325 : vector<8x128xf32>
    %c112_i32_612 = arith.constant 112 : i32
    %1327 = tpu.dynamic_rotate %1193 by %c112_i32_612 dim 1 : vector<8x128xf32>, i32 -> vector<8x128xf32>
    %c112_i32_613 = arith.constant 112 : i32
    %1328 = tpu.dynamic_rotate %1195 by %c112_i32_613 dim 1 : vector<8x128xf32>, i32 -> vector<8x128xf32>
    %c32_614 = arith.constant 32 : index
    %c0_615 = arith.constant 0 : index
    %c0_616 = arith.constant 0 : index
    %1329 = vector.load %arg7[%c32_614, %c0_615, %c0_616] : memref<54x8x128xf32, #tpu.memory_space<vmem>>, vector<1x8x128xf32>
    %1330 = vector.shape_cast %1329 : vector<1x8x128xf32> to vector<8x128xf32>
    %1331 = arith.mulf %1330, %1327 : vector<8x128xf32>
    %1332 = arith.addf %1324, %1331 : vector<8x128xf32>
    %1333 = arith.mulf %1330, %1328 : vector<8x128xf32>
    %1334 = arith.addf %1326, %1333 : vector<8x128xf32>
    %c111_i32_617 = arith.constant 111 : i32
    %1335 = tpu.dynamic_rotate %1193 by %c111_i32_617 dim 1 : vector<8x128xf32>, i32 -> vector<8x128xf32>
    %c111_i32_618 = arith.constant 111 : i32
    %1336 = tpu.dynamic_rotate %1195 by %c111_i32_618 dim 1 : vector<8x128xf32>, i32 -> vector<8x128xf32>
    %c34_619 = arith.constant 34 : index
    %c0_620 = arith.constant 0 : index
    %c0_621 = arith.constant 0 : index
    %1337 = vector.load %arg7[%c34_619, %c0_620, %c0_621] : memref<54x8x128xf32, #tpu.memory_space<vmem>>, vector<1x8x128xf32>
    %1338 = vector.shape_cast %1337 : vector<1x8x128xf32> to vector<8x128xf32>
    %1339 = arith.mulf %1338, %1335 : vector<8x128xf32>
    %1340 = arith.addf %1332, %1339 : vector<8x128xf32>
    %1341 = arith.mulf %1338, %1336 : vector<8x128xf32>
    %1342 = arith.addf %1334, %1341 : vector<8x128xf32>
    %c7_i32_622 = arith.constant 7 : i32
    %1343 = tpu.dynamic_rotate %1193 by %c7_i32_622 dim 0 : vector<8x128xf32>, i32 -> vector<8x128xf32>
    %c7_i32_623 = arith.constant 7 : i32
    %1344 = tpu.dynamic_rotate %1195 by %c7_i32_623 dim 0 : vector<8x128xf32>, i32 -> vector<8x128xf32>
    %c17_i32_624 = arith.constant 17 : i32
    %1345 = tpu.dynamic_rotate %1343 by %c17_i32_624 dim 1 : vector<8x128xf32>, i32 -> vector<8x128xf32>
    %c17_i32_625 = arith.constant 17 : i32
    %1346 = tpu.dynamic_rotate %1344 by %c17_i32_625 dim 1 : vector<8x128xf32>, i32 -> vector<8x128xf32>
    %c36_626 = arith.constant 36 : index
    %c0_627 = arith.constant 0 : index
    %c0_628 = arith.constant 0 : index
    %1347 = vector.load %arg7[%c36_626, %c0_627, %c0_628] : memref<54x8x128xf32, #tpu.memory_space<vmem>>, vector<1x8x128xf32>
    %1348 = vector.shape_cast %1347 : vector<1x8x128xf32> to vector<8x128xf32>
    %1349 = arith.mulf %1348, %1345 : vector<8x128xf32>
    %1350 = arith.addf %1340, %1349 : vector<8x128xf32>
    %1351 = arith.mulf %1348, %1346 : vector<8x128xf32>
    %1352 = arith.addf %1342, %1351 : vector<8x128xf32>
    %c16_i32_629 = arith.constant 16 : i32
    %1353 = tpu.dynamic_rotate %1343 by %c16_i32_629 dim 1 : vector<8x128xf32>, i32 -> vector<8x128xf32>
    %c16_i32_630 = arith.constant 16 : i32
    %1354 = tpu.dynamic_rotate %1344 by %c16_i32_630 dim 1 : vector<8x128xf32>, i32 -> vector<8x128xf32>
    %c38_631 = arith.constant 38 : index
    %c0_632 = arith.constant 0 : index
    %c0_633 = arith.constant 0 : index
    %1355 = vector.load %arg7[%c38_631, %c0_632, %c0_633] : memref<54x8x128xf32, #tpu.memory_space<vmem>>, vector<1x8x128xf32>
    %1356 = vector.shape_cast %1355 : vector<1x8x128xf32> to vector<8x128xf32>
    %1357 = arith.mulf %1356, %1353 : vector<8x128xf32>
    %1358 = arith.addf %1350, %1357 : vector<8x128xf32>
    %1359 = arith.mulf %1356, %1354 : vector<8x128xf32>
    %1360 = arith.addf %1352, %1359 : vector<8x128xf32>
    %c15_i32_634 = arith.constant 15 : i32
    %1361 = tpu.dynamic_rotate %1343 by %c15_i32_634 dim 1 : vector<8x128xf32>, i32 -> vector<8x128xf32>
    %c15_i32_635 = arith.constant 15 : i32
    %1362 = tpu.dynamic_rotate %1344 by %c15_i32_635 dim 1 : vector<8x128xf32>, i32 -> vector<8x128xf32>
    %c40_636 = arith.constant 40 : index
    %c0_637 = arith.constant 0 : index
    %c0_638 = arith.constant 0 : index
    %1363 = vector.load %arg7[%c40_636, %c0_637, %c0_638] : memref<54x8x128xf32, #tpu.memory_space<vmem>>, vector<1x8x128xf32>
    %1364 = vector.shape_cast %1363 : vector<1x8x128xf32> to vector<8x128xf32>
    %1365 = arith.mulf %1364, %1361 : vector<8x128xf32>
    %1366 = arith.addf %1358, %1365 : vector<8x128xf32>
    %1367 = arith.mulf %1364, %1362 : vector<8x128xf32>
    %1368 = arith.addf %1360, %1367 : vector<8x128xf32>
    %c1_i32_639 = arith.constant 1 : i32
    %1369 = tpu.dynamic_rotate %1343 by %c1_i32_639 dim 1 : vector<8x128xf32>, i32 -> vector<8x128xf32>
    %c1_i32_640 = arith.constant 1 : i32
    %1370 = tpu.dynamic_rotate %1344 by %c1_i32_640 dim 1 : vector<8x128xf32>, i32 -> vector<8x128xf32>
    %c42_641 = arith.constant 42 : index
    %c0_642 = arith.constant 0 : index
    %c0_643 = arith.constant 0 : index
    %1371 = vector.load %arg7[%c42_641, %c0_642, %c0_643] : memref<54x8x128xf32, #tpu.memory_space<vmem>>, vector<1x8x128xf32>
    %1372 = vector.shape_cast %1371 : vector<1x8x128xf32> to vector<8x128xf32>
    %1373 = arith.mulf %1372, %1369 : vector<8x128xf32>
    %1374 = arith.addf %1366, %1373 : vector<8x128xf32>
    %1375 = arith.mulf %1372, %1370 : vector<8x128xf32>
    %1376 = arith.addf %1368, %1375 : vector<8x128xf32>
    %c44_644 = arith.constant 44 : index
    %c0_645 = arith.constant 0 : index
    %c0_646 = arith.constant 0 : index
    %1377 = vector.load %arg7[%c44_644, %c0_645, %c0_646] : memref<54x8x128xf32, #tpu.memory_space<vmem>>, vector<1x8x128xf32>
    %1378 = vector.shape_cast %1377 : vector<1x8x128xf32> to vector<8x128xf32>
    %1379 = arith.mulf %1378, %1343 : vector<8x128xf32>
    %1380 = arith.addf %1374, %1379 : vector<8x128xf32>
    %1381 = arith.mulf %1378, %1344 : vector<8x128xf32>
    %1382 = arith.addf %1376, %1381 : vector<8x128xf32>
    %c127_i32_647 = arith.constant 127 : i32
    %1383 = tpu.dynamic_rotate %1343 by %c127_i32_647 dim 1 : vector<8x128xf32>, i32 -> vector<8x128xf32>
    %c127_i32_648 = arith.constant 127 : i32
    %1384 = tpu.dynamic_rotate %1344 by %c127_i32_648 dim 1 : vector<8x128xf32>, i32 -> vector<8x128xf32>
    %c46_649 = arith.constant 46 : index
    %c0_650 = arith.constant 0 : index
    %c0_651 = arith.constant 0 : index
    %1385 = vector.load %arg7[%c46_649, %c0_650, %c0_651] : memref<54x8x128xf32, #tpu.memory_space<vmem>>, vector<1x8x128xf32>
    %1386 = vector.shape_cast %1385 : vector<1x8x128xf32> to vector<8x128xf32>
    %1387 = arith.mulf %1386, %1383 : vector<8x128xf32>
    %1388 = arith.addf %1380, %1387 : vector<8x128xf32>
    %1389 = arith.mulf %1386, %1384 : vector<8x128xf32>
    %1390 = arith.addf %1382, %1389 : vector<8x128xf32>
    %c113_i32_652 = arith.constant 113 : i32
    %1391 = tpu.dynamic_rotate %1343 by %c113_i32_652 dim 1 : vector<8x128xf32>, i32 -> vector<8x128xf32>
    %c113_i32_653 = arith.constant 113 : i32
    %1392 = tpu.dynamic_rotate %1344 by %c113_i32_653 dim 1 : vector<8x128xf32>, i32 -> vector<8x128xf32>
    %c48_654 = arith.constant 48 : index
    %c0_655 = arith.constant 0 : index
    %c0_656 = arith.constant 0 : index
    %1393 = vector.load %arg7[%c48_654, %c0_655, %c0_656] : memref<54x8x128xf32, #tpu.memory_space<vmem>>, vector<1x8x128xf32>
    %1394 = vector.shape_cast %1393 : vector<1x8x128xf32> to vector<8x128xf32>
    %1395 = arith.mulf %1394, %1391 : vector<8x128xf32>
    %1396 = arith.addf %1388, %1395 : vector<8x128xf32>
    %1397 = arith.mulf %1394, %1392 : vector<8x128xf32>
    %1398 = arith.addf %1390, %1397 : vector<8x128xf32>
    %c112_i32_657 = arith.constant 112 : i32
    %1399 = tpu.dynamic_rotate %1343 by %c112_i32_657 dim 1 : vector<8x128xf32>, i32 -> vector<8x128xf32>
    %c112_i32_658 = arith.constant 112 : i32
    %1400 = tpu.dynamic_rotate %1344 by %c112_i32_658 dim 1 : vector<8x128xf32>, i32 -> vector<8x128xf32>
    %c50_659 = arith.constant 50 : index
    %c0_660 = arith.constant 0 : index
    %c0_661 = arith.constant 0 : index
    %1401 = vector.load %arg7[%c50_659, %c0_660, %c0_661] : memref<54x8x128xf32, #tpu.memory_space<vmem>>, vector<1x8x128xf32>
    %1402 = vector.shape_cast %1401 : vector<1x8x128xf32> to vector<8x128xf32>
    %1403 = arith.mulf %1402, %1399 : vector<8x128xf32>
    %1404 = arith.addf %1396, %1403 : vector<8x128xf32>
    %1405 = arith.mulf %1402, %1400 : vector<8x128xf32>
    %1406 = arith.addf %1398, %1405 : vector<8x128xf32>
    %c111_i32_662 = arith.constant 111 : i32
    %1407 = tpu.dynamic_rotate %1343 by %c111_i32_662 dim 1 : vector<8x128xf32>, i32 -> vector<8x128xf32>
    %c111_i32_663 = arith.constant 111 : i32
    %1408 = tpu.dynamic_rotate %1344 by %c111_i32_663 dim 1 : vector<8x128xf32>, i32 -> vector<8x128xf32>
    %c52_664 = arith.constant 52 : index
    %c0_665 = arith.constant 0 : index
    %c0_666 = arith.constant 0 : index
    %1409 = vector.load %arg7[%c52_664, %c0_665, %c0_666] : memref<54x8x128xf32, #tpu.memory_space<vmem>>, vector<1x8x128xf32>
    %1410 = vector.shape_cast %1409 : vector<1x8x128xf32> to vector<8x128xf32>
    %1411 = arith.mulf %1410, %1407 : vector<8x128xf32>
    %1412 = arith.addf %1404, %1411 : vector<8x128xf32>
    %1413 = arith.mulf %1410, %1408 : vector<8x128xf32>
    %1414 = arith.addf %1406, %1413 : vector<8x128xf32>
    %1415 = arith.subf %1412, %1193 : vector<8x128xf32>
    %1416 = vector.broadcast %1198 : vector<1x1xf32> to vector<8x128xf32>
    %1417 = arith.mulf %1416, %1415 : vector<8x128xf32>
    %1418 = arith.addf %1193, %1417 : vector<8x128xf32>
    %1419 = arith.subf %1418, %1193 : vector<8x128xf32>
    %1420 = math.absf %1419 : vector<8x128xf32>
    %1421 = vector.shape_cast %1420 : vector<8x128xf32> to vector<1x8x128xf32>
    %cst_667 = arith.constant dense<0.000000e+00> : vector<1xf32>
    %1422 = vector.multi_reduction <add>, %1421, %cst_667 [1, 2] : vector<1x8x128xf32> to vector<1xf32>
    %1423 = vector.shape_cast %1422 : vector<1xf32> to vector<1x1x1xf32>
    %1424 = vector.extract %1423[0, 0, 0] : f32 from vector<1x1x1xf32>
    %1425 = vector.broadcast %1424 : f32 to vector<1x1xf32>
    %1426 = arith.subf %1414, %1195 : vector<8x128xf32>
    %1427 = vector.broadcast %1198 : vector<1x1xf32> to vector<8x128xf32>
    %1428 = arith.mulf %1427, %1426 : vector<8x128xf32>
    %1429 = arith.addf %1195, %1428 : vector<8x128xf32>
    %1430 = arith.subf %1429, %1195 : vector<8x128xf32>
    %1431 = math.absf %1430 : vector<8x128xf32>
    %1432 = vector.shape_cast %1431 : vector<8x128xf32> to vector<1x8x128xf32>
    %cst_668 = arith.constant dense<0.000000e+00> : vector<1xf32>
    %1433 = vector.multi_reduction <add>, %1432, %cst_668 [1, 2] : vector<1x8x128xf32> to vector<1xf32>
    %1434 = vector.shape_cast %1433 : vector<1xf32> to vector<1x1x1xf32>
    %1435 = vector.extract %1434[0, 0, 0] : f32 from vector<1x1x1xf32>
    %1436 = vector.broadcast %1435 : f32 to vector<1x1xf32>
    %1437 = arith.addf %1425, %1436 : vector<1x1xf32>
    %cst_669 = arith.constant 2.048000e+01 : f32
    %1438 = vector.broadcast %cst_669 : f32 to vector<1x1xf32>
    %1439 = arith.cmpf oge, %1437, %1438 : vector<1x1xf32>
    %1440 = arith.extui %1439 : vector<1x1xi1> to vector<1x1xi32>
    %1441 = arith.sitofp %1440 : vector<1x1xi32> to vector<1x1xf32>
    %1442 = arith.mulf %1196, %1441 : vector<1x1xf32>
    %cst_670 = arith.constant 2.000000e-01 : f32
    %1443 = vector.broadcast %cst_670 : f32 to vector<1x1xf32>
    %1444 = arith.mulf %1442, %1443 : vector<1x1xf32>
    %cst_671 = arith.constant 0.000000e+00 : f32
    %1445 = vector.broadcast %cst_671 : f32 to vector<8x128xf32>
    %cst_672 = arith.constant 0.000000e+00 : f32
    %1446 = vector.broadcast %cst_672 : f32 to vector<8x128xf32>
    %c1_i32_673 = arith.constant 1 : i32
    %1447 = tpu.dynamic_rotate %1418 by %c1_i32_673 dim 0 : vector<8x128xf32>, i32 -> vector<8x128xf32>
    %c1_i32_674 = arith.constant 1 : i32
    %1448 = tpu.dynamic_rotate %1429 by %c1_i32_674 dim 0 : vector<8x128xf32>, i32 -> vector<8x128xf32>
    %c17_i32_675 = arith.constant 17 : i32
    %1449 = tpu.dynamic_rotate %1447 by %c17_i32_675 dim 1 : vector<8x128xf32>, i32 -> vector<8x128xf32>
    %c17_i32_676 = arith.constant 17 : i32
    %1450 = tpu.dynamic_rotate %1448 by %c17_i32_676 dim 1 : vector<8x128xf32>, i32 -> vector<8x128xf32>
    %c0_677 = arith.constant 0 : index
    %c0_678 = arith.constant 0 : index
    %c0_679 = arith.constant 0 : index
    %1451 = vector.load %arg7[%c0_677, %c0_678, %c0_679] : memref<54x8x128xf32, #tpu.memory_space<vmem>>, vector<1x8x128xf32>
    %1452 = vector.shape_cast %1451 : vector<1x8x128xf32> to vector<8x128xf32>
    %1453 = arith.mulf %1452, %1449 : vector<8x128xf32>
    %1454 = arith.addf %1445, %1453 : vector<8x128xf32>
    %1455 = arith.mulf %1452, %1450 : vector<8x128xf32>
    %1456 = arith.addf %1446, %1455 : vector<8x128xf32>
    %c16_i32_680 = arith.constant 16 : i32
    %1457 = tpu.dynamic_rotate %1447 by %c16_i32_680 dim 1 : vector<8x128xf32>, i32 -> vector<8x128xf32>
    %c16_i32_681 = arith.constant 16 : i32
    %1458 = tpu.dynamic_rotate %1448 by %c16_i32_681 dim 1 : vector<8x128xf32>, i32 -> vector<8x128xf32>
    %c2_682 = arith.constant 2 : index
    %c0_683 = arith.constant 0 : index
    %c0_684 = arith.constant 0 : index
    %1459 = vector.load %arg7[%c2_682, %c0_683, %c0_684] : memref<54x8x128xf32, #tpu.memory_space<vmem>>, vector<1x8x128xf32>
    %1460 = vector.shape_cast %1459 : vector<1x8x128xf32> to vector<8x128xf32>
    %1461 = arith.mulf %1460, %1457 : vector<8x128xf32>
    %1462 = arith.addf %1454, %1461 : vector<8x128xf32>
    %1463 = arith.mulf %1460, %1458 : vector<8x128xf32>
    %1464 = arith.addf %1456, %1463 : vector<8x128xf32>
    %c15_i32_685 = arith.constant 15 : i32
    %1465 = tpu.dynamic_rotate %1447 by %c15_i32_685 dim 1 : vector<8x128xf32>, i32 -> vector<8x128xf32>
    %c15_i32_686 = arith.constant 15 : i32
    %1466 = tpu.dynamic_rotate %1448 by %c15_i32_686 dim 1 : vector<8x128xf32>, i32 -> vector<8x128xf32>
    %c4_687 = arith.constant 4 : index
    %c0_688 = arith.constant 0 : index
    %c0_689 = arith.constant 0 : index
    %1467 = vector.load %arg7[%c4_687, %c0_688, %c0_689] : memref<54x8x128xf32, #tpu.memory_space<vmem>>, vector<1x8x128xf32>
    %1468 = vector.shape_cast %1467 : vector<1x8x128xf32> to vector<8x128xf32>
    %1469 = arith.mulf %1468, %1465 : vector<8x128xf32>
    %1470 = arith.addf %1462, %1469 : vector<8x128xf32>
    %1471 = arith.mulf %1468, %1466 : vector<8x128xf32>
    %1472 = arith.addf %1464, %1471 : vector<8x128xf32>
    %c1_i32_690 = arith.constant 1 : i32
    %1473 = tpu.dynamic_rotate %1447 by %c1_i32_690 dim 1 : vector<8x128xf32>, i32 -> vector<8x128xf32>
    %c1_i32_691 = arith.constant 1 : i32
    %1474 = tpu.dynamic_rotate %1448 by %c1_i32_691 dim 1 : vector<8x128xf32>, i32 -> vector<8x128xf32>
    %c6_692 = arith.constant 6 : index
    %c0_693 = arith.constant 0 : index
    %c0_694 = arith.constant 0 : index
    %1475 = vector.load %arg7[%c6_692, %c0_693, %c0_694] : memref<54x8x128xf32, #tpu.memory_space<vmem>>, vector<1x8x128xf32>
    %1476 = vector.shape_cast %1475 : vector<1x8x128xf32> to vector<8x128xf32>
    %1477 = arith.mulf %1476, %1473 : vector<8x128xf32>
    %1478 = arith.addf %1470, %1477 : vector<8x128xf32>
    %1479 = arith.mulf %1476, %1474 : vector<8x128xf32>
    %1480 = arith.addf %1472, %1479 : vector<8x128xf32>
    %c8_695 = arith.constant 8 : index
    %c0_696 = arith.constant 0 : index
    %c0_697 = arith.constant 0 : index
    %1481 = vector.load %arg7[%c8_695, %c0_696, %c0_697] : memref<54x8x128xf32, #tpu.memory_space<vmem>>, vector<1x8x128xf32>
    %1482 = vector.shape_cast %1481 : vector<1x8x128xf32> to vector<8x128xf32>
    %1483 = arith.mulf %1482, %1447 : vector<8x128xf32>
    %1484 = arith.addf %1478, %1483 : vector<8x128xf32>
    %1485 = arith.mulf %1482, %1448 : vector<8x128xf32>
    %1486 = arith.addf %1480, %1485 : vector<8x128xf32>
    %c127_i32_698 = arith.constant 127 : i32
    %1487 = tpu.dynamic_rotate %1447 by %c127_i32_698 dim 1 : vector<8x128xf32>, i32 -> vector<8x128xf32>
    %c127_i32_699 = arith.constant 127 : i32
    %1488 = tpu.dynamic_rotate %1448 by %c127_i32_699 dim 1 : vector<8x128xf32>, i32 -> vector<8x128xf32>
    %c10_700 = arith.constant 10 : index
    %c0_701 = arith.constant 0 : index
    %c0_702 = arith.constant 0 : index
    %1489 = vector.load %arg7[%c10_700, %c0_701, %c0_702] : memref<54x8x128xf32, #tpu.memory_space<vmem>>, vector<1x8x128xf32>
    %1490 = vector.shape_cast %1489 : vector<1x8x128xf32> to vector<8x128xf32>
    %1491 = arith.mulf %1490, %1487 : vector<8x128xf32>
    %1492 = arith.addf %1484, %1491 : vector<8x128xf32>
    %1493 = arith.mulf %1490, %1488 : vector<8x128xf32>
    %1494 = arith.addf %1486, %1493 : vector<8x128xf32>
    %c113_i32_703 = arith.constant 113 : i32
    %1495 = tpu.dynamic_rotate %1447 by %c113_i32_703 dim 1 : vector<8x128xf32>, i32 -> vector<8x128xf32>
    %c113_i32_704 = arith.constant 113 : i32
    %1496 = tpu.dynamic_rotate %1448 by %c113_i32_704 dim 1 : vector<8x128xf32>, i32 -> vector<8x128xf32>
    %c12_705 = arith.constant 12 : index
    %c0_706 = arith.constant 0 : index
    %c0_707 = arith.constant 0 : index
    %1497 = vector.load %arg7[%c12_705, %c0_706, %c0_707] : memref<54x8x128xf32, #tpu.memory_space<vmem>>, vector<1x8x128xf32>
    %1498 = vector.shape_cast %1497 : vector<1x8x128xf32> to vector<8x128xf32>
    %1499 = arith.mulf %1498, %1495 : vector<8x128xf32>
    %1500 = arith.addf %1492, %1499 : vector<8x128xf32>
    %1501 = arith.mulf %1498, %1496 : vector<8x128xf32>
    %1502 = arith.addf %1494, %1501 : vector<8x128xf32>
    %c112_i32_708 = arith.constant 112 : i32
    %1503 = tpu.dynamic_rotate %1447 by %c112_i32_708 dim 1 : vector<8x128xf32>, i32 -> vector<8x128xf32>
    %c112_i32_709 = arith.constant 112 : i32
    %1504 = tpu.dynamic_rotate %1448 by %c112_i32_709 dim 1 : vector<8x128xf32>, i32 -> vector<8x128xf32>
    %c14_710 = arith.constant 14 : index
    %c0_711 = arith.constant 0 : index
    %c0_712 = arith.constant 0 : index
    %1505 = vector.load %arg7[%c14_710, %c0_711, %c0_712] : memref<54x8x128xf32, #tpu.memory_space<vmem>>, vector<1x8x128xf32>
    %1506 = vector.shape_cast %1505 : vector<1x8x128xf32> to vector<8x128xf32>
    %1507 = arith.mulf %1506, %1503 : vector<8x128xf32>
    %1508 = arith.addf %1500, %1507 : vector<8x128xf32>
    %1509 = arith.mulf %1506, %1504 : vector<8x128xf32>
    %1510 = arith.addf %1502, %1509 : vector<8x128xf32>
    %c111_i32_713 = arith.constant 111 : i32
    %1511 = tpu.dynamic_rotate %1447 by %c111_i32_713 dim 1 : vector<8x128xf32>, i32 -> vector<8x128xf32>
    %c111_i32_714 = arith.constant 111 : i32
    %1512 = tpu.dynamic_rotate %1448 by %c111_i32_714 dim 1 : vector<8x128xf32>, i32 -> vector<8x128xf32>
    %c16_715 = arith.constant 16 : index
    %c0_716 = arith.constant 0 : index
    %c0_717 = arith.constant 0 : index
    %1513 = vector.load %arg7[%c16_715, %c0_716, %c0_717] : memref<54x8x128xf32, #tpu.memory_space<vmem>>, vector<1x8x128xf32>
    %1514 = vector.shape_cast %1513 : vector<1x8x128xf32> to vector<8x128xf32>
    %1515 = arith.mulf %1514, %1511 : vector<8x128xf32>
    %1516 = arith.addf %1508, %1515 : vector<8x128xf32>
    %1517 = arith.mulf %1514, %1512 : vector<8x128xf32>
    %1518 = arith.addf %1510, %1517 : vector<8x128xf32>
    %c17_i32_718 = arith.constant 17 : i32
    %1519 = tpu.dynamic_rotate %1418 by %c17_i32_718 dim 1 : vector<8x128xf32>, i32 -> vector<8x128xf32>
    %c17_i32_719 = arith.constant 17 : i32
    %1520 = tpu.dynamic_rotate %1429 by %c17_i32_719 dim 1 : vector<8x128xf32>, i32 -> vector<8x128xf32>
    %c18_720 = arith.constant 18 : index
    %c0_721 = arith.constant 0 : index
    %c0_722 = arith.constant 0 : index
    %1521 = vector.load %arg7[%c18_720, %c0_721, %c0_722] : memref<54x8x128xf32, #tpu.memory_space<vmem>>, vector<1x8x128xf32>
    %1522 = vector.shape_cast %1521 : vector<1x8x128xf32> to vector<8x128xf32>
    %1523 = arith.mulf %1522, %1519 : vector<8x128xf32>
    %1524 = arith.addf %1516, %1523 : vector<8x128xf32>
    %1525 = arith.mulf %1522, %1520 : vector<8x128xf32>
    %1526 = arith.addf %1518, %1525 : vector<8x128xf32>
    %c16_i32_723 = arith.constant 16 : i32
    %1527 = tpu.dynamic_rotate %1418 by %c16_i32_723 dim 1 : vector<8x128xf32>, i32 -> vector<8x128xf32>
    %c16_i32_724 = arith.constant 16 : i32
    %1528 = tpu.dynamic_rotate %1429 by %c16_i32_724 dim 1 : vector<8x128xf32>, i32 -> vector<8x128xf32>
    %c20_725 = arith.constant 20 : index
    %c0_726 = arith.constant 0 : index
    %c0_727 = arith.constant 0 : index
    %1529 = vector.load %arg7[%c20_725, %c0_726, %c0_727] : memref<54x8x128xf32, #tpu.memory_space<vmem>>, vector<1x8x128xf32>
    %1530 = vector.shape_cast %1529 : vector<1x8x128xf32> to vector<8x128xf32>
    %1531 = arith.mulf %1530, %1527 : vector<8x128xf32>
    %1532 = arith.addf %1524, %1531 : vector<8x128xf32>
    %1533 = arith.mulf %1530, %1528 : vector<8x128xf32>
    %1534 = arith.addf %1526, %1533 : vector<8x128xf32>
    %c15_i32_728 = arith.constant 15 : i32
    %1535 = tpu.dynamic_rotate %1418 by %c15_i32_728 dim 1 : vector<8x128xf32>, i32 -> vector<8x128xf32>
    %c15_i32_729 = arith.constant 15 : i32
    %1536 = tpu.dynamic_rotate %1429 by %c15_i32_729 dim 1 : vector<8x128xf32>, i32 -> vector<8x128xf32>
    %c22_730 = arith.constant 22 : index
    %c0_731 = arith.constant 0 : index
    %c0_732 = arith.constant 0 : index
    %1537 = vector.load %arg7[%c22_730, %c0_731, %c0_732] : memref<54x8x128xf32, #tpu.memory_space<vmem>>, vector<1x8x128xf32>
    %1538 = vector.shape_cast %1537 : vector<1x8x128xf32> to vector<8x128xf32>
    %1539 = arith.mulf %1538, %1535 : vector<8x128xf32>
    %1540 = arith.addf %1532, %1539 : vector<8x128xf32>
    %1541 = arith.mulf %1538, %1536 : vector<8x128xf32>
    %1542 = arith.addf %1534, %1541 : vector<8x128xf32>
    %c1_i32_733 = arith.constant 1 : i32
    %1543 = tpu.dynamic_rotate %1418 by %c1_i32_733 dim 1 : vector<8x128xf32>, i32 -> vector<8x128xf32>
    %c1_i32_734 = arith.constant 1 : i32
    %1544 = tpu.dynamic_rotate %1429 by %c1_i32_734 dim 1 : vector<8x128xf32>, i32 -> vector<8x128xf32>
    %c24_735 = arith.constant 24 : index
    %c0_736 = arith.constant 0 : index
    %c0_737 = arith.constant 0 : index
    %1545 = vector.load %arg7[%c24_735, %c0_736, %c0_737] : memref<54x8x128xf32, #tpu.memory_space<vmem>>, vector<1x8x128xf32>
    %1546 = vector.shape_cast %1545 : vector<1x8x128xf32> to vector<8x128xf32>
    %1547 = arith.mulf %1546, %1543 : vector<8x128xf32>
    %1548 = arith.addf %1540, %1547 : vector<8x128xf32>
    %1549 = arith.mulf %1546, %1544 : vector<8x128xf32>
    %1550 = arith.addf %1542, %1549 : vector<8x128xf32>
    %c26_738 = arith.constant 26 : index
    %c0_739 = arith.constant 0 : index
    %c0_740 = arith.constant 0 : index
    %1551 = vector.load %arg7[%c26_738, %c0_739, %c0_740] : memref<54x8x128xf32, #tpu.memory_space<vmem>>, vector<1x8x128xf32>
    %1552 = vector.shape_cast %1551 : vector<1x8x128xf32> to vector<8x128xf32>
    %1553 = arith.mulf %1552, %1418 : vector<8x128xf32>
    %1554 = arith.addf %1548, %1553 : vector<8x128xf32>
    %1555 = arith.mulf %1552, %1429 : vector<8x128xf32>
    %1556 = arith.addf %1550, %1555 : vector<8x128xf32>
    %c127_i32_741 = arith.constant 127 : i32
    %1557 = tpu.dynamic_rotate %1418 by %c127_i32_741 dim 1 : vector<8x128xf32>, i32 -> vector<8x128xf32>
    %c127_i32_742 = arith.constant 127 : i32
    %1558 = tpu.dynamic_rotate %1429 by %c127_i32_742 dim 1 : vector<8x128xf32>, i32 -> vector<8x128xf32>
    %c28_743 = arith.constant 28 : index
    %c0_744 = arith.constant 0 : index
    %c0_745 = arith.constant 0 : index
    %1559 = vector.load %arg7[%c28_743, %c0_744, %c0_745] : memref<54x8x128xf32, #tpu.memory_space<vmem>>, vector<1x8x128xf32>
    %1560 = vector.shape_cast %1559 : vector<1x8x128xf32> to vector<8x128xf32>
    %1561 = arith.mulf %1560, %1557 : vector<8x128xf32>
    %1562 = arith.addf %1554, %1561 : vector<8x128xf32>
    %1563 = arith.mulf %1560, %1558 : vector<8x128xf32>
    %1564 = arith.addf %1556, %1563 : vector<8x128xf32>
    %c113_i32_746 = arith.constant 113 : i32
    %1565 = tpu.dynamic_rotate %1418 by %c113_i32_746 dim 1 : vector<8x128xf32>, i32 -> vector<8x128xf32>
    %c113_i32_747 = arith.constant 113 : i32
    %1566 = tpu.dynamic_rotate %1429 by %c113_i32_747 dim 1 : vector<8x128xf32>, i32 -> vector<8x128xf32>
    %c30_748 = arith.constant 30 : index
    %c0_749 = arith.constant 0 : index
    %c0_750 = arith.constant 0 : index
    %1567 = vector.load %arg7[%c30_748, %c0_749, %c0_750] : memref<54x8x128xf32, #tpu.memory_space<vmem>>, vector<1x8x128xf32>
    %1568 = vector.shape_cast %1567 : vector<1x8x128xf32> to vector<8x128xf32>
    %1569 = arith.mulf %1568, %1565 : vector<8x128xf32>
    %1570 = arith.addf %1562, %1569 : vector<8x128xf32>
    %1571 = arith.mulf %1568, %1566 : vector<8x128xf32>
    %1572 = arith.addf %1564, %1571 : vector<8x128xf32>
    %c112_i32_751 = arith.constant 112 : i32
    %1573 = tpu.dynamic_rotate %1418 by %c112_i32_751 dim 1 : vector<8x128xf32>, i32 -> vector<8x128xf32>
    %c112_i32_752 = arith.constant 112 : i32
    %1574 = tpu.dynamic_rotate %1429 by %c112_i32_752 dim 1 : vector<8x128xf32>, i32 -> vector<8x128xf32>
    %c32_753 = arith.constant 32 : index
    %c0_754 = arith.constant 0 : index
    %c0_755 = arith.constant 0 : index
    %1575 = vector.load %arg7[%c32_753, %c0_754, %c0_755] : memref<54x8x128xf32, #tpu.memory_space<vmem>>, vector<1x8x128xf32>
    %1576 = vector.shape_cast %1575 : vector<1x8x128xf32> to vector<8x128xf32>
    %1577 = arith.mulf %1576, %1573 : vector<8x128xf32>
    %1578 = arith.addf %1570, %1577 : vector<8x128xf32>
    %1579 = arith.mulf %1576, %1574 : vector<8x128xf32>
    %1580 = arith.addf %1572, %1579 : vector<8x128xf32>
    %c111_i32_756 = arith.constant 111 : i32
    %1581 = tpu.dynamic_rotate %1418 by %c111_i32_756 dim 1 : vector<8x128xf32>, i32 -> vector<8x128xf32>
    %c111_i32_757 = arith.constant 111 : i32
    %1582 = tpu.dynamic_rotate %1429 by %c111_i32_757 dim 1 : vector<8x128xf32>, i32 -> vector<8x128xf32>
    %c34_758 = arith.constant 34 : index
    %c0_759 = arith.constant 0 : index
    %c0_760 = arith.constant 0 : index
    %1583 = vector.load %arg7[%c34_758, %c0_759, %c0_760] : memref<54x8x128xf32, #tpu.memory_space<vmem>>, vector<1x8x128xf32>
    %1584 = vector.shape_cast %1583 : vector<1x8x128xf32> to vector<8x128xf32>
    %1585 = arith.mulf %1584, %1581 : vector<8x128xf32>
    %1586 = arith.addf %1578, %1585 : vector<8x128xf32>
    %1587 = arith.mulf %1584, %1582 : vector<8x128xf32>
    %1588 = arith.addf %1580, %1587 : vector<8x128xf32>
    %c7_i32_761 = arith.constant 7 : i32
    %1589 = tpu.dynamic_rotate %1418 by %c7_i32_761 dim 0 : vector<8x128xf32>, i32 -> vector<8x128xf32>
    %c7_i32_762 = arith.constant 7 : i32
    %1590 = tpu.dynamic_rotate %1429 by %c7_i32_762 dim 0 : vector<8x128xf32>, i32 -> vector<8x128xf32>
    %c17_i32_763 = arith.constant 17 : i32
    %1591 = tpu.dynamic_rotate %1589 by %c17_i32_763 dim 1 : vector<8x128xf32>, i32 -> vector<8x128xf32>
    %c17_i32_764 = arith.constant 17 : i32
    %1592 = tpu.dynamic_rotate %1590 by %c17_i32_764 dim 1 : vector<8x128xf32>, i32 -> vector<8x128xf32>
    %c36_765 = arith.constant 36 : index
    %c0_766 = arith.constant 0 : index
    %c0_767 = arith.constant 0 : index
    %1593 = vector.load %arg7[%c36_765, %c0_766, %c0_767] : memref<54x8x128xf32, #tpu.memory_space<vmem>>, vector<1x8x128xf32>
    %1594 = vector.shape_cast %1593 : vector<1x8x128xf32> to vector<8x128xf32>
    %1595 = arith.mulf %1594, %1591 : vector<8x128xf32>
    %1596 = arith.addf %1586, %1595 : vector<8x128xf32>
    %1597 = arith.mulf %1594, %1592 : vector<8x128xf32>
    %1598 = arith.addf %1588, %1597 : vector<8x128xf32>
    %c16_i32_768 = arith.constant 16 : i32
    %1599 = tpu.dynamic_rotate %1589 by %c16_i32_768 dim 1 : vector<8x128xf32>, i32 -> vector<8x128xf32>
    %c16_i32_769 = arith.constant 16 : i32
    %1600 = tpu.dynamic_rotate %1590 by %c16_i32_769 dim 1 : vector<8x128xf32>, i32 -> vector<8x128xf32>
    %c38_770 = arith.constant 38 : index
    %c0_771 = arith.constant 0 : index
    %c0_772 = arith.constant 0 : index
    %1601 = vector.load %arg7[%c38_770, %c0_771, %c0_772] : memref<54x8x128xf32, #tpu.memory_space<vmem>>, vector<1x8x128xf32>
    %1602 = vector.shape_cast %1601 : vector<1x8x128xf32> to vector<8x128xf32>
    %1603 = arith.mulf %1602, %1599 : vector<8x128xf32>
    %1604 = arith.addf %1596, %1603 : vector<8x128xf32>
    %1605 = arith.mulf %1602, %1600 : vector<8x128xf32>
    %1606 = arith.addf %1598, %1605 : vector<8x128xf32>
    %c15_i32_773 = arith.constant 15 : i32
    %1607 = tpu.dynamic_rotate %1589 by %c15_i32_773 dim 1 : vector<8x128xf32>, i32 -> vector<8x128xf32>
    %c15_i32_774 = arith.constant 15 : i32
    %1608 = tpu.dynamic_rotate %1590 by %c15_i32_774 dim 1 : vector<8x128xf32>, i32 -> vector<8x128xf32>
    %c40_775 = arith.constant 40 : index
    %c0_776 = arith.constant 0 : index
    %c0_777 = arith.constant 0 : index
    %1609 = vector.load %arg7[%c40_775, %c0_776, %c0_777] : memref<54x8x128xf32, #tpu.memory_space<vmem>>, vector<1x8x128xf32>
    %1610 = vector.shape_cast %1609 : vector<1x8x128xf32> to vector<8x128xf32>
    %1611 = arith.mulf %1610, %1607 : vector<8x128xf32>
    %1612 = arith.addf %1604, %1611 : vector<8x128xf32>
    %1613 = arith.mulf %1610, %1608 : vector<8x128xf32>
    %1614 = arith.addf %1606, %1613 : vector<8x128xf32>
    %c1_i32_778 = arith.constant 1 : i32
    %1615 = tpu.dynamic_rotate %1589 by %c1_i32_778 dim 1 : vector<8x128xf32>, i32 -> vector<8x128xf32>
    %c1_i32_779 = arith.constant 1 : i32
    %1616 = tpu.dynamic_rotate %1590 by %c1_i32_779 dim 1 : vector<8x128xf32>, i32 -> vector<8x128xf32>
    %c42_780 = arith.constant 42 : index
    %c0_781 = arith.constant 0 : index
    %c0_782 = arith.constant 0 : index
    %1617 = vector.load %arg7[%c42_780, %c0_781, %c0_782] : memref<54x8x128xf32, #tpu.memory_space<vmem>>, vector<1x8x128xf32>
    %1618 = vector.shape_cast %1617 : vector<1x8x128xf32> to vector<8x128xf32>
    %1619 = arith.mulf %1618, %1615 : vector<8x128xf32>
    %1620 = arith.addf %1612, %1619 : vector<8x128xf32>
    %1621 = arith.mulf %1618, %1616 : vector<8x128xf32>
    %1622 = arith.addf %1614, %1621 : vector<8x128xf32>
    %c44_783 = arith.constant 44 : index
    %c0_784 = arith.constant 0 : index
    %c0_785 = arith.constant 0 : index
    %1623 = vector.load %arg7[%c44_783, %c0_784, %c0_785] : memref<54x8x128xf32, #tpu.memory_space<vmem>>, vector<1x8x128xf32>
    %1624 = vector.shape_cast %1623 : vector<1x8x128xf32> to vector<8x128xf32>
    %1625 = arith.mulf %1624, %1589 : vector<8x128xf32>
    %1626 = arith.addf %1620, %1625 : vector<8x128xf32>
    %1627 = arith.mulf %1624, %1590 : vector<8x128xf32>
    %1628 = arith.addf %1622, %1627 : vector<8x128xf32>
    %c127_i32_786 = arith.constant 127 : i32
    %1629 = tpu.dynamic_rotate %1589 by %c127_i32_786 dim 1 : vector<8x128xf32>, i32 -> vector<8x128xf32>
    %c127_i32_787 = arith.constant 127 : i32
    %1630 = tpu.dynamic_rotate %1590 by %c127_i32_787 dim 1 : vector<8x128xf32>, i32 -> vector<8x128xf32>
    %c46_788 = arith.constant 46 : index
    %c0_789 = arith.constant 0 : index
    %c0_790 = arith.constant 0 : index
    %1631 = vector.load %arg7[%c46_788, %c0_789, %c0_790] : memref<54x8x128xf32, #tpu.memory_space<vmem>>, vector<1x8x128xf32>
    %1632 = vector.shape_cast %1631 : vector<1x8x128xf32> to vector<8x128xf32>
    %1633 = arith.mulf %1632, %1629 : vector<8x128xf32>
    %1634 = arith.addf %1626, %1633 : vector<8x128xf32>
    %1635 = arith.mulf %1632, %1630 : vector<8x128xf32>
    %1636 = arith.addf %1628, %1635 : vector<8x128xf32>
    %c113_i32_791 = arith.constant 113 : i32
    %1637 = tpu.dynamic_rotate %1589 by %c113_i32_791 dim 1 : vector<8x128xf32>, i32 -> vector<8x128xf32>
    %c113_i32_792 = arith.constant 113 : i32
    %1638 = tpu.dynamic_rotate %1590 by %c113_i32_792 dim 1 : vector<8x128xf32>, i32 -> vector<8x128xf32>
    %c48_793 = arith.constant 48 : index
    %c0_794 = arith.constant 0 : index
    %c0_795 = arith.constant 0 : index
    %1639 = vector.load %arg7[%c48_793, %c0_794, %c0_795] : memref<54x8x128xf32, #tpu.memory_space<vmem>>, vector<1x8x128xf32>
    %1640 = vector.shape_cast %1639 : vector<1x8x128xf32> to vector<8x128xf32>
    %1641 = arith.mulf %1640, %1637 : vector<8x128xf32>
    %1642 = arith.addf %1634, %1641 : vector<8x128xf32>
    %1643 = arith.mulf %1640, %1638 : vector<8x128xf32>
    %1644 = arith.addf %1636, %1643 : vector<8x128xf32>
    %c112_i32_796 = arith.constant 112 : i32
    %1645 = tpu.dynamic_rotate %1589 by %c112_i32_796 dim 1 : vector<8x128xf32>, i32 -> vector<8x128xf32>
    %c112_i32_797 = arith.constant 112 : i32
    %1646 = tpu.dynamic_rotate %1590 by %c112_i32_797 dim 1 : vector<8x128xf32>, i32 -> vector<8x128xf32>
    %c50_798 = arith.constant 50 : index
    %c0_799 = arith.constant 0 : index
    %c0_800 = arith.constant 0 : index
    %1647 = vector.load %arg7[%c50_798, %c0_799, %c0_800] : memref<54x8x128xf32, #tpu.memory_space<vmem>>, vector<1x8x128xf32>
    %1648 = vector.shape_cast %1647 : vector<1x8x128xf32> to vector<8x128xf32>
    %1649 = arith.mulf %1648, %1645 : vector<8x128xf32>
    %1650 = arith.addf %1642, %1649 : vector<8x128xf32>
    %1651 = arith.mulf %1648, %1646 : vector<8x128xf32>
    %1652 = arith.addf %1644, %1651 : vector<8x128xf32>
    %c111_i32_801 = arith.constant 111 : i32
    %1653 = tpu.dynamic_rotate %1589 by %c111_i32_801 dim 1 : vector<8x128xf32>, i32 -> vector<8x128xf32>
    %c111_i32_802 = arith.constant 111 : i32
    %1654 = tpu.dynamic_rotate %1590 by %c111_i32_802 dim 1 : vector<8x128xf32>, i32 -> vector<8x128xf32>
    %c52_803 = arith.constant 52 : index
    %c0_804 = arith.constant 0 : index
    %c0_805 = arith.constant 0 : index
    %1655 = vector.load %arg7[%c52_803, %c0_804, %c0_805] : memref<54x8x128xf32, #tpu.memory_space<vmem>>, vector<1x8x128xf32>
    %1656 = vector.shape_cast %1655 : vector<1x8x128xf32> to vector<8x128xf32>
    %1657 = arith.mulf %1656, %1653 : vector<8x128xf32>
    %1658 = arith.addf %1650, %1657 : vector<8x128xf32>
    %1659 = arith.mulf %1656, %1654 : vector<8x128xf32>
    %1660 = arith.addf %1652, %1659 : vector<8x128xf32>
    %1661 = arith.subf %1658, %1418 : vector<8x128xf32>
    %1662 = vector.broadcast %1444 : vector<1x1xf32> to vector<8x128xf32>
    %1663 = arith.mulf %1662, %1661 : vector<8x128xf32>
    %1664 = arith.addf %1418, %1663 : vector<8x128xf32>
    %1665 = arith.subf %1664, %1418 : vector<8x128xf32>
    %1666 = math.absf %1665 : vector<8x128xf32>
    %1667 = vector.shape_cast %1666 : vector<8x128xf32> to vector<1x8x128xf32>
    %cst_806 = arith.constant dense<0.000000e+00> : vector<1xf32>
    %1668 = vector.multi_reduction <add>, %1667, %cst_806 [1, 2] : vector<1x8x128xf32> to vector<1xf32>
    %1669 = vector.shape_cast %1668 : vector<1xf32> to vector<1x1x1xf32>
    %1670 = vector.extract %1669[0, 0, 0] : f32 from vector<1x1x1xf32>
    %1671 = vector.broadcast %1670 : f32 to vector<1x1xf32>
    %1672 = arith.subf %1660, %1429 : vector<8x128xf32>
    %1673 = vector.broadcast %1444 : vector<1x1xf32> to vector<8x128xf32>
    %1674 = arith.mulf %1673, %1672 : vector<8x128xf32>
    %1675 = arith.addf %1429, %1674 : vector<8x128xf32>
    %1676 = arith.subf %1675, %1429 : vector<8x128xf32>
    %1677 = math.absf %1676 : vector<8x128xf32>
    %1678 = vector.shape_cast %1677 : vector<8x128xf32> to vector<1x8x128xf32>
    %cst_807 = arith.constant dense<0.000000e+00> : vector<1xf32>
    %1679 = vector.multi_reduction <add>, %1678, %cst_807 [1, 2] : vector<1x8x128xf32> to vector<1xf32>
    %1680 = vector.shape_cast %1679 : vector<1xf32> to vector<1x1x1xf32>
    %1681 = vector.extract %1680[0, 0, 0] : f32 from vector<1x1x1xf32>
    %1682 = vector.broadcast %1681 : f32 to vector<1x1xf32>
    %1683 = arith.addf %1671, %1682 : vector<1x1xf32>
    %cst_808 = arith.constant 2.048000e+01 : f32
    %1684 = vector.broadcast %cst_808 : f32 to vector<1x1xf32>
    %1685 = arith.cmpf oge, %1683, %1684 : vector<1x1xf32>
    %1686 = arith.extui %1685 : vector<1x1xi1> to vector<1x1xi32>
    %1687 = arith.sitofp %1686 : vector<1x1xi32> to vector<1x1xf32>
    %1688 = arith.mulf %1442, %1687 : vector<1x1xf32>
    %cst_809 = arith.constant 2.000000e-01 : f32
    %1689 = vector.broadcast %cst_809 : f32 to vector<1x1xf32>
    %1690 = arith.mulf %1688, %1689 : vector<1x1xf32>
    %cst_810 = arith.constant 0.000000e+00 : f32
    %1691 = vector.broadcast %cst_810 : f32 to vector<8x128xf32>
    %cst_811 = arith.constant 0.000000e+00 : f32
    %1692 = vector.broadcast %cst_811 : f32 to vector<8x128xf32>
    %c1_i32_812 = arith.constant 1 : i32
    %1693 = tpu.dynamic_rotate %1664 by %c1_i32_812 dim 0 : vector<8x128xf32>, i32 -> vector<8x128xf32>
    %c1_i32_813 = arith.constant 1 : i32
    %1694 = tpu.dynamic_rotate %1675 by %c1_i32_813 dim 0 : vector<8x128xf32>, i32 -> vector<8x128xf32>
    %c17_i32_814 = arith.constant 17 : i32
    %1695 = tpu.dynamic_rotate %1693 by %c17_i32_814 dim 1 : vector<8x128xf32>, i32 -> vector<8x128xf32>
    %c17_i32_815 = arith.constant 17 : i32
    %1696 = tpu.dynamic_rotate %1694 by %c17_i32_815 dim 1 : vector<8x128xf32>, i32 -> vector<8x128xf32>
    %c0_816 = arith.constant 0 : index
    %c0_817 = arith.constant 0 : index
    %c0_818 = arith.constant 0 : index
    %1697 = vector.load %arg7[%c0_816, %c0_817, %c0_818] : memref<54x8x128xf32, #tpu.memory_space<vmem>>, vector<1x8x128xf32>
    %1698 = vector.shape_cast %1697 : vector<1x8x128xf32> to vector<8x128xf32>
    %1699 = arith.mulf %1698, %1695 : vector<8x128xf32>
    %1700 = arith.addf %1691, %1699 : vector<8x128xf32>
    %1701 = arith.mulf %1698, %1696 : vector<8x128xf32>
    %1702 = arith.addf %1692, %1701 : vector<8x128xf32>
    %c16_i32_819 = arith.constant 16 : i32
    %1703 = tpu.dynamic_rotate %1693 by %c16_i32_819 dim 1 : vector<8x128xf32>, i32 -> vector<8x128xf32>
    %c16_i32_820 = arith.constant 16 : i32
    %1704 = tpu.dynamic_rotate %1694 by %c16_i32_820 dim 1 : vector<8x128xf32>, i32 -> vector<8x128xf32>
    %c2_821 = arith.constant 2 : index
    %c0_822 = arith.constant 0 : index
    %c0_823 = arith.constant 0 : index
    %1705 = vector.load %arg7[%c2_821, %c0_822, %c0_823] : memref<54x8x128xf32, #tpu.memory_space<vmem>>, vector<1x8x128xf32>
    %1706 = vector.shape_cast %1705 : vector<1x8x128xf32> to vector<8x128xf32>
    %1707 = arith.mulf %1706, %1703 : vector<8x128xf32>
    %1708 = arith.addf %1700, %1707 : vector<8x128xf32>
    %1709 = arith.mulf %1706, %1704 : vector<8x128xf32>
    %1710 = arith.addf %1702, %1709 : vector<8x128xf32>
    %c15_i32_824 = arith.constant 15 : i32
    %1711 = tpu.dynamic_rotate %1693 by %c15_i32_824 dim 1 : vector<8x128xf32>, i32 -> vector<8x128xf32>
    %c15_i32_825 = arith.constant 15 : i32
    %1712 = tpu.dynamic_rotate %1694 by %c15_i32_825 dim 1 : vector<8x128xf32>, i32 -> vector<8x128xf32>
    %c4_826 = arith.constant 4 : index
    %c0_827 = arith.constant 0 : index
    %c0_828 = arith.constant 0 : index
    %1713 = vector.load %arg7[%c4_826, %c0_827, %c0_828] : memref<54x8x128xf32, #tpu.memory_space<vmem>>, vector<1x8x128xf32>
    %1714 = vector.shape_cast %1713 : vector<1x8x128xf32> to vector<8x128xf32>
    %1715 = arith.mulf %1714, %1711 : vector<8x128xf32>
    %1716 = arith.addf %1708, %1715 : vector<8x128xf32>
    %1717 = arith.mulf %1714, %1712 : vector<8x128xf32>
    %1718 = arith.addf %1710, %1717 : vector<8x128xf32>
    %c1_i32_829 = arith.constant 1 : i32
    %1719 = tpu.dynamic_rotate %1693 by %c1_i32_829 dim 1 : vector<8x128xf32>, i32 -> vector<8x128xf32>
    %c1_i32_830 = arith.constant 1 : i32
    %1720 = tpu.dynamic_rotate %1694 by %c1_i32_830 dim 1 : vector<8x128xf32>, i32 -> vector<8x128xf32>
    %c6_831 = arith.constant 6 : index
    %c0_832 = arith.constant 0 : index
    %c0_833 = arith.constant 0 : index
    %1721 = vector.load %arg7[%c6_831, %c0_832, %c0_833] : memref<54x8x128xf32, #tpu.memory_space<vmem>>, vector<1x8x128xf32>
    %1722 = vector.shape_cast %1721 : vector<1x8x128xf32> to vector<8x128xf32>
    %1723 = arith.mulf %1722, %1719 : vector<8x128xf32>
    %1724 = arith.addf %1716, %1723 : vector<8x128xf32>
    %1725 = arith.mulf %1722, %1720 : vector<8x128xf32>
    %1726 = arith.addf %1718, %1725 : vector<8x128xf32>
    %c8_834 = arith.constant 8 : index
    %c0_835 = arith.constant 0 : index
    %c0_836 = arith.constant 0 : index
    %1727 = vector.load %arg7[%c8_834, %c0_835, %c0_836] : memref<54x8x128xf32, #tpu.memory_space<vmem>>, vector<1x8x128xf32>
    %1728 = vector.shape_cast %1727 : vector<1x8x128xf32> to vector<8x128xf32>
    %1729 = arith.mulf %1728, %1693 : vector<8x128xf32>
    %1730 = arith.addf %1724, %1729 : vector<8x128xf32>
    %1731 = arith.mulf %1728, %1694 : vector<8x128xf32>
    %1732 = arith.addf %1726, %1731 : vector<8x128xf32>
    %c127_i32_837 = arith.constant 127 : i32
    %1733 = tpu.dynamic_rotate %1693 by %c127_i32_837 dim 1 : vector<8x128xf32>, i32 -> vector<8x128xf32>
    %c127_i32_838 = arith.constant 127 : i32
    %1734 = tpu.dynamic_rotate %1694 by %c127_i32_838 dim 1 : vector<8x128xf32>, i32 -> vector<8x128xf32>
    %c10_839 = arith.constant 10 : index
    %c0_840 = arith.constant 0 : index
    %c0_841 = arith.constant 0 : index
    %1735 = vector.load %arg7[%c10_839, %c0_840, %c0_841] : memref<54x8x128xf32, #tpu.memory_space<vmem>>, vector<1x8x128xf32>
    %1736 = vector.shape_cast %1735 : vector<1x8x128xf32> to vector<8x128xf32>
    %1737 = arith.mulf %1736, %1733 : vector<8x128xf32>
    %1738 = arith.addf %1730, %1737 : vector<8x128xf32>
    %1739 = arith.mulf %1736, %1734 : vector<8x128xf32>
    %1740 = arith.addf %1732, %1739 : vector<8x128xf32>
    %c113_i32_842 = arith.constant 113 : i32
    %1741 = tpu.dynamic_rotate %1693 by %c113_i32_842 dim 1 : vector<8x128xf32>, i32 -> vector<8x128xf32>
    %c113_i32_843 = arith.constant 113 : i32
    %1742 = tpu.dynamic_rotate %1694 by %c113_i32_843 dim 1 : vector<8x128xf32>, i32 -> vector<8x128xf32>
    %c12_844 = arith.constant 12 : index
    %c0_845 = arith.constant 0 : index
    %c0_846 = arith.constant 0 : index
    %1743 = vector.load %arg7[%c12_844, %c0_845, %c0_846] : memref<54x8x128xf32, #tpu.memory_space<vmem>>, vector<1x8x128xf32>
    %1744 = vector.shape_cast %1743 : vector<1x8x128xf32> to vector<8x128xf32>
    %1745 = arith.mulf %1744, %1741 : vector<8x128xf32>
    %1746 = arith.addf %1738, %1745 : vector<8x128xf32>
    %1747 = arith.mulf %1744, %1742 : vector<8x128xf32>
    %1748 = arith.addf %1740, %1747 : vector<8x128xf32>
    %c112_i32_847 = arith.constant 112 : i32
    %1749 = tpu.dynamic_rotate %1693 by %c112_i32_847 dim 1 : vector<8x128xf32>, i32 -> vector<8x128xf32>
    %c112_i32_848 = arith.constant 112 : i32
    %1750 = tpu.dynamic_rotate %1694 by %c112_i32_848 dim 1 : vector<8x128xf32>, i32 -> vector<8x128xf32>
    %c14_849 = arith.constant 14 : index
    %c0_850 = arith.constant 0 : index
    %c0_851 = arith.constant 0 : index
    %1751 = vector.load %arg7[%c14_849, %c0_850, %c0_851] : memref<54x8x128xf32, #tpu.memory_space<vmem>>, vector<1x8x128xf32>
    %1752 = vector.shape_cast %1751 : vector<1x8x128xf32> to vector<8x128xf32>
    %1753 = arith.mulf %1752, %1749 : vector<8x128xf32>
    %1754 = arith.addf %1746, %1753 : vector<8x128xf32>
    %1755 = arith.mulf %1752, %1750 : vector<8x128xf32>
    %1756 = arith.addf %1748, %1755 : vector<8x128xf32>
    %c111_i32_852 = arith.constant 111 : i32
    %1757 = tpu.dynamic_rotate %1693 by %c111_i32_852 dim 1 : vector<8x128xf32>, i32 -> vector<8x128xf32>
    %c111_i32_853 = arith.constant 111 : i32
    %1758 = tpu.dynamic_rotate %1694 by %c111_i32_853 dim 1 : vector<8x128xf32>, i32 -> vector<8x128xf32>
    %c16_854 = arith.constant 16 : index
    %c0_855 = arith.constant 0 : index
    %c0_856 = arith.constant 0 : index
    %1759 = vector.load %arg7[%c16_854, %c0_855, %c0_856] : memref<54x8x128xf32, #tpu.memory_space<vmem>>, vector<1x8x128xf32>
    %1760 = vector.shape_cast %1759 : vector<1x8x128xf32> to vector<8x128xf32>
    %1761 = arith.mulf %1760, %1757 : vector<8x128xf32>
    %1762 = arith.addf %1754, %1761 : vector<8x128xf32>
    %1763 = arith.mulf %1760, %1758 : vector<8x128xf32>
    %1764 = arith.addf %1756, %1763 : vector<8x128xf32>
    %c17_i32_857 = arith.constant 17 : i32
    %1765 = tpu.dynamic_rotate %1664 by %c17_i32_857 dim 1 : vector<8x128xf32>, i32 -> vector<8x128xf32>
    %c17_i32_858 = arith.constant 17 : i32
    %1766 = tpu.dynamic_rotate %1675 by %c17_i32_858 dim 1 : vector<8x128xf32>, i32 -> vector<8x128xf32>
    %c18_859 = arith.constant 18 : index
    %c0_860 = arith.constant 0 : index
    %c0_861 = arith.constant 0 : index
    %1767 = vector.load %arg7[%c18_859, %c0_860, %c0_861] : memref<54x8x128xf32, #tpu.memory_space<vmem>>, vector<1x8x128xf32>
    %1768 = vector.shape_cast %1767 : vector<1x8x128xf32> to vector<8x128xf32>
    %1769 = arith.mulf %1768, %1765 : vector<8x128xf32>
    %1770 = arith.addf %1762, %1769 : vector<8x128xf32>
    %1771 = arith.mulf %1768, %1766 : vector<8x128xf32>
    %1772 = arith.addf %1764, %1771 : vector<8x128xf32>
    %c16_i32_862 = arith.constant 16 : i32
    %1773 = tpu.dynamic_rotate %1664 by %c16_i32_862 dim 1 : vector<8x128xf32>, i32 -> vector<8x128xf32>
    %c16_i32_863 = arith.constant 16 : i32
    %1774 = tpu.dynamic_rotate %1675 by %c16_i32_863 dim 1 : vector<8x128xf32>, i32 -> vector<8x128xf32>
    %c20_864 = arith.constant 20 : index
    %c0_865 = arith.constant 0 : index
    %c0_866 = arith.constant 0 : index
    %1775 = vector.load %arg7[%c20_864, %c0_865, %c0_866] : memref<54x8x128xf32, #tpu.memory_space<vmem>>, vector<1x8x128xf32>
    %1776 = vector.shape_cast %1775 : vector<1x8x128xf32> to vector<8x128xf32>
    %1777 = arith.mulf %1776, %1773 : vector<8x128xf32>
    %1778 = arith.addf %1770, %1777 : vector<8x128xf32>
    %1779 = arith.mulf %1776, %1774 : vector<8x128xf32>
    %1780 = arith.addf %1772, %1779 : vector<8x128xf32>
    %c15_i32_867 = arith.constant 15 : i32
    %1781 = tpu.dynamic_rotate %1664 by %c15_i32_867 dim 1 : vector<8x128xf32>, i32 -> vector<8x128xf32>
    %c15_i32_868 = arith.constant 15 : i32
    %1782 = tpu.dynamic_rotate %1675 by %c15_i32_868 dim 1 : vector<8x128xf32>, i32 -> vector<8x128xf32>
    %c22_869 = arith.constant 22 : index
    %c0_870 = arith.constant 0 : index
    %c0_871 = arith.constant 0 : index
    %1783 = vector.load %arg7[%c22_869, %c0_870, %c0_871] : memref<54x8x128xf32, #tpu.memory_space<vmem>>, vector<1x8x128xf32>
    %1784 = vector.shape_cast %1783 : vector<1x8x128xf32> to vector<8x128xf32>
    %1785 = arith.mulf %1784, %1781 : vector<8x128xf32>
    %1786 = arith.addf %1778, %1785 : vector<8x128xf32>
    %1787 = arith.mulf %1784, %1782 : vector<8x128xf32>
    %1788 = arith.addf %1780, %1787 : vector<8x128xf32>
    %c1_i32_872 = arith.constant 1 : i32
    %1789 = tpu.dynamic_rotate %1664 by %c1_i32_872 dim 1 : vector<8x128xf32>, i32 -> vector<8x128xf32>
    %c1_i32_873 = arith.constant 1 : i32
    %1790 = tpu.dynamic_rotate %1675 by %c1_i32_873 dim 1 : vector<8x128xf32>, i32 -> vector<8x128xf32>
    %c24_874 = arith.constant 24 : index
    %c0_875 = arith.constant 0 : index
    %c0_876 = arith.constant 0 : index
    %1791 = vector.load %arg7[%c24_874, %c0_875, %c0_876] : memref<54x8x128xf32, #tpu.memory_space<vmem>>, vector<1x8x128xf32>
    %1792 = vector.shape_cast %1791 : vector<1x8x128xf32> to vector<8x128xf32>
    %1793 = arith.mulf %1792, %1789 : vector<8x128xf32>
    %1794 = arith.addf %1786, %1793 : vector<8x128xf32>
    %1795 = arith.mulf %1792, %1790 : vector<8x128xf32>
    %1796 = arith.addf %1788, %1795 : vector<8x128xf32>
    %c26_877 = arith.constant 26 : index
    %c0_878 = arith.constant 0 : index
    %c0_879 = arith.constant 0 : index
    %1797 = vector.load %arg7[%c26_877, %c0_878, %c0_879] : memref<54x8x128xf32, #tpu.memory_space<vmem>>, vector<1x8x128xf32>
    %1798 = vector.shape_cast %1797 : vector<1x8x128xf32> to vector<8x128xf32>
    %1799 = arith.mulf %1798, %1664 : vector<8x128xf32>
    %1800 = arith.addf %1794, %1799 : vector<8x128xf32>
    %1801 = arith.mulf %1798, %1675 : vector<8x128xf32>
    %1802 = arith.addf %1796, %1801 : vector<8x128xf32>
    %c127_i32_880 = arith.constant 127 : i32
    %1803 = tpu.dynamic_rotate %1664 by %c127_i32_880 dim 1 : vector<8x128xf32>, i32 -> vector<8x128xf32>
    %c127_i32_881 = arith.constant 127 : i32
    %1804 = tpu.dynamic_rotate %1675 by %c127_i32_881 dim 1 : vector<8x128xf32>, i32 -> vector<8x128xf32>
    %c28_882 = arith.constant 28 : index
    %c0_883 = arith.constant 0 : index
    %c0_884 = arith.constant 0 : index
    %1805 = vector.load %arg7[%c28_882, %c0_883, %c0_884] : memref<54x8x128xf32, #tpu.memory_space<vmem>>, vector<1x8x128xf32>
    %1806 = vector.shape_cast %1805 : vector<1x8x128xf32> to vector<8x128xf32>
    %1807 = arith.mulf %1806, %1803 : vector<8x128xf32>
    %1808 = arith.addf %1800, %1807 : vector<8x128xf32>
    %1809 = arith.mulf %1806, %1804 : vector<8x128xf32>
    %1810 = arith.addf %1802, %1809 : vector<8x128xf32>
    %c113_i32_885 = arith.constant 113 : i32
    %1811 = tpu.dynamic_rotate %1664 by %c113_i32_885 dim 1 : vector<8x128xf32>, i32 -> vector<8x128xf32>
    %c113_i32_886 = arith.constant 113 : i32
    %1812 = tpu.dynamic_rotate %1675 by %c113_i32_886 dim 1 : vector<8x128xf32>, i32 -> vector<8x128xf32>
    %c30_887 = arith.constant 30 : index
    %c0_888 = arith.constant 0 : index
    %c0_889 = arith.constant 0 : index
    %1813 = vector.load %arg7[%c30_887, %c0_888, %c0_889] : memref<54x8x128xf32, #tpu.memory_space<vmem>>, vector<1x8x128xf32>
    %1814 = vector.shape_cast %1813 : vector<1x8x128xf32> to vector<8x128xf32>
    %1815 = arith.mulf %1814, %1811 : vector<8x128xf32>
    %1816 = arith.addf %1808, %1815 : vector<8x128xf32>
    %1817 = arith.mulf %1814, %1812 : vector<8x128xf32>
    %1818 = arith.addf %1810, %1817 : vector<8x128xf32>
    %c112_i32_890 = arith.constant 112 : i32
    %1819 = tpu.dynamic_rotate %1664 by %c112_i32_890 dim 1 : vector<8x128xf32>, i32 -> vector<8x128xf32>
    %c112_i32_891 = arith.constant 112 : i32
    %1820 = tpu.dynamic_rotate %1675 by %c112_i32_891 dim 1 : vector<8x128xf32>, i32 -> vector<8x128xf32>
    %c32_892 = arith.constant 32 : index
    %c0_893 = arith.constant 0 : index
    %c0_894 = arith.constant 0 : index
    %1821 = vector.load %arg7[%c32_892, %c0_893, %c0_894] : memref<54x8x128xf32, #tpu.memory_space<vmem>>, vector<1x8x128xf32>
    %1822 = vector.shape_cast %1821 : vector<1x8x128xf32> to vector<8x128xf32>
    %1823 = arith.mulf %1822, %1819 : vector<8x128xf32>
    %1824 = arith.addf %1816, %1823 : vector<8x128xf32>
    %1825 = arith.mulf %1822, %1820 : vector<8x128xf32>
    %1826 = arith.addf %1818, %1825 : vector<8x128xf32>
    %c111_i32_895 = arith.constant 111 : i32
    %1827 = tpu.dynamic_rotate %1664 by %c111_i32_895 dim 1 : vector<8x128xf32>, i32 -> vector<8x128xf32>
    %c111_i32_896 = arith.constant 111 : i32
    %1828 = tpu.dynamic_rotate %1675 by %c111_i32_896 dim 1 : vector<8x128xf32>, i32 -> vector<8x128xf32>
    %c34_897 = arith.constant 34 : index
    %c0_898 = arith.constant 0 : index
    %c0_899 = arith.constant 0 : index
    %1829 = vector.load %arg7[%c34_897, %c0_898, %c0_899] : memref<54x8x128xf32, #tpu.memory_space<vmem>>, vector<1x8x128xf32>
    %1830 = vector.shape_cast %1829 : vector<1x8x128xf32> to vector<8x128xf32>
    %1831 = arith.mulf %1830, %1827 : vector<8x128xf32>
    %1832 = arith.addf %1824, %1831 : vector<8x128xf32>
    %1833 = arith.mulf %1830, %1828 : vector<8x128xf32>
    %1834 = arith.addf %1826, %1833 : vector<8x128xf32>
    %c7_i32_900 = arith.constant 7 : i32
    %1835 = tpu.dynamic_rotate %1664 by %c7_i32_900 dim 0 : vector<8x128xf32>, i32 -> vector<8x128xf32>
    %c7_i32_901 = arith.constant 7 : i32
    %1836 = tpu.dynamic_rotate %1675 by %c7_i32_901 dim 0 : vector<8x128xf32>, i32 -> vector<8x128xf32>
    %c17_i32_902 = arith.constant 17 : i32
    %1837 = tpu.dynamic_rotate %1835 by %c17_i32_902 dim 1 : vector<8x128xf32>, i32 -> vector<8x128xf32>
    %c17_i32_903 = arith.constant 17 : i32
    %1838 = tpu.dynamic_rotate %1836 by %c17_i32_903 dim 1 : vector<8x128xf32>, i32 -> vector<8x128xf32>
    %c36_904 = arith.constant 36 : index
    %c0_905 = arith.constant 0 : index
    %c0_906 = arith.constant 0 : index
    %1839 = vector.load %arg7[%c36_904, %c0_905, %c0_906] : memref<54x8x128xf32, #tpu.memory_space<vmem>>, vector<1x8x128xf32>
    %1840 = vector.shape_cast %1839 : vector<1x8x128xf32> to vector<8x128xf32>
    %1841 = arith.mulf %1840, %1837 : vector<8x128xf32>
    %1842 = arith.addf %1832, %1841 : vector<8x128xf32>
    %1843 = arith.mulf %1840, %1838 : vector<8x128xf32>
    %1844 = arith.addf %1834, %1843 : vector<8x128xf32>
    %c16_i32_907 = arith.constant 16 : i32
    %1845 = tpu.dynamic_rotate %1835 by %c16_i32_907 dim 1 : vector<8x128xf32>, i32 -> vector<8x128xf32>
    %c16_i32_908 = arith.constant 16 : i32
    %1846 = tpu.dynamic_rotate %1836 by %c16_i32_908 dim 1 : vector<8x128xf32>, i32 -> vector<8x128xf32>
    %c38_909 = arith.constant 38 : index
    %c0_910 = arith.constant 0 : index
    %c0_911 = arith.constant 0 : index
    %1847 = vector.load %arg7[%c38_909, %c0_910, %c0_911] : memref<54x8x128xf32, #tpu.memory_space<vmem>>, vector<1x8x128xf32>
    %1848 = vector.shape_cast %1847 : vector<1x8x128xf32> to vector<8x128xf32>
    %1849 = arith.mulf %1848, %1845 : vector<8x128xf32>
    %1850 = arith.addf %1842, %1849 : vector<8x128xf32>
    %1851 = arith.mulf %1848, %1846 : vector<8x128xf32>
    %1852 = arith.addf %1844, %1851 : vector<8x128xf32>
    %c15_i32_912 = arith.constant 15 : i32
    %1853 = tpu.dynamic_rotate %1835 by %c15_i32_912 dim 1 : vector<8x128xf32>, i32 -> vector<8x128xf32>
    %c15_i32_913 = arith.constant 15 : i32
    %1854 = tpu.dynamic_rotate %1836 by %c15_i32_913 dim 1 : vector<8x128xf32>, i32 -> vector<8x128xf32>
    %c40_914 = arith.constant 40 : index
    %c0_915 = arith.constant 0 : index
    %c0_916 = arith.constant 0 : index
    %1855 = vector.load %arg7[%c40_914, %c0_915, %c0_916] : memref<54x8x128xf32, #tpu.memory_space<vmem>>, vector<1x8x128xf32>
    %1856 = vector.shape_cast %1855 : vector<1x8x128xf32> to vector<8x128xf32>
    %1857 = arith.mulf %1856, %1853 : vector<8x128xf32>
    %1858 = arith.addf %1850, %1857 : vector<8x128xf32>
    %1859 = arith.mulf %1856, %1854 : vector<8x128xf32>
    %1860 = arith.addf %1852, %1859 : vector<8x128xf32>
    %c1_i32_917 = arith.constant 1 : i32
    %1861 = tpu.dynamic_rotate %1835 by %c1_i32_917 dim 1 : vector<8x128xf32>, i32 -> vector<8x128xf32>
    %c1_i32_918 = arith.constant 1 : i32
    %1862 = tpu.dynamic_rotate %1836 by %c1_i32_918 dim 1 : vector<8x128xf32>, i32 -> vector<8x128xf32>
    %c42_919 = arith.constant 42 : index
    %c0_920 = arith.constant 0 : index
    %c0_921 = arith.constant 0 : index
    %1863 = vector.load %arg7[%c42_919, %c0_920, %c0_921] : memref<54x8x128xf32, #tpu.memory_space<vmem>>, vector<1x8x128xf32>
    %1864 = vector.shape_cast %1863 : vector<1x8x128xf32> to vector<8x128xf32>
    %1865 = arith.mulf %1864, %1861 : vector<8x128xf32>
    %1866 = arith.addf %1858, %1865 : vector<8x128xf32>
    %1867 = arith.mulf %1864, %1862 : vector<8x128xf32>
    %1868 = arith.addf %1860, %1867 : vector<8x128xf32>
    %c44_922 = arith.constant 44 : index
    %c0_923 = arith.constant 0 : index
    %c0_924 = arith.constant 0 : index
    %1869 = vector.load %arg7[%c44_922, %c0_923, %c0_924] : memref<54x8x128xf32, #tpu.memory_space<vmem>>, vector<1x8x128xf32>
    %1870 = vector.shape_cast %1869 : vector<1x8x128xf32> to vector<8x128xf32>
    %1871 = arith.mulf %1870, %1835 : vector<8x128xf32>
    %1872 = arith.addf %1866, %1871 : vector<8x128xf32>
    %1873 = arith.mulf %1870, %1836 : vector<8x128xf32>
    %1874 = arith.addf %1868, %1873 : vector<8x128xf32>
    %c127_i32_925 = arith.constant 127 : i32
    %1875 = tpu.dynamic_rotate %1835 by %c127_i32_925 dim 1 : vector<8x128xf32>, i32 -> vector<8x128xf32>
    %c127_i32_926 = arith.constant 127 : i32
    %1876 = tpu.dynamic_rotate %1836 by %c127_i32_926 dim 1 : vector<8x128xf32>, i32 -> vector<8x128xf32>
    %c46_927 = arith.constant 46 : index
    %c0_928 = arith.constant 0 : index
    %c0_929 = arith.constant 0 : index
    %1877 = vector.load %arg7[%c46_927, %c0_928, %c0_929] : memref<54x8x128xf32, #tpu.memory_space<vmem>>, vector<1x8x128xf32>
    %1878 = vector.shape_cast %1877 : vector<1x8x128xf32> to vector<8x128xf32>
    %1879 = arith.mulf %1878, %1875 : vector<8x128xf32>
    %1880 = arith.addf %1872, %1879 : vector<8x128xf32>
    %1881 = arith.mulf %1878, %1876 : vector<8x128xf32>
    %1882 = arith.addf %1874, %1881 : vector<8x128xf32>
    %c113_i32_930 = arith.constant 113 : i32
    %1883 = tpu.dynamic_rotate %1835 by %c113_i32_930 dim 1 : vector<8x128xf32>, i32 -> vector<8x128xf32>
    %c113_i32_931 = arith.constant 113 : i32
    %1884 = tpu.dynamic_rotate %1836 by %c113_i32_931 dim 1 : vector<8x128xf32>, i32 -> vector<8x128xf32>
    %c48_932 = arith.constant 48 : index
    %c0_933 = arith.constant 0 : index
    %c0_934 = arith.constant 0 : index
    %1885 = vector.load %arg7[%c48_932, %c0_933, %c0_934] : memref<54x8x128xf32, #tpu.memory_space<vmem>>, vector<1x8x128xf32>
    %1886 = vector.shape_cast %1885 : vector<1x8x128xf32> to vector<8x128xf32>
    %1887 = arith.mulf %1886, %1883 : vector<8x128xf32>
    %1888 = arith.addf %1880, %1887 : vector<8x128xf32>
    %1889 = arith.mulf %1886, %1884 : vector<8x128xf32>
    %1890 = arith.addf %1882, %1889 : vector<8x128xf32>
    %c112_i32_935 = arith.constant 112 : i32
    %1891 = tpu.dynamic_rotate %1835 by %c112_i32_935 dim 1 : vector<8x128xf32>, i32 -> vector<8x128xf32>
    %c112_i32_936 = arith.constant 112 : i32
    %1892 = tpu.dynamic_rotate %1836 by %c112_i32_936 dim 1 : vector<8x128xf32>, i32 -> vector<8x128xf32>
    %c50_937 = arith.constant 50 : index
    %c0_938 = arith.constant 0 : index
    %c0_939 = arith.constant 0 : index
    %1893 = vector.load %arg7[%c50_937, %c0_938, %c0_939] : memref<54x8x128xf32, #tpu.memory_space<vmem>>, vector<1x8x128xf32>
    %1894 = vector.shape_cast %1893 : vector<1x8x128xf32> to vector<8x128xf32>
    %1895 = arith.mulf %1894, %1891 : vector<8x128xf32>
    %1896 = arith.addf %1888, %1895 : vector<8x128xf32>
    %1897 = arith.mulf %1894, %1892 : vector<8x128xf32>
    %1898 = arith.addf %1890, %1897 : vector<8x128xf32>
    %c111_i32_940 = arith.constant 111 : i32
    %1899 = tpu.dynamic_rotate %1835 by %c111_i32_940 dim 1 : vector<8x128xf32>, i32 -> vector<8x128xf32>
    %c111_i32_941 = arith.constant 111 : i32
    %1900 = tpu.dynamic_rotate %1836 by %c111_i32_941 dim 1 : vector<8x128xf32>, i32 -> vector<8x128xf32>
    %c52_942 = arith.constant 52 : index
    %c0_943 = arith.constant 0 : index
    %c0_944 = arith.constant 0 : index
    %1901 = vector.load %arg7[%c52_942, %c0_943, %c0_944] : memref<54x8x128xf32, #tpu.memory_space<vmem>>, vector<1x8x128xf32>
    %1902 = vector.shape_cast %1901 : vector<1x8x128xf32> to vector<8x128xf32>
    %1903 = arith.mulf %1902, %1899 : vector<8x128xf32>
    %1904 = arith.addf %1896, %1903 : vector<8x128xf32>
    %1905 = arith.mulf %1902, %1900 : vector<8x128xf32>
    %1906 = arith.addf %1898, %1905 : vector<8x128xf32>
    %1907 = arith.subf %1904, %1664 : vector<8x128xf32>
    %1908 = vector.broadcast %1690 : vector<1x1xf32> to vector<8x128xf32>
    %1909 = arith.mulf %1908, %1907 : vector<8x128xf32>
    %1910 = arith.addf %1664, %1909 : vector<8x128xf32>
    %1911 = arith.subf %1906, %1675 : vector<8x128xf32>
    %1912 = vector.broadcast %1690 : vector<1x1xf32> to vector<8x128xf32>
    %1913 = arith.mulf %1912, %1911 : vector<8x128xf32>
    %1914 = arith.addf %1675, %1913 : vector<8x128xf32>
    %1915 = vector.shape_cast %1910 : vector<8x128xf32> to vector<1x8x128xf32>
    %cst_945 = arith.constant dense<0xFF800000> : vector<1xf32>
    %1916 = vector.multi_reduction <maximumf>, %1915, %cst_945 [1, 2] : vector<1x8x128xf32> to vector<1xf32>
    %1917 = vector.shape_cast %1916 : vector<1xf32> to vector<1x1x1xf32>
    %1918 = vector.extract %1917[0, 0, 0] : f32 from vector<1x1x1xf32>
    %1919 = vector.broadcast %1918 : f32 to vector<1x1xf32>
    %1920 = vector.shape_cast %1914 : vector<8x128xf32> to vector<1x8x128xf32>
    %cst_946 = arith.constant dense<0xFF800000> : vector<1xf32>
    %1921 = vector.multi_reduction <maximumf>, %1920, %cst_946 [1, 2] : vector<1x8x128xf32> to vector<1xf32>
    %1922 = vector.shape_cast %1921 : vector<1xf32> to vector<1x1x1xf32>
    %1923 = vector.extract %1922[0, 0, 0] : f32 from vector<1x1x1xf32>
    %1924 = vector.broadcast %1923 : f32 to vector<1x1xf32>
    %1925 = arith.maximumf %1919, %1924 : vector<1x1xf32>
    %cst_947 = arith.constant 1.000000e+00 : f32
    %1926 = vector.broadcast %cst_947 : f32 to vector<1x1xf32>
    %1927 = arith.divf %1926, %1925 : vector<1x1xf32>
    %1928 = vector.broadcast %1927 : vector<1x1xf32> to vector<8x128xf32>
    %1929 = arith.mulf %1910, %1928 : vector<8x128xf32>
    %c0_948 = arith.constant 0 : index
    %c0_949 = arith.constant 0 : index
    %c0_950 = arith.constant 0 : index
    %c0_951 = arith.constant 0 : index
    %1930 = vector.load %arg6[%c0_948, %c0_949, %c0_950, %c0_951] : memref<1x2x8x128xf32, #tpu.memory_space<vmem>>, vector<1x1x8x128xf32>
    %1931 = vector.shape_cast %1930 : vector<1x1x8x128xf32> to vector<8x128xf32>
    %1932 = vector.shape_cast %1929 : vector<8x128xf32> to vector<1x1x8x128xf32>
    tpu.vector_store %arg6[%c0_948, %c0_949, %c0_950, %c0_951], %1932 {strides = array<i32>} : memref<1x2x8x128xf32, #tpu.memory_space<vmem>>, vector<1x1x8x128xf32>,
    %1933 = vector.broadcast %1927 : vector<1x1xf32> to vector<8x128xf32>
    %1934 = arith.mulf %1914, %1933 : vector<8x128xf32>
    %c0_952 = arith.constant 0 : index
    %c1_953 = arith.constant 1 : index
    %c0_954 = arith.constant 0 : index
    %c0_955 = arith.constant 0 : index
    %1935 = vector.load %arg6[%c0_952, %c1_953, %c0_954, %c0_955] : memref<1x2x8x128xf32, #tpu.memory_space<vmem>>, vector<1x1x8x128xf32>
    %1936 = vector.shape_cast %1935 : vector<1x1x8x128xf32> to vector<8x128xf32>
    %1937 = vector.shape_cast %1934 : vector<8x128xf32> to vector<1x1x8x128xf32>
    tpu.vector_store %arg6[%c0_952, %c1_953, %c0_954, %c0_955], %1937 {strides = array<i32>} : memref<1x2x8x128xf32, #tpu.memory_space<vmem>>, vector<1x1x8x128xf32>,
    return
  }
  func.func @transform_0(%arg0: i32) -> (i32, i32) {
    %c0_i32 = arith.constant 0 : i32
    %c0_i32_0 = arith.constant 0 : i32
    %c0_i32_1 = arith.constant 0 : i32
    return %c0_i32, %c0_i32_0 : i32, i32
  }
  func.func @transform_1(%arg0: i32) -> (i32, i32, i32, i32) {
    %c0_i32 = arith.constant 0 : i32
    %c0_i32_0 = arith.constant 0 : i32
    %c0_i32_1 = arith.constant 0 : i32
    %c0_i32_2 = arith.constant 0 : i32
    return %arg0, %c0_i32, %c0_i32_0, %c0_i32_1 : i32, i32, i32, i32
  }
  func.func @transform_2(%arg0: i32) -> (i32, i32, i32, i32) {
    %c0_i32 = arith.constant 0 : i32
    %c0_i32_0 = arith.constant 0 : i32
    %c0_i32_1 = arith.constant 0 : i32
    %c0_i32_2 = arith.constant 0 : i32
    return %arg0, %c0_i32, %c0_i32_0, %c0_i32_1 : i32, i32, i32, i32
  }
  func.func @transform_3(%arg0: i32) -> i32 {
    %c0_i32 = arith.constant 0 : i32
    %c0_i32_0 = arith.constant 0 : i32
    return %c0_i32 : i32
  }
  func.func @transform_4(%arg0: i32) -> i32 {
    %c0_i32 = arith.constant 0 : i32
    %c0_i32_0 = arith.constant 0 : i32
    return %c0_i32 : i32
  }
  func.func @transform_5(%arg0: i32) -> (i32, i32, i32, i32) {
    %c0_i32 = arith.constant 0 : i32
    %c0_i32_0 = arith.constant 0 : i32
    %c0_i32_1 = arith.constant 0 : i32
    %c0_i32_2 = arith.constant 0 : i32
    return %arg0, %c0_i32, %c0_i32_0, %c0_i32_1 : i32, i32, i32, i32
  }
}

</mosaic_0001>

<llo_original>
// kernel: convcrf3d_forward.1
$region0: #{convcrf3d_forward.1}
  #allocation0 [shape = 'u32[]', space=smem, size = 0x4, offset = 0x4, fixed_abs, tag = 'smem constant byte address 0x4 - core index']
  #allocation1 [shape = 'u32[144,128]{1,0:T(1,128)}', space=vmem, size = 0x12000, scoped, tag = 'internal scratch']
  #allocation2 [shape = 'f32[54,8,128]{2,1,0:T(8,128)}', space=vmem, size = 0x36000, scoped, tag = 'scratch operand']
  %s0 = inlined_call_operand.vmem [shape: s32[2,128], index: 0, kind: input, shape index: {}]
  %s1 = inlined_call_operand.vmem [shape: f32[1,2,8,128], index: 1, kind: input, shape index: {}]
  %s2 = inlined_call_operand.vmem [shape: f32[1,4,8,128], index: 2, kind: input, shape index: {}]
  %s3 = inlined_call_operand.vmem [shape: f32[4], index: 3, kind: input, shape index: {}]
  %s4 = inlined_call_operand.vmem [shape: f32[2], index: 4, kind: input, shape index: {}]
  %s5 = inlined_call_operand.vmem [shape: f32[1,2,8,128], index: 5, kind: output, shape index: {}]
  %s6 = sld [smem:[#allocation0]]
  $region38: #{convcrf3d_forward.1} parent=0
    _
  %s8 = ssub.s32 1, %s6
  %s9 = scalar_select 0, %s8, %s6
  $region1: #{convcrf3d_forward.1} parent=0
    #allocation3 [shape = 'u8[512]{0}', space=smem, size = 0x200, scoped, tag = 'input window, operand 3, single buffered']
    #allocation4 [shape = 's32[1]{0}', space=sflag, size = 0x4, scoped, tag = 'scoped memory for convcrf3d_forward.1']
    #allocation5 [shape = 'u8[512]{0}', space=smem, size = 0x200, scoped, tag = 'input window, operand 4, single buffered']
    #allocation6 [shape = 's32[1]{0}', space=sflag, size = 0x4, scoped, tag = 'scoped memory for convcrf3d_forward.1']
    %10 = vsyncpa [#allocation4], 0
    %11 = vsyncpa [#allocation6], 0
    // Predicated region
    $region2: #{convcrf3d_forward.1} parent=1 // pred_check
      _
    $region3: #{convcrf3d_forward.1} parent=1 // pred_check_branch
      %13 = sbr.rel (0) target = $region5
    $region4: #{convcrf3d_forward.1} parent=1 // pred_region
      _
    $region5: #{convcrf3d_forward.1} parent=1 // pred_fallthru
      _
    // Predicated region
    $region6: #{convcrf3d_forward.1} parent=1 // pred_check
      _
    $region7: #{convcrf3d_forward.1} parent=1 // pred_check_branch
      %15 = sbr.rel (0) target = $region9
    $region8: #{convcrf3d_forward.1} parent=1 // pred_region
      _
    $region9: #{convcrf3d_forward.1} parent=1 // pred_fallthru
      _
    // Predicated region
    $region10: #{convcrf3d_forward.1} parent=1 // pred_check
      _
    $region11: #{convcrf3d_forward.1} parent=1 // pred_check_branch
      %17 = sbr.rel (0) target = $region13
    $region12: #{convcrf3d_forward.1} parent=1 // pred_region
      _
    $region13: #{convcrf3d_forward.1} parent=1 // pred_fallthru
      _
    // Predicated region
    $region14: #{convcrf3d_forward.1} parent=1 // pred_check
      _
    $region15: #{convcrf3d_forward.1} parent=1 // pred_check_branch
      %19 = sbr.rel (0) target = $region17
    $region16: #{convcrf3d_forward.1} parent=1 // pred_region
      %s21 = ssub.s32 16, 16
      %22 = vsyncadd [#allocation4], %s21
      %s24 = sshll.u32 %s3, 4
      %s25 = int_to_ptr.vmem [resolvable:$true] %s24
      %27 = dma.vmem_to_smem %s25, 16, [#allocation3], [#allocation4]
    $region17: #{convcrf3d_forward.1} parent=1 // pred_fallthru
      _
    // Predicated region
    $region18: #{convcrf3d_forward.1} parent=1 // pred_check
      _
    $region19: #{convcrf3d_forward.1} parent=1 // pred_check_branch
      %29 = sbr.rel (0) target = $region21
    $region20: #{convcrf3d_forward.1} parent=1 // pred_region
      %s31 = ssub.s32 16, 16
      %32 = vsyncadd [#allocation6], %s31
      %s34 = sshll.u32 %s4, 4
      %s35 = int_to_ptr.vmem [resolvable:$true] %s34
      %37 = dma.vmem_to_smem %s35, 16, [#allocation5], [#allocation6]
    $region21: #{convcrf3d_forward.1} parent=1 // pred_fallthru
      _
    // Predicated region
    $region22: #{convcrf3d_forward.1} parent=1 // pred_check
      _
    $region23: #{convcrf3d_forward.1} parent=1 // pred_check_branch
      %39 = sbr.rel (0) target = $region25
    $region24: #{convcrf3d_forward.1} parent=1 // pred_region
      %40 = dma.done [#allocation4], 16
    $region25: #{convcrf3d_forward.1} parent=1 // pred_fallthru
      _
    // Predicated region
    $region26: #{convcrf3d_forward.1} parent=1 // pred_check
      _
    $region27: #{convcrf3d_forward.1} parent=1 // pred_check_branch
      %42 = sbr.rel (0) target = $region29
    $region28: #{convcrf3d_forward.1} parent=1 // pred_region
      %43 = dma.done [#allocation6], 16
    $region29: #{convcrf3d_forward.1} parent=1 // pred_fallthru
      _
    %44 = sfence
    %v45 = vlaneseq
    %v46 = vshrl.u32 %v45, 7
    %v47 = vld [vmem:[%s0] sm:$0x1]
    %v48 = vld [vmem:[%s0 + $0x1] sm:$0x1]
    %v49 = vld [vmem:[%s2] sm:$0xff]
    %s50 = scalar_lea.vmem %s2, 8
    %v51 = vld [vmem:[%s50] sm:$0xff]
    %s52 = scalar_lea.vmem %s2, 16
    %v53 = vld [vmem:[%s52] sm:$0xff]
    %s54 = scalar_lea.vmem %s2, 24
    %v55 = vld [vmem:[%s54] sm:$0xff]
    %s56 = sld [smem:[#allocation3]]
    %s57 = smul.f32 %s56, -0.5
    %s58 = sld [smem:[#allocation3 + $0x1]]
    %s59 = smul.f32 %s58, -0.5
    %s60 = sld [smem:[#allocation3 + $0x2]]
    %s61 = smul.f32 %s60, -0.5
    %s62 = sld [smem:[#allocation3 + $0x3]]
    %s63 = smul.f32 %s62, -0.5
    %s64 = scalar_lea.vmem [#allocation2], 208
    %65 = vst [vmem:[%s64] sm:$0xff] 1.0
    %s66 = scalar_lea.vmem [#allocation2], 216
    %67 = vst [vmem:[%s66] sm:$0xff] 1.0
    %68 = vrot.lane.b32.xlu0 %v49, 127
    %v69 = vpop.permute.xlu0 %68
    %70 = vrot.lane.b32.xlu0 %v51, 127
    %v71 = vpop.permute.xlu0 %70
    %72 = vrot.lane.b32.xlu0 %v53, 127
    %v73 = vpop.permute.xlu0 %72
    %74 = vrot.lane.b32.xlu0 %v55, 127
    %v75 = vpop.permute.xlu0 %74
    %vm76 = vcmp.lt.s32.totalorder %v48, 15
    %v77 = vsel %vm76, 1, 0
    %v78 = vcvt.s32.f32 %v77
    %vm79 = vcmp.ge.s32.totalorder %v48, 1
    %v80 = vsel %vm79, 1, 0
    %v81 = vcvt.s32.f32 %v80
    %v82 = vsub.f32 %v69, %v49
    %v83 = vmul.f32 %v82, %v82
    %v84 = vstv %s57
    %v85 = vmul.f32 %v83, %v84
    %v86 = vsub.f32 %v71, %v51
    %v87 = vmul.f32 %v86, %v86
    %v88 = vstv %s59
    %v89 = vmul.f32 %v87, %v88
    %v90 = vadd.f32 %v85, %v89
    %v91 = vsub.f32 %v73, %v53
    %v92 = vmul.f32 %v91, %v91
    %v93 = vstv %s61
    %v94 = vmul.f32 %v92, %v93
    %v95 = vadd.f32 %v90, %v94
    %v96 = vmul.f32 %v95, 1.442695
    %v97 = vpow.pop %v96
    %v98 = vlaneseq
    %v99 = vshrl.u32 %v98, 7
    %v100 = vsub.s32 0, %v99
    %v101 = vrot.slane %v78, %v100
    %v102 = vmul.f32 %v97, %v101
    %103 = vrot.lane.b32.xlu0 %v97, 1
    %v104 = vpop.permute.xlu0 %103
    %v105 = vlaneseq
    %v106 = vshrl.u32 %v105, 7
    %v107 = vsub.s32 0, %v106
    %v108 = vrot.slane %v81, %v107
    %v109 = vmul.f32 %v104, %v108
    %s110 = scalar_lea.vmem [#allocation2], 224
    %111 = vst [vmem:[%s110] sm:$0xff] %v102
    %s112 = scalar_lea.vmem [#allocation2], 192
    %113 = vst [vmem:[%s112] sm:$0xff] %v109
    %v114 = vadd.f32 %v102, 1.0
    %v115 = vadd.f32 %v114, %v109
    %v116 = vsub.f32 %v75, %v55
    %v117 = vmul.f32 %v116, %v116
    %v118 = vstv %s63
    %v119 = vmul.f32 %v117, %v118
    %v120 = vmul.f32 %v119, 1.442695
    %v121 = vpow.pop %v120
    %v122 = vmul.f32 %v121, %v101
    %123 = vrot.lane.b32.xlu0 %v121, 1
    %v124 = vpop.permute.xlu0 %123
    %v125 = vmul.f32 %v124, %v108
    %s126 = scalar_lea.vmem [#allocation2], 232
    %127 = vst [vmem:[%s126] sm:$0xff] %v122
    %s128 = scalar_lea.vmem [#allocation2], 200
    %129 = vst [vmem:[%s128] sm:$0xff] %v125
    %v130 = vadd.f32 %v122, 1.0
    %v131 = vadd.f32 %v130, %v125
    %132 = vrot.lane.b32.xlu0 %v49, 113
    %v133 = vpop.permute.xlu0 %132
    %134 = vrot.lane.b32.xlu0 %v51, 113
    %v135 = vpop.permute.xlu0 %134
    %136 = vrot.lane.b32.xlu0 %v53, 113
    %v137 = vpop.permute.xlu0 %136
    %138 = vrot.lane.b32.xlu0 %v55, 113
    %v139 = vpop.permute.xlu0 %138
    %vm140 = vcmp.lt.s32.totalorder %v47, 7
    %vm141 = vmand %vm140, %vm79
    %v142 = vsel %vm141, 1, 0
    %v143 = vcvt.s32.f32 %v142
    %vm144 = vcmp.ge.s32.totalorder %v47, 1
    %vm145 = vmand %vm144, %vm76
    %v146 = vsel %vm145, 1, 0
    %v147 = vcvt.s32.f32 %v146
    %v148 = vsub.f32 %v133, %v49
    %v149 = vmul.f32 %v148, %v148
    %v150 = vmul.f32 %v149, %v84
    %v151 = vsub.f32 %v135, %v51
    %v152 = vmul.f32 %v151, %v151
    %v153 = vmul.f32 %v152, %v88
    %v154 = vadd.f32 %v150, %v153
    %v155 = vsub.f32 %v137, %v53
    %v156 = vmul.f32 %v155, %v155
    %v157 = vmul.f32 %v156, %v93
    %v158 = vadd.f32 %v154, %v157
    %v159 = vmul.f32 %v158, 1.442695
    %v160 = vpow.pop %v159
    %v161 = vlaneseq
    %v162 = vshrl.u32 %v161, 7
    %v163 = vsub.s32 0, %v162
    %v164 = vrot.slane %v143, %v163
    %v165 = vmul.f32 %v160, %v164
    %166 = vrot.lane.b32.xlu0 %v160, 15
    %v167 = vpop.permute.xlu0 %166
    %v168 = vlaneseq
    %v169 = vshrl.u32 %v168, 7
    %v170 = vsub.s32 0, %v169
    %v171 = vrot.slane %v147, %v170
    %v172 = vmul.f32 %v167, %v171
    %s173 = scalar_lea.vmem [#allocation2], 240
    %174 = vst [vmem:[%s173] sm:$0xff] %v165
    %s175 = scalar_lea.vmem [#allocation2], 176
    %176 = vst [vmem:[%s175] sm:$0xff] %v172
    %v177 = vadd.f32 %v115, %v165
    %v178 = vadd.f32 %v177, %v172
    %v179 = vsub.f32 %v139, %v55
    %v180 = vmul.f32 %v179, %v179
    %v181 = vmul.f32 %v180, %v118
    %v182 = vmul.f32 %v181, 1.442695
    %v183 = vpow.pop %v182
    %v184 = vmul.f32 %v183, %v164
    %185 = vrot.lane.b32.xlu0 %v183, 15
    %v186 = vpop.permute.xlu0 %185
    %v187 = vmul.f32 %v186, %v171
    %s188 = scalar_lea.vmem [#allocation2], 248
    %189 = vst [vmem:[%s188] sm:$0xff] %v184
    %s190 = scalar_lea.vmem [#allocation2], 184
    %191 = vst [vmem:[%s190] sm:$0xff] %v187
    %v192 = vadd.f32 %v131, %v184
    %v193 = vadd.f32 %v192, %v187
    %194 = vrot.lane.b32.xlu0 %v49, 112
    %v195 = vpop.permute.xlu0 %194
    %196 = vrot.lane.b32.xlu0 %v51, 112
    %v197 = vpop.permute.xlu0 %196
    %198 = vrot.lane.b32.xlu0 %v53, 112
    %v199 = vpop.permute.xlu0 %198
    %200 = vrot.lane.b32.xlu0 %v55, 112
    %v201 = vpop.permute.xlu0 %200
    %v202 = vsel %vm140, 1, 0
    %v203 = vcvt.s32.f32 %v202
    %v204 = vsel %vm144, 1, 0
    %v205 = vcvt.s32.f32 %v204
    %v206 = vsub.f32 %v195, %v49
    %v207 = vmul.f32 %v206, %v206
    %v208 = vmul.f32 %v207, %v84
    %v209 = vsub.f32 %v197, %v51
    %v210 = vmul.f32 %v209, %v209
    %v211 = vmul.f32 %v210, %v88
    %v212 = vadd.f32 %v208, %v211
    %v213 = vsub.f32 %v199, %v53
    %v214 = vmul.f32 %v213, %v213
    %v215 = vmul.f32 %v214, %v93
    %v216 = vadd.f32 %v212, %v215
    %v217 = vmul.f32 %v216, 1.442695
    %v218 = vpow.pop %v217
    %v219 = vlaneseq
    %v220 = vshrl.u32 %v219, 7
    %v221 = vsub.s32 0, %v220
    %v222 = vrot.slane %v203, %v221
    %v223 = vmul.f32 %v218, %v222
    %224 = vrot.lane.b32.xlu0 %v218, 16
    %v225 = vpop.permute.xlu0 %224
    %v226 = vlaneseq
    %v227 = vshrl.u32 %v226, 7
    %v228 = vsub.s32 0, %v227
    %v229 = vrot.slane %v205, %v228
    %v230 = vmul.f32 %v225, %v229
    %s231 = scalar_lea.vmem [#allocation2], 256
    %232 = vst [vmem:[%s231] sm:$0xff] %v223
    %s233 = scalar_lea.vmem [#allocation2], 160
    %234 = vst [vmem:[%s233] sm:$0xff] %v230
    %v235 = vadd.f32 %v178, %v223
    %v236 = vadd.f32 %v235, %v230
    %v237 = vsub.f32 %v201, %v55
    %v238 = vmul.f32 %v237, %v237
    %v239 = vmul.f32 %v238, %v118
    %v240 = vmul.f32 %v239, 1.442695
    %v241 = vpow.pop %v240
    %v242 = vmul.f32 %v241, %v222
    %243 = vrot.lane.b32.xlu0 %v241, 16
    %v244 = vpop.permute.xlu0 %243
    %v245 = vmul.f32 %v244, %v229
    %s246 = scalar_lea.vmem [#allocation2], 264
    %247 = vst [vmem:[%s246] sm:$0xff] %v242
    %s248 = scalar_lea.vmem [#allocation2], 168
    %249 = vst [vmem:[%s248] sm:$0xff] %v245
    %v250 = vadd.f32 %v193, %v242
    %v251 = vadd.f32 %v250, %v245
    %252 = vrot.lane.b32.xlu0 %v49, 111
    %v253 = vpop.permute.xlu0 %252
    %254 = vrot.lane.b32.xlu0 %v51, 111
    %v255 = vpop.permute.xlu0 %254
    %256 = vrot.lane.b32.xlu0 %v53, 111
    %v257 = vpop.permute.xlu0 %256
    %258 = vrot.lane.b32.xlu0 %v55, 111
    %v259 = vpop.permute.xlu0 %258
    %vm260 = vmand %vm140, %vm76
    %v261 = vsel %vm260, 1, 0
    %v262 = vcvt.s32.f32 %v261
    %vm263 = vmand %vm144, %vm79
    %v264 = vsel %vm263, 1, 0
    %v265 = vcvt.s32.f32 %v264
    %v266 = vsub.f32 %v253, %v49
    %v267 = vmul.f32 %v266, %v266
    %v268 = vmul.f32 %v267, %v84
    %v269 = vsub.f32 %v255, %v51
    %v270 = vmul.f32 %v269, %v269
    %v271 = vmul.f32 %v270, %v88
    %v272 = vadd.f32 %v268, %v271
    %v273 = vsub.f32 %v257, %v53
    %v274 = vmul.f32 %v273, %v273
    %v275 = vmul.f32 %v274, %v93
    %v276 = vadd.f32 %v272, %v275
    %v277 = vmul.f32 %v276, 1.442695
    %v278 = vpow.pop %v277
    %v279 = vlaneseq
    %v280 = vshrl.u32 %v279, 7
    %v281 = vsub.s32 0, %v280
    %v282 = vrot.slane %v262, %v281
    %v283 = vmul.f32 %v278, %v282
    %284 = vrot.lane.b32.xlu0 %v278, 17
    %v285 = vpop.permute.xlu0 %284
    %v286 = vlaneseq
    %v287 = vshrl.u32 %v286, 7
    %v288 = vsub.s32 0, %v287
    %v289 = vrot.slane %v265, %v288
    %v290 = vmul.f32 %v285, %v289
    %s291 = scalar_lea.vmem [#allocation2], 272
    %292 = vst [vmem:[%s291] sm:$0xff] %v283
    %s293 = scalar_lea.vmem [#allocation2], 144
    %294 = vst [vmem:[%s293] sm:$0xff] %v290
    %v295 = vadd.f32 %v236, %v283
    %v296 = vadd.f32 %v295, %v290
    %v297 = vsub.f32 %v259, %v55
    %v298 = vmul.f32 %v297, %v297
    %v299 = vmul.f32 %v298, %v118
    %v300 = vmul.f32 %v299, 1.442695
    %v301 = vpow.pop %v300
    %v302 = vmul.f32 %v301, %v282
    %303 = vrot.lane.b32.xlu0 %v301, 17
    %v304 = vpop.permute.xlu0 %303
    %v305 = vmul.f32 %v304, %v289
    %s306 = scalar_lea.vmem [#allocation2], 280
    %307 = vst [vmem:[%s306] sm:$0xff] %v302
    %s308 = scalar_lea.vmem [#allocation2], 152
    %309 = vst [vmem:[%s308] sm:$0xff] %v305
    %v310 = vadd.f32 %v251, %v302
    %v311 = vadd.f32 %v310, %v305
    %v312 = vrot.slane %v49, 1
    %v313 = vrot.slane %v51, 1
    %v314 = vrot.slane %v53, 1
    %v315 = vrot.slane %v55, 1
    %316 = vrot.lane.b32.xlu0 %v312, 17
    %v317 = vpop.permute.xlu0 %316
    %318 = vrot.lane.b32.xlu0 %v313, 17
    %v319 = vpop.permute.xlu0 %318
    %320 = vrot.lane.b32.xlu0 %v314, 17
    %v321 = vpop.permute.xlu0 %320
    %322 = vrot.lane.b32.xlu0 %v315, 17
    %v323 = vpop.permute.xlu0 %322
    %vm324 = vcmp.lt.s32.totalorder %v46, 7
    %v325 = vsel %vm324, 1, 0
    %v326 = vcvt.s32.f32 %v325
    %v327 = vmul.f32 %v326, %v289
    %vm328 = vcmp.ge.s32.totalorder %v46, 1
    %v329 = vsel %vm328, 1, 0
    %v330 = vcvt.s32.f32 %v329
    %v331 = vmul.f32 %v330, %v282
    %v332 = vsub.f32 %v317, %v49
    %v333 = vmul.f32 %v332, %v332
    %v334 = vmul.f32 %v333, %v84
    %v335 = vsub.f32 %v319, %v51
    %v336 = vmul.f32 %v335, %v335
    %v337 = vmul.f32 %v336, %v88
    %v338 = vadd.f32 %v334, %v337
    %v339 = vsub.f32 %v321, %v53
    %v340 = vmul.f32 %v339, %v339
    %v341 = vmul.f32 %v340, %v93
    %v342 = vadd.f32 %v338, %v341
    %v343 = vmul.f32 %v342, 1.442695
    %v344 = vpow.pop %v343
    %v345 = vmul.f32 %v344, %v327
    %v346 = vrot.slane %v344, 7
    %347 = vrot.lane.b32.xlu0 %v346, 111
    %v348 = vpop.permute.xlu0 %347
    %v349 = vmul.f32 %v348, %v331
    %s350 = scalar_lea.vmem [#allocation2], 288
    %351 = vst [vmem:[%s350] sm:$0xff] %v345
    %s352 = scalar_lea.vmem [#allocation2], 128
    %353 = vst [vmem:[%s352] sm:$0xff] %v349
    %v354 = vadd.f32 %v296, %v345
    %v355 = vadd.f32 %v354, %v349
    %v356 = vsub.f32 %v323, %v55
    %v357 = vmul.f32 %v356, %v356
    %v358 = vmul.f32 %v357, %v118
    %v359 = vmul.f32 %v358, 1.442695
    %v360 = vpow.pop %v359
    %v361 = vmul.f32 %v360, %v327
    %v362 = vrot.slane %v360, 7
    %363 = vrot.lane.b32.xlu0 %v362, 111
    %v364 = vpop.permute.xlu0 %363
    %v365 = vmul.f32 %v364, %v331
    %s366 = scalar_lea.vmem [#allocation2], 296
    %367 = vst [vmem:[%s366] sm:$0xff] %v361
    %s368 = scalar_lea.vmem [#allocation2], 136
    %369 = vst [vmem:[%s368] sm:$0xff] %v365
    %v370 = vadd.f32 %v311, %v361
    %v371 = vadd.f32 %v370, %v365
    %372 = vrot.lane.b32.xlu0 %v312, 16
    %v373 = vpop.permute.xlu0 %372
    %374 = vrot.lane.b32.xlu0 %v313, 16
    %v375 = vpop.permute.xlu0 %374
    %376 = vrot.lane.b32.xlu0 %v314, 16
    %v377 = vpop.permute.xlu0 %376
    %378 = vrot.lane.b32.xlu0 %v315, 16
    %v379 = vpop.permute.xlu0 %378
    %v380 = vmul.f32 %v326, %v229
    %v381 = vmul.f32 %v330, %v222
    %v382 = vsub.f32 %v373, %v49
    %v383 = vmul.f32 %v382, %v382
    %v384 = vmul.f32 %v383, %v84
    %v385 = vsub.f32 %v375, %v51
    %v386 = vmul.f32 %v385, %v385
    %v387 = vmul.f32 %v386, %v88
    %v388 = vadd.f32 %v384, %v387
    %v389 = vsub.f32 %v377, %v53
    %v390 = vmul.f32 %v389, %v389
    %v391 = vmul.f32 %v390, %v93
    %v392 = vadd.f32 %v388, %v391
    %v393 = vmul.f32 %v392, 1.442695
    %v394 = vpow.pop %v393
    %v395 = vmul.f32 %v394, %v380
    %v396 = vrot.slane %v394, 7
    %397 = vrot.lane.b32.xlu0 %v396, 112
    %v398 = vpop.permute.xlu0 %397
    %v399 = vmul.f32 %v398, %v381
    %s400 = scalar_lea.vmem [#allocation2], 304
    %401 = vst [vmem:[%s400] sm:$0xff] %v395
    %s402 = scalar_lea.vmem [#allocation2], 112
    %403 = vst [vmem:[%s402] sm:$0xff] %v399
    %v404 = vadd.f32 %v355, %v395
    %v405 = vadd.f32 %v404, %v399
    %v406 = vsub.f32 %v379, %v55
    %v407 = vmul.f32 %v406, %v406
    %v408 = vmul.f32 %v407, %v118
    %v409 = vmul.f32 %v408, 1.442695
    %v410 = vpow.pop %v409
    %v411 = vmul.f32 %v410, %v380
    %v412 = vrot.slane %v410, 7
    %413 = vrot.lane.b32.xlu0 %v412, 112
    %v414 = vpop.permute.xlu0 %413
    %v415 = vmul.f32 %v414, %v381
    %s416 = scalar_lea.vmem [#allocation2], 312
    %417 = vst [vmem:[%s416] sm:$0xff] %v411
    %s418 = scalar_lea.vmem [#allocation2], 120
    %419 = vst [vmem:[%s418] sm:$0xff] %v415
    %v420 = vadd.f32 %v371, %v411
    %v421 = vadd.f32 %v420, %v415
    %422 = vrot.lane.b32.xlu0 %v312, 15
    %v423 = vpop.permute.xlu0 %422
    %424 = vrot.lane.b32.xlu0 %v313, 15
    %v425 = vpop.permute.xlu0 %424
    %426 = vrot.lane.b32.xlu0 %v314, 15
    %v427 = vpop.permute.xlu0 %426
    %428 = vrot.lane.b32.xlu0 %v315, 15
    %v429 = vpop.permute.xlu0 %428
    %v430 = vmul.f32 %v326, %v171
    %v431 = vmul.f32 %v330, %v164
    %v432 = vsub.f32 %v423, %v49
    %v433 = vmul.f32 %v432, %v432
    %v434 = vmul.f32 %v433, %v84
    %v435 = vsub.f32 %v425, %v51
    %v436 = vmul.f32 %v435, %v435
    %v437 = vmul.f32 %v436, %v88
    %v438 = vadd.f32 %v434, %v437
    %v439 = vsub.f32 %v427, %v53
    %v440 = vmul.f32 %v439, %v439
    %v441 = vmul.f32 %v440, %v93
    %v442 = vadd.f32 %v438, %v441
    %v443 = vmul.f32 %v442, 1.442695
    %v444 = vpow.pop %v443
    %v445 = vmul.f32 %v444, %v430
    %v446 = vrot.slane %v444, 7
    %447 = vrot.lane.b32.xlu0 %v446, 113
    %v448 = vpop.permute.xlu0 %447
    %v449 = vmul.f32 %v448, %v431
    %s450 = scalar_lea.vmem [#allocation2], 320
    %451 = vst [vmem:[%s450] sm:$0xff] %v445
    %s452 = scalar_lea.vmem [#allocation2], 96
    %453 = vst [vmem:[%s452] sm:$0xff] %v449
    %v454 = vadd.f32 %v405, %v445
    %v455 = vadd.f32 %v454, %v449
    %v456 = vsub.f32 %v429, %v55
    %v457 = vmul.f32 %v456, %v456
    %v458 = vmul.f32 %v457, %v118
    %v459 = vmul.f32 %v458, 1.442695
    %v460 = vpow.pop %v459
    %v461 = vmul.f32 %v460, %v430
    %v462 = vrot.slane %v460, 7
    %463 = vrot.lane.b32.xlu0 %v462, 113
    %v464 = vpop.permute.xlu0 %463
    %v465 = vmul.f32 %v464, %v431
    %s466 = scalar_lea.vmem [#allocation2], 328
    %467 = vst [vmem:[%s466] sm:$0xff] %v461
    %s468 = scalar_lea.vmem [#allocation2], 104
    %469 = vst [vmem:[%s468] sm:$0xff] %v465
    %v470 = vadd.f32 %v421, %v461
    %v471 = vadd.f32 %v470, %v465
    %472 = vrot.lane.b32.xlu0 %v312, 1
    %v473 = vpop.permute.xlu0 %472
    %474 = vrot.lane.b32.xlu0 %v313, 1
    %v475 = vpop.permute.xlu0 %474
    %476 = vrot.lane.b32.xlu0 %v314, 1
    %v477 = vpop.permute.xlu0 %476
    %478 = vrot.lane.b32.xlu0 %v315, 1
    %v479 = vpop.permute.xlu0 %478
    %v480 = vmul.f32 %v326, %v108
    %v481 = vmul.f32 %v330, %v101
    %v482 = vsub.f32 %v473, %v49
    %v483 = vmul.f32 %v482, %v482
    %v484 = vmul.f32 %v483, %v84
    %v485 = vsub.f32 %v475, %v51
    %v486 = vmul.f32 %v485, %v485
    %v487 = vmul.f32 %v486, %v88
    %v488 = vadd.f32 %v484, %v487
    %v489 = vsub.f32 %v477, %v53
    %v490 = vmul.f32 %v489, %v489
    %v491 = vmul.f32 %v490, %v93
    %v492 = vadd.f32 %v488, %v491
    %v493 = vmul.f32 %v492, 1.442695
    %v494 = vpow.pop %v493
    %v495 = vmul.f32 %v494, %v480
    %v496 = vrot.slane %v494, 7
    %497 = vrot.lane.b32.xlu0 %v496, 127
    %v498 = vpop.permute.xlu0 %497
    %v499 = vmul.f32 %v498, %v481
    %s500 = scalar_lea.vmem [#allocation2], 336
    %501 = vst [vmem:[%s500] sm:$0xff] %v495
    %s502 = scalar_lea.vmem [#allocation2], 80
    %503 = vst [vmem:[%s502] sm:$0xff] %v499
    %v504 = vadd.f32 %v455, %v495
    %v505 = vadd.f32 %v504, %v499
    %v506 = vsub.f32 %v479, %v55
    %v507 = vmul.f32 %v506, %v506
    %v508 = vmul.f32 %v507, %v118
    %v509 = vmul.f32 %v508, 1.442695
    %v510 = vpow.pop %v509
    %v511 = vmul.f32 %v510, %v480
    %v512 = vrot.slane %v510, 7
    %513 = vrot.lane.b32.xlu0 %v512, 127
    %v514 = vpop.permute.xlu0 %513
    %v515 = vmul.f32 %v514, %v481
    %s516 = scalar_lea.vmem [#allocation2], 344
    %517 = vst [vmem:[%s516] sm:$0xff] %v511
    %s518 = scalar_lea.vmem [#allocation2], 88
    %519 = vst [vmem:[%s518] sm:$0xff] %v515
    %v520 = vadd.f32 %v471, %v511
    %v521 = vadd.f32 %v520, %v515
    %v522 = vsub.f32 %v312, %v49
    %v523 = vmul.f32 %v522, %v522
    %v524 = vmul.f32 %v523, %v84
    %v525 = vsub.f32 %v313, %v51
    %v526 = vmul.f32 %v525, %v525
    %v527 = vmul.f32 %v526, %v88
    %v528 = vadd.f32 %v524, %v527
    %v529 = vsub.f32 %v314, %v53
    %v530 = vmul.f32 %v529, %v529
    %v531 = vmul.f32 %v530, %v93
    %v532 = vadd.f32 %v528, %v531
    %v533 = vmul.f32 %v532, 1.442695
    %v534 = vpow.pop %v533
    %v535 = vmul.f32 %v534, %v326
    %v536 = vrot.slane %v534, 7
    %v537 = vmul.f32 %v536, %v330
    %s538 = scalar_lea.vmem [#allocation2], 352
    %539 = vst [vmem:[%s538] sm:$0xff] %v535
    %s540 = scalar_lea.vmem [#allocation2], 64
    %541 = vst [vmem:[%s540] sm:$0xff] %v537
    %v542 = vadd.f32 %v505, %v535
    %v543 = vadd.f32 %v542, %v537
    %v544 = vsub.f32 %v315, %v55
    %v545 = vmul.f32 %v544, %v544
    %v546 = vmul.f32 %v545, %v118
    %v547 = vmul.f32 %v546, 1.442695
    %v548 = vpow.pop %v547
    %v549 = vmul.f32 %v548, %v326
    %v550 = vrot.slane %v548, 7
    %v551 = vmul.f32 %v550, %v330
    %s552 = scalar_lea.vmem [#allocation2], 360
    %553 = vst [vmem:[%s552] sm:$0xff] %v549
    %s554 = scalar_lea.vmem [#allocation2], 72
    %555 = vst [vmem:[%s554] sm:$0xff] %v551
    %v556 = vadd.f32 %v521, %v549
    %v557 = vadd.f32 %v556, %v551
    %558 = vrot.lane.b32.xlu0 %v312, 127
    %v559 = vpop.permute.xlu0 %558
    %560 = vrot.lane.b32.xlu0 %v313, 127
    %v561 = vpop.permute.xlu0 %560
    %562 = vrot.lane.b32.xlu0 %v314, 127
    %v563 = vpop.permute.xlu0 %562
    %564 = vrot.lane.b32.xlu0 %v315, 127
    %v565 = vpop.permute.xlu0 %564
    %v566 = vmul.f32 %v326, %v101
    %v567 = vmul.f32 %v330, %v108
    %v568 = vsub.f32 %v559, %v49
    %v569 = vmul.f32 %v568, %v568
    %v570 = vmul.f32 %v569, %v84
    %v571 = vsub.f32 %v561, %v51
    %v572 = vmul.f32 %v571, %v571
    %v573 = vmul.f32 %v572, %v88
    %v574 = vadd.f32 %v570, %v573
    %v575 = vsub.f32 %v563, %v53
    %v576 = vmul.f32 %v575, %v575
    %v577 = vmul.f32 %v576, %v93
    %v578 = vadd.f32 %v574, %v577
    %v579 = vmul.f32 %v578, 1.442695
    %v580 = vpow.pop %v579
    %v581 = vmul.f32 %v580, %v566
    %v582 = vrot.slane %v580, 7
    %583 = vrot.lane.b32.xlu0 %v582, 1
    %v584 = vpop.permute.xlu0 %583
    %v585 = vmul.f32 %v584, %v567
    %s586 = scalar_lea.vmem [#allocation2], 368
    %587 = vst [vmem:[%s586] sm:$0xff] %v581
    %s588 = scalar_lea.vmem [#allocation2], 48
    %589 = vst [vmem:[%s588] sm:$0xff] %v585
    %v590 = vadd.f32 %v543, %v581
    %v591 = vadd.f32 %v590, %v585
    %v592 = vsub.f32 %v565, %v55
    %v593 = vmul.f32 %v592, %v592
    %v594 = vmul.f32 %v593, %v118
    %v595 = vmul.f32 %v594, 1.442695
    %v596 = vpow.pop %v595
    %v597 = vmul.f32 %v596, %v566
    %v598 = vrot.slane %v596, 7
    %599 = vrot.lane.b32.xlu0 %v598, 1
    %v600 = vpop.permute.xlu0 %599
    %v601 = vmul.f32 %v600, %v567
    %s602 = scalar_lea.vmem [#allocation2], 376
    %603 = vst [vmem:[%s602] sm:$0xff] %v597
    %s604 = scalar_lea.vmem [#allocation2], 56
    %605 = vst [vmem:[%s604] sm:$0xff] %v601
    %v606 = vadd.f32 %v557, %v597
    %v607 = vadd.f32 %v606, %v601
    %608 = vrot.lane.b32.xlu0 %v312, 113
    %v609 = vpop.permute.xlu0 %608
    %610 = vrot.lane.b32.xlu0 %v313, 113
    %v611 = vpop.permute.xlu0 %610
    %612 = vrot.lane.b32.xlu0 %v314, 113
    %v613 = vpop.permute.xlu0 %612
    %614 = vrot.lane.b32.xlu0 %v315, 113
    %v615 = vpop.permute.xlu0 %614
    %v616 = vmul.f32 %v326, %v164
    %v617 = vmul.f32 %v330, %v171
    %v618 = vsub.f32 %v609, %v49
    %v619 = vmul.f32 %v618, %v618
    %v620 = vmul.f32 %v619, %v84
    %v621 = vsub.f32 %v611, %v51
    %v622 = vmul.f32 %v621, %v621
    %v623 = vmul.f32 %v622, %v88
    %v624 = vadd.f32 %v620, %v623
    %v625 = vsub.f32 %v613, %v53
    %v626 = vmul.f32 %v625, %v625
    %v627 = vmul.f32 %v626, %v93
    %v628 = vadd.f32 %v624, %v627
    %v629 = vmul.f32 %v628, 1.442695
    %v630 = vpow.pop %v629
    %v631 = vmul.f32 %v630, %v616
    %v632 = vrot.slane %v630, 7
    %633 = vrot.lane.b32.xlu0 %v632, 15
    %v634 = vpop.permute.xlu0 %633
    %v635 = vmul.f32 %v634, %v617
    %s636 = scalar_lea.vmem [#allocation2], 384
    %637 = vst [vmem:[%s636] sm:$0xff] %v631
    %s638 = scalar_lea.vmem [#allocation2], 32
    %639 = vst [vmem:[%s638] sm:$0xff] %v635
    %v640 = vadd.f32 %v591, %v631
    %v641 = vadd.f32 %v640, %v635
    %v642 = vsub.f32 %v615, %v55
    %v643 = vmul.f32 %v642, %v642
    %v644 = vmul.f32 %v643, %v118
    %v645 = vmul.f32 %v644, 1.442695
    %v646 = vpow.pop %v645
    %v647 = vmul.f32 %v646, %v616
    %v648 = vrot.slane %v646, 7
    %649 = vrot.lane.b32.xlu0 %v648, 15
    %v650 = vpop.permute.xlu0 %649
    %v651 = vmul.f32 %v650, %v617
    %s652 = scalar_lea.vmem [#allocation2], 392
    %653 = vst [vmem:[%s652] sm:$0xff] %v647
    %s654 = scalar_lea.vmem [#allocation2], 40
    %655 = vst [vmem:[%s654] sm:$0xff] %v651
    %v656 = vadd.f32 %v607, %v647
    %v657 = vadd.f32 %v656, %v651
    %658 = vrot.lane.b32.xlu0 %v312, 112
    %v659 = vpop.permute.xlu0 %658
    %660 = vrot.lane.b32.xlu0 %v313, 112
    %v661 = vpop.permute.xlu0 %660
    %662 = vrot.lane.b32.xlu0 %v314, 112
    %v663 = vpop.permute.xlu0 %662
    %664 = vrot.lane.b32.xlu0 %v315, 112
    %v665 = vpop.permute.xlu0 %664
    %v666 = vmul.f32 %v326, %v222
    %v667 = vmul.f32 %v330, %v229
    %v668 = vsub.f32 %v659, %v49
    %v669 = vmul.f32 %v668, %v668
    %v670 = vmul.f32 %v669, %v84
    %v671 = vsub.f32 %v661, %v51
    %v672 = vmul.f32 %v671, %v671
    %v673 = vmul.f32 %v672, %v88
    %v674 = vadd.f32 %v670, %v673
    %v675 = vsub.f32 %v663, %v53
    %v676 = vmul.f32 %v675, %v675
    %v677 = vmul.f32 %v676, %v93
    %v678 = vadd.f32 %v674, %v677
    %v679 = vmul.f32 %v678, 1.442695
    %v680 = vpow.pop %v679
    %v681 = vmul.f32 %v680, %v666
    %v682 = vrot.slane %v680, 7
    %683 = vrot.lane.b32.xlu0 %v682, 16
    %v684 = vpop.permute.xlu0 %683
    %v685 = vmul.f32 %v684, %v667
    %s686 = scalar_lea.vmem [#allocation2], 400
    %687 = vst [vmem:[%s686] sm:$0xff] %v681
    %s688 = scalar_lea.vmem [#allocation2], 16
    %689 = vst [vmem:[%s688] sm:$0xff] %v685
    %v690 = vadd.f32 %v641, %v681
    %v691 = vadd.f32 %v690, %v685
    %v692 = vsub.f32 %v665, %v55
    %v693 = vmul.f32 %v692, %v692
    %v694 = vmul.f32 %v693, %v118
    %v695 = vmul.f32 %v694, 1.442695
    %v696 = vpow.pop %v695
    %v697 = vmul.f32 %v696, %v666
    %v698 = vrot.slane %v696, 7
    %699 = vrot.lane.b32.xlu0 %v698, 16
    %v700 = vpop.permute.xlu0 %699
    %v701 = vmul.f32 %v700, %v667
    %s702 = scalar_lea.vmem [#allocation2], 408
    %703 = vst [vmem:[%s702] sm:$0xff] %v697
    %s704 = scalar_lea.vmem [#allocation2], 24
    %705 = vst [vmem:[%s704] sm:$0xff] %v701
    %v706 = vadd.f32 %v657, %v697
    %v707 = vadd.f32 %v706, %v701
    %708 = vrot.lane.b32.xlu0 %v312, 111
    %v709 = vpop.permute.xlu0 %708
    %710 = vrot.lane.b32.xlu0 %v313, 111
    %v711 = vpop.permute.xlu0 %710
    %712 = vrot.lane.b32.xlu0 %v314, 111
    %v713 = vpop.permute.xlu0 %712
    %714 = vrot.lane.b32.xlu0 %v315, 111
    %v715 = vpop.permute.xlu0 %714
    %v716 = vmul.f32 %v326, %v282
    %v717 = vmul.f32 %v330, %v289
    %v718 = vsub.f32 %v709, %v49
    %v719 = vmul.f32 %v718, %v718
    %v720 = vmul.f32 %v719, %v84
    %v721 = vsub.f32 %v711, %v51
    %v722 = vmul.f32 %v721, %v721
    %v723 = vmul.f32 %v722, %v88
    %v724 = vadd.f32 %v720, %v723
    %v725 = vsub.f32 %v713, %v53
    %v726 = vmul.f32 %v725, %v725
    %v727 = vmul.f32 %v726, %v93
    %v728 = vadd.f32 %v724, %v727
    %v729 = vmul.f32 %v728, 1.442695
    %v730 = vpow.pop %v729
    %v731 = vmul.f32 %v730, %v716
    %v732 = vrot.slane %v730, 7
    %733 = vrot.lane.b32.xlu0 %v732, 17
    %v734 = vpop.permute.xlu0 %733
    %v735 = vmul.f32 %v734, %v717
    %s736 = scalar_lea.vmem [#allocation2], 416
    %737 = vst [vmem:[%s736] sm:$0xff] %v731
    %738 = vst [vmem:[#allocation2] sm:$0xff] %v735
    %v739 = vadd.f32 %v691, %v731
    %v740 = vadd.f32 %v739, %v735
    %v741 = vsub.f32 %v715, %v55
    %v742 = vmul.f32 %v741, %v741
    %v743 = vmul.f32 %v742, %v118
    %v744 = vmul.f32 %v743, 1.442695
    %v745 = vpow.pop %v744
    %v746 = vmul.f32 %v745, %v716
    %v747 = vrot.slane %v745, 7
    %748 = vrot.lane.b32.xlu0 %v747, 17
    %v749 = vpop.permute.xlu0 %748
    %v750 = vmul.f32 %v749, %v717
    %s751 = scalar_lea.vmem [#allocation2], 424
    %752 = vst [vmem:[%s751] sm:$0xff] %v746
    %s753 = scalar_lea.vmem [#allocation2], 8
    %754 = vst [vmem:[%s753] sm:$0xff] %v750
    %v755 = vadd.f32 %v707, %v746
    %v756 = vadd.f32 %v755, %v750
    %s757 = sld [smem:[#allocation5]]
    %v758 = vadd.f32 %v740, 1e-20
    %v759 = vstv %s757
    %v760 = vrcp.pop %v758
    %v761 = vmul.f32 %v759, %v760
    %s762 = sld [smem:[#allocation5 + $0x1]]
    %v763 = vadd.f32 %v756, 1e-20
    %v764 = vstv %s762
    %v765 = vrcp.pop %v763
    %v766 = vmul.f32 %v764, %v765
    %v767 = vld [vmem:[#allocation2] sm:$0xff]
    %v768 = vmul.f32 %v767, %v761
    %v769 = vld [vmem:[%s753] sm:$0xff]
    %v770 = vmul.f32 %v769, %v766
    %v771 = vadd.f32 %v768, %v770
    %772 = vst [vmem:[#allocation2] sm:$0xff] %v771
    %v773 = vld [vmem:[%s688] sm:$0xff]
    %v774 = vmul.f32 %v773, %v761
    %v775 = vld [vmem:[%s704] sm:$0xff]
    %v776 = vmul.f32 %v775, %v766
    %v777 = vadd.f32 %v774, %v776
    %778 = vst [vmem:[%s688] sm:$0xff] %v777
    %v779 = vld [vmem:[%s638] sm:$0xff]
    %v780 = vmul.f32 %v779, %v761
    %v781 = vld [vmem:[%s654] sm:$0xff]
    %v782 = vmul.f32 %v781, %v766
    %v783 = vadd.f32 %v780, %v782
    %784 = vst [vmem:[%s638] sm:$0xff] %v783
    %v785 = vld [vmem:[%s588] sm:$0xff]
    %v786 = vmul.f32 %v785, %v761
    %v787 = vld [vmem:[%s604] sm:$0xff]
    %v788 = vmul.f32 %v787, %v766
    %v789 = vadd.f32 %v786, %v788
    %790 = vst [vmem:[%s588] sm:$0xff] %v789
    %v791 = vld [vmem:[%s540] sm:$0xff]
    %v792 = vmul.f32 %v791, %v761
    %v793 = vld [vmem:[%s554] sm:$0xff]
    %v794 = vmul.f32 %v793, %v766
    %v795 = vadd.f32 %v792, %v794
    %796 = vst [vmem:[%s540] sm:$0xff] %v795
    %v797 = vld [vmem:[%s502] sm:$0xff]
    %v798 = vmul.f32 %v797, %v761
    %v799 = vld [vmem:[%s518] sm:$0xff]
    %v800 = vmul.f32 %v799, %v766
    %v801 = vadd.f32 %v798, %v800
    %802 = vst [vmem:[%s502] sm:$0xff] %v801
    %v803 = vld [vmem:[%s452] sm:$0xff]
    %v804 = vmul.f32 %v803, %v761
    %v805 = vld [vmem:[%s468] sm:$0xff]
    %v806 = vmul.f32 %v805, %v766
    %v807 = vadd.f32 %v804, %v806
    %808 = vst [vmem:[%s452] sm:$0xff] %v807
    %v809 = vld [vmem:[%s402] sm:$0xff]
    %v810 = vmul.f32 %v809, %v761
    %v811 = vld [vmem:[%s418] sm:$0xff]
    %v812 = vmul.f32 %v811, %v766
    %v813 = vadd.f32 %v810, %v812
    %814 = vst [vmem:[%s402] sm:$0xff] %v813
    %v815 = vld [vmem:[%s352] sm:$0xff]
    %v816 = vmul.f32 %v815, %v761
    %v817 = vld [vmem:[%s368] sm:$0xff]
    %v818 = vmul.f32 %v817, %v766
    %v819 = vadd.f32 %v816, %v818
    %820 = vst [vmem:[%s352] sm:$0xff] %v819
    %v821 = vld [vmem:[%s293] sm:$0xff]
    %v822 = vmul.f32 %v821, %v761
    %v823 = vld [vmem:[%s308] sm:$0xff]
    %v824 = vmul.f32 %v823, %v766
    %v825 = vadd.f32 %v822, %v824
    %826 = vst [vmem:[%s293] sm:$0xff] %v825
    %v827 = vld [vmem:[%s233] sm:$0xff]
    %v828 = vmul.f32 %v827, %v761
    %v829 = vld [vmem:[%s248] sm:$0xff]
    %v830 = vmul.f32 %v829, %v766
    %v831 = vadd.f32 %v828, %v830
    %832 = vst [vmem:[%s233] sm:$0xff] %v831
    %v833 = vld [vmem:[%s175] sm:$0xff]
    %v834 = vmul.f32 %v833, %v761
    %v835 = vld [vmem:[%s190] sm:$0xff]
    %v836 = vmul.f32 %v835, %v766
    %v837 = vadd.f32 %v834, %v836
    %838 = vst [vmem:[%s175] sm:$0xff] %v837
    %v839 = vld [vmem:[%s112] sm:$0xff]
    %v840 = vmul.f32 %v839, %v761
    %v841 = vld [vmem:[%s128] sm:$0xff]
    %v842 = vmul.f32 %v841, %v766
    %v843 = vadd.f32 %v840, %v842
    %844 = vst [vmem:[%s112] sm:$0xff] %v843
    %v845 = vld [vmem:[%s64] sm:$0xff]
    %v846 = vmul.f32 %v845, %v761
    %v847 = vld [vmem:[%s66] sm:$0xff]
    %v848 = vmul.f32 %v847, %v766
    %v849 = vadd.f32 %v846, %v848
    %850 = vst [vmem:[%s64] sm:$0xff] %v849
    %v851 = vld [vmem:[%s110] sm:$0xff]
    %v852 = vmul.f32 %v851, %v761
    %v853 = vld [vmem:[%s126] sm:$0xff]
    %v854 = vmul.f32 %v853, %v766
    %v855 = vadd.f32 %v852, %v854
    %856 = vst [vmem:[%s110] sm:$0xff] %v855
    %v857 = vld [vmem:[%s173] sm:$0xff]
    %v858 = vmul.f32 %v857, %v761
    %v859 = vld [vmem:[%s188] sm:$0xff]
    %v860 = vmul.f32 %v859, %v766
    %v861 = vadd.f32 %v858, %v860
    %862 = vst [vmem:[%s173] sm:$0xff] %v861
    %v863 = vld [vmem:[%s231] sm:$0xff]
    %v864 = vmul.f32 %v863, %v761
    %v865 = vld [vmem:[%s246] sm:$0xff]
    %v866 = vmul.f32 %v865, %v766
    %v867 = vadd.f32 %v864, %v866
    %868 = vst [vmem:[%s231] sm:$0xff] %v867
    %v869 = vld [vmem:[%s291] sm:$0xff]
    %v870 = vmul.f32 %v869, %v761
    %v871 = vld [vmem:[%s306] sm:$0xff]
    %v872 = vmul.f32 %v871, %v766
    %v873 = vadd.f32 %v870, %v872
    %874 = vst [vmem:[%s291] sm:$0xff] %v873
    %v875 = vld [vmem:[%s350] sm:$0xff]
    %v876 = vmul.f32 %v875, %v761
    %v877 = vld [vmem:[%s366] sm:$0xff]
    %v878 = vmul.f32 %v877, %v766
    %v879 = vadd.f32 %v876, %v878
    %880 = vst [vmem:[%s350] sm:$0xff] %v879
    %v881 = vld [vmem:[%s400] sm:$0xff]
    %v882 = vmul.f32 %v881, %v761
    %v883 = vld [vmem:[%s416] sm:$0xff]
    %v884 = vmul.f32 %v883, %v766
    %v885 = vadd.f32 %v882, %v884
    %886 = vst [vmem:[%s400] sm:$0xff] %v885
    %v887 = vld [vmem:[%s450] sm:$0xff]
    %v888 = vmul.f32 %v887, %v761
    %v889 = vld [vmem:[%s466] sm:$0xff]
    %v890 = vmul.f32 %v889, %v766
    %v891 = vadd.f32 %v888, %v890
    %892 = vst [vmem:[%s450] sm:$0xff] %v891
    %v893 = vld [vmem:[%s500] sm:$0xff]
    %v894 = vmul.f32 %v893, %v761
    %v895 = vld [vmem:[%s516] sm:$0xff]
    %v896 = vmul.f32 %v895, %v766
    %v897 = vadd.f32 %v894, %v896
    %898 = vst [vmem:[%s500] sm:$0xff] %v897
    %v899 = vld [vmem:[%s538] sm:$0xff]
    %v900 = vmul.f32 %v899, %v761
    %v901 = vld [vmem:[%s552] sm:$0xff]
    %v902 = vmul.f32 %v901, %v766
    %v903 = vadd.f32 %v900, %v902
    %904 = vst [vmem:[%s538] sm:$0xff] %v903
    %v905 = vld [vmem:[%s586] sm:$0xff]
    %v906 = vmul.f32 %v905, %v761
    %v907 = vld [vmem:[%s602] sm:$0xff]
    %v908 = vmul.f32 %v907, %v766
    %v909 = vadd.f32 %v906, %v908
    %910 = vst [vmem:[%s586] sm:$0xff] %v909
    %v911 = vld [vmem:[%s636] sm:$0xff]
    %v912 = vmul.f32 %v911, %v761
    %v913 = vld [vmem:[%s652] sm:$0xff]
    %v914 = vmul.f32 %v913, %v766
    %v915 = vadd.f32 %v912, %v914
    %916 = vst [vmem:[%s636] sm:$0xff] %v915
    %v917 = vld [vmem:[%s686] sm:$0xff]
    %v918 = vmul.f32 %v917, %v761
    %v919 = vld [vmem:[%s702] sm:$0xff]
    %v920 = vmul.f32 %v919, %v766
    %v921 = vadd.f32 %v918, %v920
    %922 = vst [vmem:[%s686] sm:$0xff] %v921
    %v923 = vld [vmem:[%s736] sm:$0xff]
    %v924 = vmul.f32 %v923, %v761
    %v925 = vld [vmem:[%s751] sm:$0xff]
    %v926 = vmul.f32 %v925, %v766
    %v927 = vadd.f32 %v924, %v926
    %928 = vst [vmem:[%s736] sm:$0xff] %v927
    %v929 = vld [vmem:[%s1] sm:$0xff]
    %s930 = scalar_lea.vmem %s1, 8
    %v931 = vld [vmem:[%s930] sm:$0xff]
    %v932 = vrot.slane %v929, 7
    %v933 = vrot.slane %v931, 7
    %934 = vrot.lane.b32.xlu0 %v932, 17
    %v935 = vpop.permute.xlu0 %934
    %936 = vrot.lane.b32.xlu0 %v933, 17
    %v937 = vpop.permute.xlu0 %936
    %v938 = vld [vmem:[#allocation2] sm:$0xff]
    %v939 = vmul.f32 %v938, %v935
    %v940 = vadd.f32 %v939, 0.0
    %v941 = vmul.f32 %v938, %v937
    %v942 = vadd.f32 %v941, 0.0
    %943 = vrot.lane.b32.xlu0 %v932, 16
    %v944 = vpop.permute.xlu0 %943
    %945 = vrot.lane.b32.xlu0 %v933, 16
    %v946 = vpop.permute.xlu0 %945
    %v947 = vld [vmem:[%s688] sm:$0xff]
    %v948 = vmul.f32 %v947, %v944
    %v949 = vadd.f32 %v940, %v948
    %v950 = vmul.f32 %v947, %v946
    %v951 = vadd.f32 %v942, %v950
    %952 = vrot.lane.b32.xlu0 %v932, 15
    %v953 = vpop.permute.xlu0 %952
    %954 = vrot.lane.b32.xlu0 %v933, 15
    %v955 = vpop.permute.xlu0 %954
    %v956 = vld [vmem:[%s638] sm:$0xff]
    %v957 = vmul.f32 %v956, %v953
    %v958 = vadd.f32 %v949, %v957
    %v959 = vmul.f32 %v956, %v955
    %v960 = vadd.f32 %v951, %v959
    %961 = vrot.lane.b32.xlu0 %v932, 1
    %v962 = vpop.permute.xlu0 %961
    %963 = vrot.lane.b32.xlu0 %v933, 1
    %v964 = vpop.permute.xlu0 %963
    %v965 = vld [vmem:[%s588] sm:$0xff]
    %v966 = vmul.f32 %v965, %v962
    %v967 = vadd.f32 %v958, %v966
    %v968 = vmul.f32 %v965, %v964
    %v969 = vadd.f32 %v960, %v968
    %v970 = vld [vmem:[%s540] sm:$0xff]
    %v971 = vmul.f32 %v970, %v932
    %v972 = vadd.f32 %v967, %v971
    %v973 = vmul.f32 %v970, %v933
    %v974 = vadd.f32 %v969, %v973
    %975 = vrot.lane.b32.xlu0 %v932, 127
    %v976 = vpop.permute.xlu0 %975
    %977 = vrot.lane.b32.xlu0 %v933, 127
    %v978 = vpop.permute.xlu0 %977
    %v979 = vld [vmem:[%s502] sm:$0xff]
    %v980 = vmul.f32 %v979, %v976
    %v981 = vadd.f32 %v972, %v980
    %v982 = vmul.f32 %v979, %v978
    %v983 = vadd.f32 %v974, %v982
    %984 = vrot.lane.b32.xlu0 %v932, 113
    %v985 = vpop.permute.xlu0 %984
    %986 = vrot.lane.b32.xlu0 %v933, 113
    %v987 = vpop.permute.xlu0 %986
    %v988 = vld [vmem:[%s452] sm:$0xff]
    %v989 = vmul.f32 %v988, %v985
    %v990 = vadd.f32 %v981, %v989
    %v991 = vmul.f32 %v988, %v987
    %v992 = vadd.f32 %v983, %v991
    %993 = vrot.lane.b32.xlu0 %v932, 112
    %v994 = vpop.permute.xlu0 %993
    %995 = vrot.lane.b32.xlu0 %v933, 112
    %v996 = vpop.permute.xlu0 %995
    %v997 = vld [vmem:[%s402] sm:$0xff]
    %v998 = vmul.f32 %v997, %v994
    %v999 = vadd.f32 %v990, %v998
    %v1000 = vmul.f32 %v997, %v996
    %v1001 = vadd.f32 %v992, %v1000
    %1002 = vrot.lane.b32.xlu0 %v932, 111
    %v1003 = vpop.permute.xlu0 %1002
    %1004 = vrot.lane.b32.xlu0 %v933, 111
    %v1005 = vpop.permute.xlu0 %1004
    %v1006 = vld [vmem:[%s352] sm:$0xff]
    %v1007 = vmul.f32 %v1006, %v1003
    %v1008 = vadd.f32 %v999, %v1007
    %v1009 = vmul.f32 %v1006, %v1005
    %v1010 = vadd.f32 %v1001, %v1009
    %1011 = vrot.lane.b32.xlu0 %v929, 17
    %v1012 = vpop.permute.xlu0 %1011
    %1013 = vrot.lane.b32.xlu0 %v931, 17
    %v1014 = vpop.permute.xlu0 %1013
    %v1015 = vld [vmem:[%s293] sm:$0xff]
    %v1016 = vmul.f32 %v1015, %v1012
    %v1017 = vadd.f32 %v1008, %v1016
    %v1018 = vmul.f32 %v1015, %v1014
    %v1019 = vadd.f32 %v1010, %v1018
    %1020 = vrot.lane.b32.xlu0 %v929, 16
    %v1021 = vpop.permute.xlu0 %1020
    %1022 = vrot.lane.b32.xlu0 %v931, 16
    %v1023 = vpop.permute.xlu0 %1022
    %v1024 = vld [vmem:[%s233] sm:$0xff]
    %v1025 = vmul.f32 %v1024, %v1021
    %v1026 = vadd.f32 %v1017, %v1025
    %v1027 = vmul.f32 %v1024, %v1023
    %v1028 = vadd.f32 %v1019, %v1027
    %1029 = vrot.lane.b32.xlu0 %v929, 15
    %v1030 = vpop.permute.xlu0 %1029
    %1031 = vrot.lane.b32.xlu0 %v931, 15
    %v1032 = vpop.permute.xlu0 %1031
    %v1033 = vld [vmem:[%s175] sm:$0xff]
    %v1034 = vmul.f32 %v1033, %v1030
    %v1035 = vadd.f32 %v1026, %v1034
    %v1036 = vmul.f32 %v1033, %v1032
    %v1037 = vadd.f32 %v1028, %v1036
    %1038 = vrot.lane.b32.xlu0 %v929, 1
    %v1039 = vpop.permute.xlu0 %1038
    %1040 = vrot.lane.b32.xlu0 %v931, 1
    %v1041 = vpop.permute.xlu0 %1040
    %v1042 = vld [vmem:[%s112] sm:$0xff]
    %v1043 = vmul.f32 %v1042, %v1039
    %v1044 = vadd.f32 %v1035, %v1043
    %v1045 = vmul.f32 %v1042, %v1041
    %v1046 = vadd.f32 %v1037, %v1045
    %v1047 = vld [vmem:[%s64] sm:$0xff]
    %v1048 = vmul.f32 %v1047, %v929
    %v1049 = vadd.f32 %v1044, %v1048
    %v1050 = vmul.f32 %v1047, %v931
    %v1051 = vadd.f32 %v1046, %v1050
    %1052 = vrot.lane.b32.xlu0 %v929, 127
    %v1053 = vpop.permute.xlu0 %1052
    %1054 = vrot.lane.b32.xlu0 %v931, 127
    %v1055 = vpop.permute.xlu0 %1054
    %v1056 = vld [vmem:[%s110] sm:$0xff]
    %v1057 = vmul.f32 %v1056, %v1053
    %v1058 = vadd.f32 %v1049, %v1057
    %v1059 = vmul.f32 %v1056, %v1055
    %v1060 = vadd.f32 %v1051, %v1059
    %1061 = vrot.lane.b32.xlu0 %v929, 113
    %v1062 = vpop.permute.xlu0 %1061
    %1063 = vrot.lane.b32.xlu0 %v931, 113
    %v1064 = vpop.permute.xlu0 %1063
    %v1065 = vld [vmem:[%s173] sm:$0xff]
    %v1066 = vmul.f32 %v1065, %v1062
    %v1067 = vadd.f32 %v1058, %v1066
    %v1068 = vmul.f32 %v1065, %v1064
    %v1069 = vadd.f32 %v1060, %v1068
    %1070 = vrot.lane.b32.xlu0 %v929, 112
    %v1071 = vpop.permute.xlu0 %1070
    %1072 = vrot.lane.b32.xlu0 %v931, 112
    %v1073 = vpop.permute.xlu0 %1072
    %v1074 = vld [vmem:[%s231] sm:$0xff]
    %v1075 = vmul.f32 %v1074, %v1071
    %v1076 = vadd.f32 %v1067, %v1075
    %v1077 = vmul.f32 %v1074, %v1073
    %v1078 = vadd.f32 %v1069, %v1077
    %1079 = vrot.lane.b32.xlu0 %v929, 111
    %v1080 = vpop.permute.xlu0 %1079
    %1081 = vrot.lane.b32.xlu0 %v931, 111
    %v1082 = vpop.permute.xlu0 %1081
    %v1083 = vld [vmem:[%s291] sm:$0xff]
    %v1084 = vmul.f32 %v1083, %v1080
    %v1085 = vadd.f32 %v1076, %v1084
    %v1086 = vmul.f32 %v1083, %v1082
    %v1087 = vadd.f32 %v1078, %v1086
    %v1088 = vrot.slane %v929, 1
    %v1089 = vrot.slane %v931, 1
    %1090 = vrot.lane.b32.xlu0 %v1088, 17
    %v1091 = vpop.permute.xlu0 %1090
    %1092 = vrot.lane.b32.xlu0 %v1089, 17
    %v1093 = vpop.permute.xlu0 %1092
    %v1094 = vld [vmem:[%s350] sm:$0xff]
    %v1095 = vmul.f32 %v1094, %v1091
    %v1096 = vadd.f32 %v1085, %v1095
    %v1097 = vmul.f32 %v1094, %v1093
    %v1098 = vadd.f32 %v1087, %v1097
    %1099 = vrot.lane.b32.xlu0 %v1088, 16
    %v1100 = vpop.permute.xlu0 %1099
    %1101 = vrot.lane.b32.xlu0 %v1089, 16
    %v1102 = vpop.permute.xlu0 %1101
    %v1103 = vld [vmem:[%s400] sm:$0xff]
    %v1104 = vmul.f32 %v1103, %v1100
    %v1105 = vadd.f32 %v1096, %v1104
    %v1106 = vmul.f32 %v1103, %v1102
    %v1107 = vadd.f32 %v1098, %v1106
    %1108 = vrot.lane.b32.xlu0 %v1088, 15
    %v1109 = vpop.permute.xlu0 %1108
    %1110 = vrot.lane.b32.xlu0 %v1089, 15
    %v1111 = vpop.permute.xlu0 %1110
    %v1112 = vld [vmem:[%s450] sm:$0xff]
    %v1113 = vmul.f32 %v1112, %v1109
    %v1114 = vadd.f32 %v1105, %v1113
    %v1115 = vmul.f32 %v1112, %v1111
    %v1116 = vadd.f32 %v1107, %v1115
    %1117 = vrot.lane.b32.xlu0 %v1088, 1
    %v1118 = vpop.permute.xlu0 %1117
    %1119 = vrot.lane.b32.xlu0 %v1089, 1
    %v1120 = vpop.permute.xlu0 %1119
    %v1121 = vld [vmem:[%s500] sm:$0xff]
    %v1122 = vmul.f32 %v1121, %v1118
    %v1123 = vadd.f32 %v1114, %v1122
    %v1124 = vmul.f32 %v1121, %v1120
    %v1125 = vadd.f32 %v1116, %v1124
    %v1126 = vld [vmem:[%s538] sm:$0xff]
    %v1127 = vmul.f32 %v1126, %v1088
    %v1128 = vadd.f32 %v1123, %v1127
    %v1129 = vmul.f32 %v1126, %v1089
    %v1130 = vadd.f32 %v1125, %v1129
    %1131 = vrot.lane.b32.xlu0 %v1088, 127
    %v1132 = vpop.permute.xlu0 %1131
    %1133 = vrot.lane.b32.xlu0 %v1089, 127
    %v1134 = vpop.permute.xlu0 %1133
    %v1135 = vld [vmem:[%s586] sm:$0xff]
    %v1136 = vmul.f32 %v1135, %v1132
    %v1137 = vadd.f32 %v1128, %v1136
    %v1138 = vmul.f32 %v1135, %v1134
    %v1139 = vadd.f32 %v1130, %v1138
    %1140 = vrot.lane.b32.xlu0 %v1088, 113
    %v1141 = vpop.permute.xlu0 %1140
    %1142 = vrot.lane.b32.xlu0 %v1089, 113
    %v1143 = vpop.permute.xlu0 %1142
    %v1144 = vld [vmem:[%s636] sm:$0xff]
    %v1145 = vmul.f32 %v1144, %v1141
    %v1146 = vadd.f32 %v1137, %v1145
    %v1147 = vmul.f32 %v1144, %v1143
    %v1148 = vadd.f32 %v1139, %v1147
    %1149 = vrot.lane.b32.xlu0 %v1088, 112
    %v1150 = vpop.permute.xlu0 %1149
    %1151 = vrot.lane.b32.xlu0 %v1089, 112
    %v1152 = vpop.permute.xlu0 %1151
    %v1153 = vld [vmem:[%s686] sm:$0xff]
    %v1154 = vmul.f32 %v1153, %v1150
    %v1155 = vadd.f32 %v1146, %v1154
    %v1156 = vmul.f32 %v1153, %v1152
    %v1157 = vadd.f32 %v1148, %v1156
    %1158 = vrot.lane.b32.xlu0 %v1088, 111
    %v1159 = vpop.permute.xlu0 %1158
    %1160 = vrot.lane.b32.xlu0 %v1089, 111
    %v1161 = vpop.permute.xlu0 %1160
    %v1162 = vld [vmem:[%s736] sm:$0xff]
    %v1163 = vmul.f32 %v1162, %v1159
    %v1164 = vadd.f32 %v1155, %v1163
    %v1165 = vmul.f32 %v1162, %v1161
    %v1166 = vadd.f32 %v1157, %v1165
    %v1167 = vsub.f32 %v1164, %v929
    %v1168 = vmul.f32 %v1167, 0.2
    %v1169 = vadd.f32 %v929, %v1168
    %v1170 = vsub.f32 %v1169, %v929
    %v1171 = vand.u32 2147483647, %v1170
    %1172 = vadd.xlane.f32.xlu0 %v1171
    %v1173 = vpop.xlane.xlu0 %1172
    %v1174 = vrot.slane %v1173, 4
    %v1175 = vadd.f32 %v1173, %v1174
    %v1176 = vrot.slane %v1175, 2
    %v1177 = vadd.f32 %v1175, %v1176
    %v1178 = vrot.slane %v1177, 1
    %v1179 = vadd.f32 %v1177, %v1178
    %s1180 = vtos %v1179
    %v1181 = vstv %s1180
    %v1182 = vsub.f32 %v1166, %v931
    %v1183 = vmul.f32 %v1182, 0.2
    %v1184 = vadd.f32 %v931, %v1183
    %v1185 = vsub.f32 %v1184, %v931
    %v1186 = vand.u32 2147483647, %v1185
    %1187 = vadd.xlane.f32.xlu0 %v1186
    %v1188 = vpop.xlane.xlu0 %1187
    %v1189 = vrot.slane %v1188, 4
    %v1190 = vadd.f32 %v1188, %v1189
    %v1191 = vrot.slane %v1190, 2
    %v1192 = vadd.f32 %v1190, %v1191
    %v1193 = vrot.slane %v1192, 1
    %v1194 = vadd.f32 %v1192, %v1193
    %s1195 = vtos %v1194
    %v1196 = vstv %s1195
    %v1197 = vadd.f32 %v1181, %v1196
    %vm1198 = vcmp.ge.f32.partialorder %v1197, 20.48
    %v1199 = vsel %vm1198, 1, 0
    %v1200 = vcvt.s32.f32 %v1199
    %v1201 = vmul.f32 %v1200, 0.2
    %v1202 = vrot.slane %v1169, 7
    %v1203 = vrot.slane %v1184, 7
    %1204 = vrot.lane.b32.xlu0 %v1202, 17
    %v1205 = vpop.permute.xlu0 %1204
    %1206 = vrot.lane.b32.xlu0 %v1203, 17
    %v1207 = vpop.permute.xlu0 %1206
    %v1208 = vmul.f32 %v938, %v1205
    %v1209 = vadd.f32 %v1208, 0.0
    %v1210 = vmul.f32 %v938, %v1207
    %v1211 = vadd.f32 %v1210, 0.0
    %1212 = vrot.lane.b32.xlu0 %v1202, 16
    %v1213 = vpop.permute.xlu0 %1212
    %1214 = vrot.lane.b32.xlu0 %v1203, 16
    %v1215 = vpop.permute.xlu0 %1214
    %v1216 = vmul.f32 %v947, %v1213
    %v1217 = vadd.f32 %v1209, %v1216
    %v1218 = vmul.f32 %v947, %v1215
    %v1219 = vadd.f32 %v1211, %v1218
    %1220 = vrot.lane.b32.xlu0 %v1202, 15
    %v1221 = vpop.permute.xlu0 %1220
    %1222 = vrot.lane.b32.xlu0 %v1203, 15
    %v1223 = vpop.permute.xlu0 %1222
    %v1224 = vmul.f32 %v956, %v1221
    %v1225 = vadd.f32 %v1217, %v1224
    %v1226 = vmul.f32 %v956, %v1223
    %v1227 = vadd.f32 %v1219, %v1226
    %1228 = vrot.lane.b32.xlu0 %v1202, 1
    %v1229 = vpop.permute.xlu0 %1228
    %1230 = vrot.lane.b32.xlu0 %v1203, 1
    %v1231 = vpop.permute.xlu0 %1230
    %v1232 = vmul.f32 %v965, %v1229
    %v1233 = vadd.f32 %v1225, %v1232
    %v1234 = vmul.f32 %v965, %v1231
    %v1235 = vadd.f32 %v1227, %v1234
    %v1236 = vmul.f32 %v970, %v1202
    %v1237 = vadd.f32 %v1233, %v1236
    %v1238 = vmul.f32 %v970, %v1203
    %v1239 = vadd.f32 %v1235, %v1238
    %1240 = vrot.lane.b32.xlu0 %v1202, 127
    %v1241 = vpop.permute.xlu0 %1240
    %1242 = vrot.lane.b32.xlu0 %v1203, 127
    %v1243 = vpop.permute.xlu0 %1242
    %v1244 = vmul.f32 %v979, %v1241
    %v1245 = vadd.f32 %v1237, %v1244
    %v1246 = vmul.f32 %v979, %v1243
    %v1247 = vadd.f32 %v1239, %v1246
    %1248 = vrot.lane.b32.xlu0 %v1202, 113
    %v1249 = vpop.permute.xlu0 %1248
    %1250 = vrot.lane.b32.xlu0 %v1203, 113
    %v1251 = vpop.permute.xlu0 %1250
    %v1252 = vmul.f32 %v988, %v1249
    %v1253 = vadd.f32 %v1245, %v1252
    %v1254 = vmul.f32 %v988, %v1251
    %v1255 = vadd.f32 %v1247, %v1254
    %1256 = vrot.lane.b32.xlu0 %v1202, 112
    %v1257 = vpop.permute.xlu0 %1256
    %1258 = vrot.lane.b32.xlu0 %v1203, 112
    %v1259 = vpop.permute.xlu0 %1258
    %v1260 = vmul.f32 %v997, %v1257
    %v1261 = vadd.f32 %v1253, %v1260
    %v1262 = vmul.f32 %v997, %v1259
    %v1263 = vadd.f32 %v1255, %v1262
    %1264 = vrot.lane.b32.xlu0 %v1202, 111
    %v1265 = vpop.permute.xlu0 %1264
    %1266 = vrot.lane.b32.xlu0 %v1203, 111
    %v1267 = vpop.permute.xlu0 %1266
    %v1268 = vmul.f32 %v1006, %v1265
    %v1269 = vadd.f32 %v1261, %v1268
    %v1270 = vmul.f32 %v1006, %v1267
    %v1271 = vadd.f32 %v1263, %v1270
    %1272 = vrot.lane.b32.xlu0 %v1169, 17
    %v1273 = vpop.permute.xlu0 %1272
    %1274 = vrot.lane.b32.xlu0 %v1184, 17
    %v1275 = vpop.permute.xlu0 %1274
    %v1276 = vmul.f32 %v1015, %v1273
    %v1277 = vadd.f32 %v1269, %v1276
    %v1278 = vmul.f32 %v1015, %v1275
    %v1279 = vadd.f32 %v1271, %v1278
    %1280 = vrot.lane.b32.xlu0 %v1169, 16
    %v1281 = vpop.permute.xlu0 %1280
    %1282 = vrot.lane.b32.xlu0 %v1184, 16
    %v1283 = vpop.permute.xlu0 %1282
    %v1284 = vmul.f32 %v1024, %v1281
    %v1285 = vadd.f32 %v1277, %v1284
    %v1286 = vmul.f32 %v1024, %v1283
    %v1287 = vadd.f32 %v1279, %v1286
    %1288 = vrot.lane.b32.xlu0 %v1169, 15
    %v1289 = vpop.permute.xlu0 %1288
    %1290 = vrot.lane.b32.xlu0 %v1184, 15
    %v1291 = vpop.permute.xlu0 %1290
    %v1292 = vmul.f32 %v1033, %v1289
    %v1293 = vadd.f32 %v1285, %v1292
    %v1294 = vmul.f32 %v1033, %v1291
    %v1295 = vadd.f32 %v1287, %v1294
    %1296 = vrot.lane.b32.xlu0 %v1169, 1
    %v1297 = vpop.permute.xlu0 %1296
    %1298 = vrot.lane.b32.xlu0 %v1184, 1
    %v1299 = vpop.permute.xlu0 %1298
    %v1300 = vmul.f32 %v1042, %v1297
    %v1301 = vadd.f32 %v1293, %v1300
    %v1302 = vmul.f32 %v1042, %v1299
    %v1303 = vadd.f32 %v1295, %v1302
    %v1304 = vmul.f32 %v1047, %v1169
    %v1305 = vadd.f32 %v1301, %v1304
    %v1306 = vmul.f32 %v1047, %v1184
    %v1307 = vadd.f32 %v1303, %v1306
    %1308 = vrot.lane.b32.xlu0 %v1169, 127
    %v1309 = vpop.permute.xlu0 %1308
    %1310 = vrot.lane.b32.xlu0 %v1184, 127
    %v1311 = vpop.permute.xlu0 %1310
    %v1312 = vmul.f32 %v1056, %v1309
    %v1313 = vadd.f32 %v1305, %v1312
    %v1314 = vmul.f32 %v1056, %v1311
    %v1315 = vadd.f32 %v1307, %v1314
    %1316 = vrot.lane.b32.xlu0 %v1169, 113
    %v1317 = vpop.permute.xlu0 %1316
    %1318 = vrot.lane.b32.xlu0 %v1184, 113
    %v1319 = vpop.permute.xlu0 %1318
    %v1320 = vmul.f32 %v1065, %v1317
    %v1321 = vadd.f32 %v1313, %v1320
    %v1322 = vmul.f32 %v1065, %v1319
    %v1323 = vadd.f32 %v1315, %v1322
    %1324 = vrot.lane.b32.xlu0 %v1169, 112
    %v1325 = vpop.permute.xlu0 %1324
    %1326 = vrot.lane.b32.xlu0 %v1184, 112
    %v1327 = vpop.permute.xlu0 %1326
    %v1328 = vmul.f32 %v1074, %v1325
    %v1329 = vadd.f32 %v1321, %v1328
    %v1330 = vmul.f32 %v1074, %v1327
    %v1331 = vadd.f32 %v1323, %v1330
    %1332 = vrot.lane.b32.xlu0 %v1169, 111
    %v1333 = vpop.permute.xlu0 %1332
    %1334 = vrot.lane.b32.xlu0 %v1184, 111
    %v1335 = vpop.permute.xlu0 %1334
    %v1336 = vmul.f32 %v1083, %v1333
    %v1337 = vadd.f32 %v1329, %v1336
    %v1338 = vmul.f32 %v1083, %v1335
    %v1339 = vadd.f32 %v1331, %v1338
    %v1340 = vrot.slane %v1169, 1
    %v1341 = vrot.slane %v1184, 1
    %1342 = vrot.lane.b32.xlu0 %v1340, 17
    %v1343 = vpop.permute.xlu0 %1342
    %1344 = vrot.lane.b32.xlu0 %v1341, 17
    %v1345 = vpop.permute.xlu0 %1344
    %v1346 = vmul.f32 %v1094, %v1343
    %v1347 = vadd.f32 %v1337, %v1346
    %v1348 = vmul.f32 %v1094, %v1345
    %v1349 = vadd.f32 %v1339, %v1348
    %1350 = vrot.lane.b32.xlu0 %v1340, 16
    %v1351 = vpop.permute.xlu0 %1350
    %1352 = vrot.lane.b32.xlu0 %v1341, 16
    %v1353 = vpop.permute.xlu0 %1352
    %v1354 = vmul.f32 %v1103, %v1351
    %v1355 = vadd.f32 %v1347, %v1354
    %v1356 = vmul.f32 %v1103, %v1353
    %v1357 = vadd.f32 %v1349, %v1356
    %1358 = vrot.lane.b32.xlu0 %v1340, 15
    %v1359 = vpop.permute.xlu0 %1358
    %1360 = vrot.lane.b32.xlu0 %v1341, 15
    %v1361 = vpop.permute.xlu0 %1360
    %v1362 = vmul.f32 %v1112, %v1359
    %v1363 = vadd.f32 %v1355, %v1362
    %v1364 = vmul.f32 %v1112, %v1361
    %v1365 = vadd.f32 %v1357, %v1364
    %1366 = vrot.lane.b32.xlu0 %v1340, 1
    %v1367 = vpop.permute.xlu0 %1366
    %1368 = vrot.lane.b32.xlu0 %v1341, 1
    %v1369 = vpop.permute.xlu0 %1368
    %v1370 = vmul.f32 %v1121, %v1367
    %v1371 = vadd.f32 %v1363, %v1370
    %v1372 = vmul.f32 %v1121, %v1369
    %v1373 = vadd.f32 %v1365, %v1372
    %v1374 = vmul.f32 %v1126, %v1340
    %v1375 = vadd.f32 %v1371, %v1374
    %v1376 = vmul.f32 %v1126, %v1341
    %v1377 = vadd.f32 %v1373, %v1376
    %1378 = vrot.lane.b32.xlu0 %v1340, 127
    %v1379 = vpop.permute.xlu0 %1378
    %1380 = vrot.lane.b32.xlu0 %v1341, 127
    %v1381 = vpop.permute.xlu0 %1380
    %v1382 = vmul.f32 %v1135, %v1379
    %v1383 = vadd.f32 %v1375, %v1382
    %v1384 = vmul.f32 %v1135, %v1381
    %v1385 = vadd.f32 %v1377, %v1384
    %1386 = vrot.lane.b32.xlu0 %v1340, 113
    %v1387 = vpop.permute.xlu0 %1386
    %1388 = vrot.lane.b32.xlu0 %v1341, 113
    %v1389 = vpop.permute.xlu0 %1388
    %v1390 = vmul.f32 %v1144, %v1387
    %v1391 = vadd.f32 %v1383, %v1390
    %v1392 = vmul.f32 %v1144, %v1389
    %v1393 = vadd.f32 %v1385, %v1392
    %1394 = vrot.lane.b32.xlu0 %v1340, 112
    %v1395 = vpop.permute.xlu0 %1394
    %1396 = vrot.lane.b32.xlu0 %v1341, 112
    %v1397 = vpop.permute.xlu0 %1396
    %v1398 = vmul.f32 %v1153, %v1395
    %v1399 = vadd.f32 %v1391, %v1398
    %v1400 = vmul.f32 %v1153, %v1397
    %v1401 = vadd.f32 %v1393, %v1400
    %1402 = vrot.lane.b32.xlu0 %v1340, 111
    %v1403 = vpop.permute.xlu0 %1402
    %1404 = vrot.lane.b32.xlu0 %v1341, 111
    %v1405 = vpop.permute.xlu0 %1404
    %v1406 = vmul.f32 %v1162, %v1403
    %v1407 = vadd.f32 %v1399, %v1406
    %v1408 = vmul.f32 %v1162, %v1405
    %v1409 = vadd.f32 %v1401, %v1408
    %v1410 = vsub.f32 %v1407, %v1169
    %v1411 = vmul.f32 %v1201, %v1410
    %v1412 = vadd.f32 %v1169, %v1411
    %v1413 = vsub.f32 %v1412, %v1169
    %v1414 = vand.u32 2147483647, %v1413
    %1415 = vadd.xlane.f32.xlu0 %v1414
    %v1416 = vpop.xlane.xlu0 %1415
    %v1417 = vrot.slane %v1416, 4
    %v1418 = vadd.f32 %v1416, %v1417
    %v1419 = vrot.slane %v1418, 2
    %v1420 = vadd.f32 %v1418, %v1419
    %v1421 = vrot.slane %v1420, 1
    %v1422 = vadd.f32 %v1420, %v1421
    %s1423 = vtos %v1422
    %v1424 = vstv %s1423
    %v1425 = vsub.f32 %v1409, %v1184
    %v1426 = vmul.f32 %v1201, %v1425
    %v1427 = vadd.f32 %v1184, %v1426
    %v1428 = vsub.f32 %v1427, %v1184
    %v1429 = vand.u32 2147483647, %v1428
    %1430 = vadd.xlane.f32.xlu0 %v1429
    %v1431 = vpop.xlane.xlu0 %1430
    %v1432 = vrot.slane %v1431, 4
    %v1433 = vadd.f32 %v1431, %v1432
    %v1434 = vrot.slane %v1433, 2
    %v1435 = vadd.f32 %v1433, %v1434
    %v1436 = vrot.slane %v1435, 1
    %v1437 = vadd.f32 %v1435, %v1436
    %s1438 = vtos %v1437
    %v1439 = vstv %s1438
    %v1440 = vadd.f32 %v1424, %v1439
    %vm1441 = vcmp.ge.f32.partialorder %v1440, 20.48
    %v1442 = vsel %vm1441, 1, 0
    %v1443 = vcvt.s32.f32 %v1442
    %v1444 = vmul.f32 %v1200, %v1443
    %v1445 = vmul.f32 %v1444, 0.2
    %v1446 = vrot.slane %v1412, 7
    %v1447 = vrot.slane %v1427, 7
    %1448 = vrot.lane.b32.xlu0 %v1446, 17
    %v1449 = vpop.permute.xlu0 %1448
    %1450 = vrot.lane.b32.xlu0 %v1447, 17
    %v1451 = vpop.permute.xlu0 %1450
    %v1452 = vmul.f32 %v938, %v1449
    %v1453 = vadd.f32 %v1452, 0.0
    %v1454 = vmul.f32 %v938, %v1451
    %v1455 = vadd.f32 %v1454, 0.0
    %1456 = vrot.lane.b32.xlu0 %v1446, 16
    %v1457 = vpop.permute.xlu0 %1456
    %1458 = vrot.lane.b32.xlu0 %v1447, 16
    %v1459 = vpop.permute.xlu0 %1458
    %v1460 = vmul.f32 %v947, %v1457
    %v1461 = vadd.f32 %v1453, %v1460
    %v1462 = vmul.f32 %v947, %v1459
    %v1463 = vadd.f32 %v1455, %v1462
    %1464 = vrot.lane.b32.xlu0 %v1446, 15
    %v1465 = vpop.permute.xlu0 %1464
    %1466 = vrot.lane.b32.xlu0 %v1447, 15
    %v1467 = vpop.permute.xlu0 %1466
    %v1468 = vmul.f32 %v956, %v1465
    %v1469 = vadd.f32 %v1461, %v1468
    %v1470 = vmul.f32 %v956, %v1467
    %v1471 = vadd.f32 %v1463, %v1470
    %1472 = vrot.lane.b32.xlu0 %v1446, 1
    %v1473 = vpop.permute.xlu0 %1472
    %1474 = vrot.lane.b32.xlu0 %v1447, 1
    %v1475 = vpop.permute.xlu0 %1474
    %v1476 = vmul.f32 %v965, %v1473
    %v1477 = vadd.f32 %v1469, %v1476
    %v1478 = vmul.f32 %v965, %v1475
    %v1479 = vadd.f32 %v1471, %v1478
    %v1480 = vmul.f32 %v970, %v1446
    %v1481 = vadd.f32 %v1477, %v1480
    %v1482 = vmul.f32 %v970, %v1447
    %v1483 = vadd.f32 %v1479, %v1482
    %1484 = vrot.lane.b32.xlu0 %v1446, 127
    %v1485 = vpop.permute.xlu0 %1484
    %1486 = vrot.lane.b32.xlu0 %v1447, 127
    %v1487 = vpop.permute.xlu0 %1486
    %v1488 = vmul.f32 %v979, %v1485
    %v1489 = vadd.f32 %v1481, %v1488
    %v1490 = vmul.f32 %v979, %v1487
    %v1491 = vadd.f32 %v1483, %v1490
    %1492 = vrot.lane.b32.xlu0 %v1446, 113
    %v1493 = vpop.permute.xlu0 %1492
    %1494 = vrot.lane.b32.xlu0 %v1447, 113
    %v1495 = vpop.permute.xlu0 %1494
    %v1496 = vmul.f32 %v988, %v1493
    %v1497 = vadd.f32 %v1489, %v1496
    %v1498 = vmul.f32 %v988, %v1495
    %v1499 = vadd.f32 %v1491, %v1498
    %1500 = vrot.lane.b32.xlu0 %v1446, 112
    %v1501 = vpop.permute.xlu0 %1500
    %1502 = vrot.lane.b32.xlu0 %v1447, 112
    %v1503 = vpop.permute.xlu0 %1502
    %v1504 = vmul.f32 %v997, %v1501
    %v1505 = vadd.f32 %v1497, %v1504
    %v1506 = vmul.f32 %v997, %v1503
    %v1507 = vadd.f32 %v1499, %v1506
    %1508 = vrot.lane.b32.xlu0 %v1446, 111
    %v1509 = vpop.permute.xlu0 %1508
    %1510 = vrot.lane.b32.xlu0 %v1447, 111
    %v1511 = vpop.permute.xlu0 %1510
    %v1512 = vmul.f32 %v1006, %v1509
    %v1513 = vadd.f32 %v1505, %v1512
    %v1514 = vmul.f32 %v1006, %v1511
    %v1515 = vadd.f32 %v1507, %v1514
    %1516 = vrot.lane.b32.xlu0 %v1412, 17
    %v1517 = vpop.permute.xlu0 %1516
    %1518 = vrot.lane.b32.xlu0 %v1427, 17
    %v1519 = vpop.permute.xlu0 %1518
    %v1520 = vmul.f32 %v1015, %v1517
    %v1521 = vadd.f32 %v1513, %v1520
    %v1522 = vmul.f32 %v1015, %v1519
    %v1523 = vadd.f32 %v1515, %v1522
    %1524 = vrot.lane.b32.xlu0 %v1412, 16
    %v1525 = vpop.permute.xlu0 %1524
    %1526 = vrot.lane.b32.xlu0 %v1427, 16
    %v1527 = vpop.permute.xlu0 %1526
    %v1528 = vmul.f32 %v1024, %v1525
    %v1529 = vadd.f32 %v1521, %v1528
    %v1530 = vmul.f32 %v1024, %v1527
    %v1531 = vadd.f32 %v1523, %v1530
    %1532 = vrot.lane.b32.xlu0 %v1412, 15
    %v1533 = vpop.permute.xlu0 %1532
    %1534 = vrot.lane.b32.xlu0 %v1427, 15
    %v1535 = vpop.permute.xlu0 %1534
    %v1536 = vmul.f32 %v1033, %v1533
    %v1537 = vadd.f32 %v1529, %v1536
    %v1538 = vmul.f32 %v1033, %v1535
    %v1539 = vadd.f32 %v1531, %v1538
    %1540 = vrot.lane.b32.xlu0 %v1412, 1
    %v1541 = vpop.permute.xlu0 %1540
    %1542 = vrot.lane.b32.xlu0 %v1427, 1
    %v1543 = vpop.permute.xlu0 %1542
    %v1544 = vmul.f32 %v1042, %v1541
    %v1545 = vadd.f32 %v1537, %v1544
    %v1546 = vmul.f32 %v1042, %v1543
    %v1547 = vadd.f32 %v1539, %v1546
    %v1548 = vmul.f32 %v1047, %v1412
    %v1549 = vadd.f32 %v1545, %v1548
    %v1550 = vmul.f32 %v1047, %v1427
    %v1551 = vadd.f32 %v1547, %v1550
    %1552 = vrot.lane.b32.xlu0 %v1412, 127
    %v1553 = vpop.permute.xlu0 %1552
    %1554 = vrot.lane.b32.xlu0 %v1427, 127
    %v1555 = vpop.permute.xlu0 %1554
    %v1556 = vmul.f32 %v1056, %v1553
    %v1557 = vadd.f32 %v1549, %v1556
    %v1558 = vmul.f32 %v1056, %v1555
    %v1559 = vadd.f32 %v1551, %v1558
    %1560 = vrot.lane.b32.xlu0 %v1412, 113
    %v1561 = vpop.permute.xlu0 %1560
    %1562 = vrot.lane.b32.xlu0 %v1427, 113
    %v1563 = vpop.permute.xlu0 %1562
    %v1564 = vmul.f32 %v1065, %v1561
    %v1565 = vadd.f32 %v1557, %v1564
    %v1566 = vmul.f32 %v1065, %v1563
    %v1567 = vadd.f32 %v1559, %v1566
    %1568 = vrot.lane.b32.xlu0 %v1412, 112
    %v1569 = vpop.permute.xlu0 %1568
    %1570 = vrot.lane.b32.xlu0 %v1427, 112
    %v1571 = vpop.permute.xlu0 %1570
    %v1572 = vmul.f32 %v1074, %v1569
    %v1573 = vadd.f32 %v1565, %v1572
    %v1574 = vmul.f32 %v1074, %v1571
    %v1575 = vadd.f32 %v1567, %v1574
    %1576 = vrot.lane.b32.xlu0 %v1412, 111
    %v1577 = vpop.permute.xlu0 %1576
    %1578 = vrot.lane.b32.xlu0 %v1427, 111
    %v1579 = vpop.permute.xlu0 %1578
    %v1580 = vmul.f32 %v1083, %v1577
    %v1581 = vadd.f32 %v1573, %v1580
    %v1582 = vmul.f32 %v1083, %v1579
    %v1583 = vadd.f32 %v1575, %v1582
    %v1584 = vrot.slane %v1412, 1
    %v1585 = vrot.slane %v1427, 1
    %1586 = vrot.lane.b32.xlu0 %v1584, 17
    %v1587 = vpop.permute.xlu0 %1586
    %1588 = vrot.lane.b32.xlu0 %v1585, 17
    %v1589 = vpop.permute.xlu0 %1588
    %v1590 = vmul.f32 %v1094, %v1587
    %v1591 = vadd.f32 %v1581, %v1590
    %v1592 = vmul.f32 %v1094, %v1589
    %v1593 = vadd.f32 %v1583, %v1592
    %1594 = vrot.lane.b32.xlu0 %v1584, 16
    %v1595 = vpop.permute.xlu0 %1594
    %1596 = vrot.lane.b32.xlu0 %v1585, 16
    %v1597 = vpop.permute.xlu0 %1596
    %v1598 = vmul.f32 %v1103, %v1595
    %v1599 = vadd.f32 %v1591, %v1598
    %v1600 = vmul.f32 %v1103, %v1597
    %v1601 = vadd.f32 %v1593, %v1600
    %1602 = vrot.lane.b32.xlu0 %v1584, 15
    %v1603 = vpop.permute.xlu0 %1602
    %1604 = vrot.lane.b32.xlu0 %v1585, 15
    %v1605 = vpop.permute.xlu0 %1604
    %v1606 = vmul.f32 %v1112, %v1603
    %v1607 = vadd.f32 %v1599, %v1606
    %v1608 = vmul.f32 %v1112, %v1605
    %v1609 = vadd.f32 %v1601, %v1608
    %1610 = vrot.lane.b32.xlu0 %v1584, 1
    %v1611 = vpop.permute.xlu0 %1610
    %1612 = vrot.lane.b32.xlu0 %v1585, 1
    %v1613 = vpop.permute.xlu0 %1612
    %v1614 = vmul.f32 %v1121, %v1611
    %v1615 = vadd.f32 %v1607, %v1614
    %v1616 = vmul.f32 %v1121, %v1613
    %v1617 = vadd.f32 %v1609, %v1616
    %v1618 = vmul.f32 %v1126, %v1584
    %v1619 = vadd.f32 %v1615, %v1618
    %v1620 = vmul.f32 %v1126, %v1585
    %v1621 = vadd.f32 %v1617, %v1620
    %1622 = vrot.lane.b32.xlu0 %v1584, 127
    %v1623 = vpop.permute.xlu0 %1622
    %1624 = vrot.lane.b32.xlu0 %v1585, 127
    %v1625 = vpop.permute.xlu0 %1624
    %v1626 = vmul.f32 %v1135, %v1623
    %v1627 = vadd.f32 %v1619, %v1626
    %v1628 = vmul.f32 %v1135, %v1625
    %v1629 = vadd.f32 %v1621, %v1628
    %1630 = vrot.lane.b32.xlu0 %v1584, 113
    %v1631 = vpop.permute.xlu0 %1630
    %1632 = vrot.lane.b32.xlu0 %v1585, 113
    %v1633 = vpop.permute.xlu0 %1632
    %v1634 = vmul.f32 %v1144, %v1631
    %v1635 = vadd.f32 %v1627, %v1634
    %v1636 = vmul.f32 %v1144, %v1633
    %v1637 = vadd.f32 %v1629, %v1636
    %1638 = vrot.lane.b32.xlu0 %v1584, 112
    %v1639 = vpop.permute.xlu0 %1638
    %1640 = vrot.lane.b32.xlu0 %v1585, 112
    %v1641 = vpop.permute.xlu0 %1640
    %v1642 = vmul.f32 %v1153, %v1639
    %v1643 = vadd.f32 %v1635, %v1642
    %v1644 = vmul.f32 %v1153, %v1641
    %v1645 = vadd.f32 %v1637, %v1644
    %1646 = vrot.lane.b32.xlu0 %v1584, 111
    %v1647 = vpop.permute.xlu0 %1646
    %1648 = vrot.lane.b32.xlu0 %v1585, 111
    %v1649 = vpop.permute.xlu0 %1648
    %v1650 = vmul.f32 %v1162, %v1647
    %v1651 = vadd.f32 %v1643, %v1650
    %v1652 = vmul.f32 %v1162, %v1649
    %v1653 = vadd.f32 %v1645, %v1652
    %v1654 = vsub.f32 %v1651, %v1412
    %v1655 = vmul.f32 %v1445, %v1654
    %v1656 = vadd.f32 %v1412, %v1655
    %v1657 = vsub.f32 %v1653, %v1427
    %v1658 = vmul.f32 %v1445, %v1657
    %v1659 = vadd.f32 %v1427, %v1658
    %1660 = vmax.xlane.f32.xlu0 %v1656
    %v1661 = vpop.xlane.xlu0 %1660
    %v1662 = vrot.slane %v1661, 4
    %v1663 = vmax.f32 %v1661, %v1662
    %v1664 = vrot.slane %v1663, 2
    %v1665 = vmax.f32 %v1663, %v1664
    %v1666 = vrot.slane %v1665, 1
    %v1667 = vmax.f32 %v1665, %v1666
    %s1668 = vtos %v1667
    %v1669 = vstv %s1668
    %1670 = vmax.xlane.f32.xlu0 %v1659
    %v1671 = vpop.xlane.xlu0 %1670
    %v1672 = vrot.slane %v1671, 4
    %v1673 = vmax.f32 %v1671, %v1672
    %v1674 = vrot.slane %v1673, 2
    %v1675 = vmax.f32 %v1673, %v1674
    %v1676 = vrot.slane %v1675, 1
    %v1677 = vmax.f32 %v1675, %v1676
    %s1678 = vtos %v1677
    %v1679 = vstv %s1678
    %v1680 = vmax.f32 %v1669, %v1679
    %v1681 = vrcp.pop %v1680
    %v1682 = vmul.f32 1.0, %v1681
    %v1683 = vmul.f32 %v1656, %v1682
    %1684 = vst [vmem:[%s5] sm:$0xff] %v1683
    %v1685 = vmul.f32 %v1659, %v1682
    %s1686 = scalar_lea.vmem %s5, 8
    %1687 = vst [vmem:[%s1686] sm:$0xff] %v1685
    // Predicated region
    $region30: #{convcrf3d_forward.1} parent=1 // pred_check
      _
    $region31: #{convcrf3d_forward.1} parent=1 // pred_check_branch
      %1689 = sbr.rel (0) target = $region33
    $region32: #{convcrf3d_forward.1} parent=1 // pred_region
      _
    $region33: #{convcrf3d_forward.1} parent=1 // pred_fallthru
      _
    // Predicated region
    $region34: #{convcrf3d_forward.1} parent=1 // pred_check
      _
    $region35: #{convcrf3d_forward.1} parent=1 // pred_check_branch
      %1691 = sbr.rel (0) target = $region37
    $region36: #{convcrf3d_forward.1} parent=1 // pred_region
      _
    $region37: #{convcrf3d_forward.1} parent=1 // pred_fallthru
      _
    %1692 = vsyncpa [#allocation4], 1
    %1693 = vsyncpa [#allocation6], 1

</llo_original>
